<compile_context>
chip_gen: v7x
topology: tpu7x:2x2x1
jax: 0.10.0
libtpu: 0.0.40
codegen_flags: <defaults>
</compile_context>

<pallas_src>
import jax
import jax.numpy as jnp
from jax.experimental import pallas as pl
from jax.experimental.pallas import tpu as pltpu


def _dft_matrices(n):
    """Real/imag parts of the symmetric n x n DFT matrix (int32-exact angles)."""
    k = jnp.arange(n, dtype=jnp.int32)
    kk = (k[:, None] * k[None, :]) % n          # exact in int32, angles in (-2pi, 0]
    ang = (-2.0 * jnp.pi / n) * kk.astype(jnp.float32)
    return jnp.cos(ang), jnp.sin(ang)


def _pick_images_per_block(n_img, H, W, max_images=None):
    """Largest divisor of n_img that keeps the per-step VMEM footprint sane."""
    # ~64 B of VMEM per input element per in-flight image (double-buffered f32
    # inputs + f32 intermediates); keep well under the 48 MiB limit we request.
    budget_bytes = 28 * 1024 * 1024
    cap = max(1, budget_bytes // (64 * H * W))
    if max_images is not None:
        cap = min(cap, max_images)
    tb = 1
    for cand in range(1, n_img + 1):
        if cand <= cap and n_img % cand == 0:
            tb = cand
    return tb


def _make_kernel(TB, H, W, square):
    Hh = H // 2 + 1
    M1 = TB * H          # rows of the width-DFT matmul
    M2 = TB * W          # rows of the height-DFT matmul

    def spectrum_sq(x, fwr, fwi, fhr_h, fhi_h, fhs_h):
        # x: (TB, H, W) real block -> |FFT2(x)|^2 for height bins 0..H//2,
        # laid out as (TB*W, Hh) (lanes = height frequency).
        xf = x.reshape(M1, W)
        # Width DFT (input is real -> only 2 matmuls).
        tr = jnp.dot(xf, fwr, preferred_element_type=jnp.float32)
        ti = jnp.dot(xf, fwi, preferred_element_type=jnp.float32)
        # Per-image minor-dim transpose so the height DFT is one big matmul too.
        tr = jnp.swapaxes(tr.reshape(TB, H, W), 1, 2).reshape(M2, H)
        ti = jnp.swapaxes(ti.reshape(TB, H, W), 1, 2).reshape(M2, H)
        # Height DFT via the Gauss 3-multiply complex matmul.
        m1 = jnp.dot(tr, fhr_h, preferred_element_type=jnp.float32)
        m2 = jnp.dot(ti, fhi_h, preferred_element_type=jnp.float32)
        m3 = jnp.dot(tr + ti, fhs_h, preferred_element_type=jnp.float32)
        yr = m1 - m2
        yi = m3 - m1 - m2
        return yr * yr + yi * yi

    def finish(mats, ref_ref, pre_ref, out_ref):
        a_ref = spectrum_sq(ref_ref[...], *mats)
        a_pre = spectrum_sq(pre_ref[...], *mats)
        # |log|Yref| - log|Ypre|| == 0.5 * |log(|Yref|^2 / |Ypre|^2)|
        # (single EUP log; 0.5 and the symmetry weights are applied outside).
        d = jnp.abs(jnp.log(a_ref / a_pre))
        out_ref[0] = jnp.sum(d, axis=0, keepdims=True)   # (1, Hh) partial sums

    if square:
        # H == W: the height-DFT operands are slices of the width-DFT matrices.
        def kernel(f_r_ref, f_i_ref, ref_ref, pre_ref, out_ref):
            fr = f_r_ref[...]
            fi = f_i_ref[...]
            fhr_h = fr[:, :Hh]
            fhi_h = fi[:, :Hh]
            finish((fr, fi, fhr_h, fhi_h, fhr_h + fhi_h),
                   ref_ref, pre_ref, out_ref)
    else:
        def kernel(fwr_ref, fwi_ref, fhr_ref, fhi_ref, fhs_ref,
                   ref_ref, pre_ref, out_ref):
            finish((fwr_ref[...], fwi_ref[...], fhr_ref[...],
                    fhi_ref[...], fhs_ref[...]),
                   ref_ref, pre_ref, out_ref)
    return kernel


def _fallback_loss(Ref, pre):
    # TODO(synk): non-8-aligned H/W use the XLA FFT path (the in-kernel
    # reshape/transpose tiling wants 8-aligned spatial dims).
    def log_mag(x):
        f = jnp.fft.fft2(x.astype(jnp.float32), axes=(2, 3))
        return jnp.log(jnp.abs(f))
    return jnp.mean(jnp.abs(log_mag(Ref) - log_mag(pre)))


def triple_loss(LR, Ref, pre, max_images_per_block=None):
    """Pallas implementation of TripleLoss.forward(LR, Ref, pre). LR is unused."""
    del LR  # unused, matches the PyTorch forward
    B, C, H, W = Ref.shape
    n_img = B * C

    if H % 8 != 0 or W % 8 != 0:
        return _fallback_loss(Ref, pre)

    Hh = H // 2 + 1
    ref_flat = Ref.reshape(n_img, H, W).astype(jnp.float32)
    pre_flat = pre.reshape(n_img, H, W).astype(jnp.float32)

    fwr, fwi = _dft_matrices(W)
    square = (H == W)
    if square:
        mats = (fwr, fwi)                      # height operands sliced in-kernel
    else:
        fhr, fhi = _dft_matrices(H)
        fhr_h = fhr[:, :Hh]
        fhi_h = fhi[:, :Hh]
        mats = (fwr, fwi, fhr_h, fhi_h, fhr_h + fhi_h)

    TB = _pick_images_per_block(n_img, H, W, max_images_per_block)
    n_blocks = n_img // TB
    kernel = _make_kernel(TB, H, W, square)

    # Constant DFT matrices: constant index_map -> fetched once, no re-DMA.
    mat_specs = [pl.BlockSpec(m.shape, lambda b: (0, 0)) for m in mats]
    img_spec = pl.BlockSpec((TB, H, W), lambda b: (b, 0, 0))
    out_spec = pl.BlockSpec((1, 1, Hh), lambda b: (b, 0, 0))

    cost = pl.CostEstimate(
        flops=int(2 * n_img * (4 * H * W * W + 6 * W * H * Hh)),
        transcendentals=int(n_img * W * Hh),
        bytes_accessed=int(4 * (2 * n_img * H * W
                                + sum(int(m.size) for m in mats)
                                + n_blocks * Hh)),
    )

    partials = pl.pallas_call(
        kernel,
        out_shape=jax.ShapeDtypeStruct((n_blocks, 1, Hh), jnp.float32),
        grid=(n_blocks,),
        in_specs=mat_specs + [img_spec, img_spec],
        out_specs=out_spec,
        compiler_params=pltpu.CompilerParams(
            dimension_semantics=("parallel",),
            vmem_limit_bytes=48 * 1024 * 1024),
        cost_estimate=cost,
    )(*mats, ref_flat, pre_flat)

    # Conjugate-symmetry weights: height bins 0 and H/2 occur once; every other
    # kept bin also stands for its mirrored row.
    idx = jnp.arange(Hh)
    if H % 2 == 0:
        edge = (idx == 0) | (idx == H // 2)
    else:
        edge = (idx == 0)
    wgt = jnp.where(edge, 1.0, 2.0).astype(jnp.float32)

    total = jnp.sum(jnp.sum(partials, axis=(0, 1)) * wgt)
    # 0.5: log(|Y|^2) = 2*log|Y|;  mean over all B*C*H*W spectrum elements.
    return 0.5 * total / jnp.float32(n_img * H * W)


def _reference_loss(Ref, pre):
    """Pure-JAX reference mirroring the PyTorch module (incl. the roll)."""
    def log_mag(x):
        f = jnp.fft.fft2(x, axes=(2, 3))
        f = jnp.roll(f, (x.shape[2] // 2, x.shape[3] // 2), axis=(2, 3))
        return jnp.log(jnp.abs(f))
    return jnp.mean(jnp.abs(log_mag(Ref) - log_mag(pre)))


if __name__ == "__main__":
    key = jax.random.PRNGKey(0)
    k1, k2, k3, k4, k5 = jax.random.split(key, 5)

    # Square case: (B, C, H, W) = (2, 4, 16, 16); LR is unused by the loss.
    B, C, H, W = 2, 4, 16, 16
    LR = jax.random.normal(k1, (B, C, H // 2, W // 2), dtype=jnp.float32)
    Ref = jax.random.normal(k2, (B, C, H, W), dtype=jnp.float32)
    pre = jax.random.normal(k3, (B, C, H, W), dtype=jnp.float32)

    loss = jax.block_until_ready(triple_loss(LR, Ref, pre))
    want = _reference_loss(Ref, pre)
    assert jnp.allclose(loss, want, rtol=1e-2, atol=1e-2), (loss, want)

    # Multi-block grid (exercises the parallel grid axis / block index maps).
    loss_mb = jax.block_until_ready(
        triple_loss(LR, Ref, pre, max_images_per_block=2))
    assert jnp.allclose(loss_mb, want, rtol=1e-2, atol=1e-2), (loss_mb, want)

    # Non-square case (exercises the H != W kernel path).
    Ref2 = jax.random.normal(k4, (2, 2, 16, 32), dtype=jnp.float32)
    pre2 = jax.random.normal(k5, (2, 2, 16, 32), dtype=jnp.float32)
    loss2 = jax.block_until_ready(triple_loss(None, Ref2, pre2))
    want2 = _reference_loss(Ref2, pre2)
    assert jnp.allclose(loss2, want2, rtol=1e-2, atol=1e-2), (loss2, want2)

    print("KERNEL_OK")
</pallas_src>

<mosaic_0001>
module attributes {stable_mosaic.version = 11 : i64} {
  func.func @kernel(%arg0: i32, %arg1: memref<16x16xf32, #tpu.memory_space<vmem>>, %arg2: memref<16x16xf32, #tpu.memory_space<vmem>>, %arg3: memref<8x16x16xf32, #tpu.memory_space<vmem>>, %arg4: memref<8x16x16xf32, #tpu.memory_space<vmem>>, %arg5: memref<1x1x9xf32, #tpu.memory_space<vmem>>) attributes {dimension_semantics = [#tpu.dimension_semantics<parallel>], iteration_bounds = array<i64: 1>, scalar_prefetch = 0 : i64, scratch_operands = 0 : i64, tpu.core_type = #tpu.core_type<tc>, window_params = [{pipeline_mode = #tpu.pipeline_mode<synchronous>, transform_indices = @transform_0, window_bounds = array<i64: 16, 16>}, {pipeline_mode = #tpu.pipeline_mode<synchronous>, transform_indices = @transform_1, window_bounds = array<i64: 16, 16>}, {transform_indices = @transform_2, window_bounds = array<i64: 8, 16, 16>}, {transform_indices = @transform_3, window_bounds = array<i64: 8, 16, 16>}, {transform_indices = @transform_4, window_bounds = array<i64: 1, 1, 9>}]} {
    %c0 = arith.constant 0 : index
    %c0_0 = arith.constant 0 : index
    %0 = vector.load %arg1[%c0, %c0_0] : memref<16x16xf32, #tpu.memory_space<vmem>>, vector<16x16xf32>
    %c0_1 = arith.constant 0 : index
    %c0_2 = arith.constant 0 : index
    %1 = vector.load %arg2[%c0_1, %c0_2] : memref<16x16xf32, #tpu.memory_space<vmem>>, vector<16x16xf32>
    %2 = vector.extract_strided_slice %0 {offsets = [0, 0], sizes = [16, 9], strides = [1, 1]} : vector<16x16xf32> to vector<16x9xf32>
    %3 = vector.extract_strided_slice %1 {offsets = [0, 0], sizes = [16, 9], strides = [1, 1]} : vector<16x16xf32> to vector<16x9xf32>
    %4 = arith.addf %2, %3 : vector<16x9xf32>
    %c0_3 = arith.constant 0 : index
    %c0_4 = arith.constant 0 : index
    %c0_5 = arith.constant 0 : index
    %5 = vector.load %arg3[%c0_3, %c0_4, %c0_5] : memref<8x16x16xf32, #tpu.memory_space<vmem>>, vector<8x16x16xf32>
    %6 = vector.shape_cast %5 : vector<8x16x16xf32> to vector<128x16xf32>
    %cst = arith.constant dense<0.000000e+00> : vector<128x16xf32>
    %7 = tpu.matmul %6, %0, %cst {dimension_numbers = #tpu.dot_dimension_numbers<[1], [0], [0], [1], [0, 0, 1, 1], [], []>} : vector<128x16xf32>, vector<16x16xf32>, vector<128x16xf32> -> vector<128x16xf32>
    %cst_6 = arith.constant dense<0.000000e+00> : vector<128x16xf32>
    %8 = tpu.matmul %6, %1, %cst_6 {dimension_numbers = #tpu.dot_dimension_numbers<[1], [0], [0], [1], [0, 0, 1, 1], [], []>} : vector<128x16xf32>, vector<16x16xf32>, vector<128x16xf32> -> vector<128x16xf32>
    %9 = vector.shape_cast %7 : vector<128x16xf32> to vector<8x16x16xf32>
    %10 = tpu.transpose %9, [0, 2, 1] : vector<8x16x16xf32> -> vector<8x16x16xf32>
    %11 = vector.shape_cast %10 : vector<8x16x16xf32> to vector<128x16xf32>
    %12 = vector.shape_cast %8 : vector<128x16xf32> to vector<8x16x16xf32>
    %13 = tpu.transpose %12, [0, 2, 1] : vector<8x16x16xf32> -> vector<8x16x16xf32>
    %14 = vector.shape_cast %13 : vector<8x16x16xf32> to vector<128x16xf32>
    %cst_7 = arith.constant dense<0.000000e+00> : vector<128x9xf32>
    %15 = tpu.matmul %11, %2, %cst_7 {dimension_numbers = #tpu.dot_dimension_numbers<[1], [0], [0], [1], [0, 0, 1, 1], [], []>} : vector<128x16xf32>, vector<16x9xf32>, vector<128x9xf32> -> vector<128x9xf32>
    %cst_8 = arith.constant dense<0.000000e+00> : vector<128x9xf32>
    %16 = tpu.matmul %14, %3, %cst_8 {dimension_numbers = #tpu.dot_dimension_numbers<[1], [0], [0], [1], [0, 0, 1, 1], [], []>} : vector<128x16xf32>, vector<16x9xf32>, vector<128x9xf32> -> vector<128x9xf32>
    %17 = arith.addf %11, %14 : vector<128x16xf32>
    %cst_9 = arith.constant dense<0.000000e+00> : vector<128x9xf32>
    %18 = tpu.matmul %17, %4, %cst_9 {dimension_numbers = #tpu.dot_dimension_numbers<[1], [0], [0], [1], [0, 0, 1, 1], [], []>} : vector<128x16xf32>, vector<16x9xf32>, vector<128x9xf32> -> vector<128x9xf32>
    %19 = arith.subf %15, %16 : vector<128x9xf32>
    %20 = arith.subf %18, %15 : vector<128x9xf32>
    %21 = arith.subf %20, %16 : vector<128x9xf32>
    %22 = arith.mulf %19, %19 : vector<128x9xf32>
    %23 = arith.mulf %21, %21 : vector<128x9xf32>
    %24 = arith.addf %22, %23 : vector<128x9xf32>
    %c0_10 = arith.constant 0 : index
    %c0_11 = arith.constant 0 : index
    %c0_12 = arith.constant 0 : index
    %25 = vector.load %arg4[%c0_10, %c0_11, %c0_12] : memref<8x16x16xf32, #tpu.memory_space<vmem>>, vector<8x16x16xf32>
    %26 = vector.shape_cast %25 : vector<8x16x16xf32> to vector<128x16xf32>
    %cst_13 = arith.constant dense<0.000000e+00> : vector<128x16xf32>
    %27 = tpu.matmul %26, %0, %cst_13 {dimension_numbers = #tpu.dot_dimension_numbers<[1], [0], [0], [1], [0, 0, 1, 1], [], []>} : vector<128x16xf32>, vector<16x16xf32>, vector<128x16xf32> -> vector<128x16xf32>
    %cst_14 = arith.constant dense<0.000000e+00> : vector<128x16xf32>
    %28 = tpu.matmul %26, %1, %cst_14 {dimension_numbers = #tpu.dot_dimension_numbers<[1], [0], [0], [1], [0, 0, 1, 1], [], []>} : vector<128x16xf32>, vector<16x16xf32>, vector<128x16xf32> -> vector<128x16xf32>
    %29 = vector.shape_cast %27 : vector<128x16xf32> to vector<8x16x16xf32>
    %30 = tpu.transpose %29, [0, 2, 1] : vector<8x16x16xf32> -> vector<8x16x16xf32>
    %31 = vector.shape_cast %30 : vector<8x16x16xf32> to vector<128x16xf32>
    %32 = vector.shape_cast %28 : vector<128x16xf32> to vector<8x16x16xf32>
    %33 = tpu.transpose %32, [0, 2, 1] : vector<8x16x16xf32> -> vector<8x16x16xf32>
    %34 = vector.shape_cast %33 : vector<8x16x16xf32> to vector<128x16xf32>
    %cst_15 = arith.constant dense<0.000000e+00> : vector<128x9xf32>
    %35 = tpu.matmul %31, %2, %cst_15 {dimension_numbers = #tpu.dot_dimension_numbers<[1], [0], [0], [1], [0, 0, 1, 1], [], []>} : vector<128x16xf32>, vector<16x9xf32>, vector<128x9xf32> -> vector<128x9xf32>
    %cst_16 = arith.constant dense<0.000000e+00> : vector<128x9xf32>
    %36 = tpu.matmul %34, %3, %cst_16 {dimension_numbers = #tpu.dot_dimension_numbers<[1], [0], [0], [1], [0, 0, 1, 1], [], []>} : vector<128x16xf32>, vector<16x9xf32>, vector<128x9xf32> -> vector<128x9xf32>
    %37 = arith.addf %31, %34 : vector<128x16xf32>
    %cst_17 = arith.constant dense<0.000000e+00> : vector<128x9xf32>
    %38 = tpu.matmul %37, %4, %cst_17 {dimension_numbers = #tpu.dot_dimension_numbers<[1], [0], [0], [1], [0, 0, 1, 1], [], []>} : vector<128x16xf32>, vector<16x9xf32>, vector<128x9xf32> -> vector<128x9xf32>
    %39 = arith.subf %35, %36 : vector<128x9xf32>
    %40 = arith.subf %38, %35 : vector<128x9xf32>
    %41 = arith.subf %40, %36 : vector<128x9xf32>
    %42 = arith.mulf %39, %39 : vector<128x9xf32>
    %43 = arith.mulf %41, %41 : vector<128x9xf32>
    %44 = arith.addf %42, %43 : vector<128x9xf32>
    %45 = arith.divf %24, %44 : vector<128x9xf32>
    %46 = math.log %45 : vector<128x9xf32>
    %47 = math.absf %46 : vector<128x9xf32>
    %cst_18 = arith.constant dense<0.000000e+00> : vector<9xf32>
    %48 = vector.multi_reduction <add>, %47, %cst_18 [0] : vector<128x9xf32> to vector<9xf32>
    %49 = vector.shape_cast %48 : vector<9xf32> to vector<1x9xf32>
    %c0_19 = arith.constant 0 : index
    %c0_20 = arith.constant 0 : index
    %c0_21 = arith.constant 0 : index
    %50 = vector.load %arg5[%c0_19, %c0_20, %c0_21] : memref<1x1x9xf32, #tpu.memory_space<vmem>>, vector<1x1x9xf32>
    %51 = vector.shape_cast %50 : vector<1x1x9xf32> to vector<1x9xf32>
    %52 = vector.shape_cast %49 : vector<1x9xf32> to vector<1x1x9xf32>
    tpu.vector_store %arg5[%c0_19, %c0_20, %c0_21], %52 {strides = array<i32>} : memref<1x1x9xf32, #tpu.memory_space<vmem>>, vector<1x1x9xf32>,
    return
  }
  func.func @transform_0(%arg0: i32) -> (i32, i32) {
    %c0_i32 = arith.constant 0 : i32
    %c0_i32_0 = arith.constant 0 : i32
    %c0_i32_1 = arith.constant 0 : i32
    return %c0_i32, %c0_i32_0 : i32, i32
  }
  func.func @transform_1(%arg0: i32) -> (i32, i32) {
    %c0_i32 = arith.constant 0 : i32
    %c0_i32_0 = arith.constant 0 : i32
    %c0_i32_1 = arith.constant 0 : i32
    return %c0_i32, %c0_i32_0 : i32, i32
  }
  func.func @transform_2(%arg0: i32) -> (i32, i32, i32) {
    %c0_i32 = arith.constant 0 : i32
    %c0_i32_0 = arith.constant 0 : i32
    %c0_i32_1 = arith.constant 0 : i32
    return %arg0, %c0_i32, %c0_i32_0 : i32, i32, i32
  }
  func.func @transform_3(%arg0: i32) -> (i32, i32, i32) {
    %c0_i32 = arith.constant 0 : i32
    %c0_i32_0 = arith.constant 0 : i32
    %c0_i32_1 = arith.constant 0 : i32
    return %arg0, %c0_i32, %c0_i32_0 : i32, i32, i32
  }
  func.func @transform_4(%arg0: i32) -> (i32, i32, i32) {
    %c0_i32 = arith.constant 0 : i32
    %c0_i32_0 = arith.constant 0 : i32
    %c0_i32_1 = arith.constant 0 : i32
    return %arg0, %c0_i32, %c0_i32_0 : i32, i32, i32
  }
}

</mosaic_0001>

<llo_original>
// kernel: tpu_custom_call.1
$region0: #{tpu_custom_call.1}
  #allocation0 [shape = 'u32[]', space=smem, size = 0x4, offset = 0x4, fixed_abs, tag = 'smem constant byte address 0x4 - core index']
  #allocation1 [shape = 'u32[144,128]{1,0:T(1,128)}', space=vmem, size = 0x12000, scoped, tag = 'internal scratch']
  %s0 = inlined_call_operand.hbm [shape: f32[16,16], index: 0, kind: input, shape index: {}]
  %s1 = inlined_call_operand.hbm [shape: f32[16,16], index: 1, kind: input, shape index: {}]
  %s2 = inlined_call_operand.hbm [shape: f32[8,16,16], index: 2, kind: input, shape index: {}]
  %s3 = inlined_call_operand.hbm [shape: f32[8,16,16], index: 3, kind: input, shape index: {}]
  %s4 = inlined_call_operand.hbm [shape: f32[1,1,9], index: 4, kind: output, shape index: {}]
  %s5 = sld [smem:[#allocation0]]
  $region42: #{tpu_custom_call.1} parent=0
    _
  %s7 = ssub.s32 1, %s5
  %s8 = scalar_select 0, %s7, %s5
  $region1: #{tpu_custom_call.1} parent=0
    #allocation2 [shape = 'u8[8192]{0}', space=vmem, size = 0x2000, scoped, tag = 'input window, operand 0, single buffered']
    #allocation3 [shape = 's32[1]{0}', space=sflag, size = 0x4, scoped, tag = 'scoped memory for tpu_custom_call.1']
    #allocation4 [shape = 's32[1]{0}', space=sflag, size = 0x4, scoped, tag = 'scoped memory for tpu_custom_call.1']
    #allocation5 [shape = 'u8[8192]{0}', space=vmem, size = 0x2000, scoped, tag = 'input window, operand 1, single buffered']
    #allocation6 [shape = 's32[1]{0}', space=sflag, size = 0x4, scoped, tag = 'scoped memory for tpu_custom_call.1']
    #allocation7 [shape = 'u8[65536]{0}', space=vmem, size = 0x10000, scoped, tag = 'input window, operand 2, single buffered']
    #allocation8 [shape = 'u8[65536]{0}', space=vmem, size = 0x10000, scoped, tag = 'input window, operand 3, single buffered']
    #allocation9 [shape = 's32[1]{0}', space=sflag, size = 0x4, scoped, tag = 'scoped memory for tpu_custom_call.1']
    #allocation10 [shape = 'u8[512]{0}', space=vmem, size = 0x400, scoped, tag = 'output window, operand 0, single buffered']
    %9 = vsyncpa [#allocation3], 0
    %10 = vsyncpa [#allocation6], 0
    %11 = vsyncpa [#allocation9], 0
    %12 = vsyncpa [#allocation4], 0
    // Predicated region
    $region2: #{tpu_custom_call.1} parent=1 // pred_check
      _
    $region3: #{tpu_custom_call.1} parent=1 // pred_check_branch
      %14 = sbr.rel (0) target = $region5
    $region4: #{tpu_custom_call.1} parent=1 // pred_region
      %s16 = ssub.s32 256, 256
      %17 = vsyncadd [#allocation3], %s16
      %s18 = sshll.u32 [#allocation2], 4
      %s19 = int_to_ptr.vmem [resolvable:$true] %s18
      %24 = dma.hbm_to_vmem [thread:$0]  %s0, 256, %s19, [#allocation3], 128, 128, 8
    $region5: #{tpu_custom_call.1} parent=1 // pred_fallthru
      _
    // Predicated region
    $region6: #{tpu_custom_call.1} parent=1 // pred_check
      _
    $region7: #{tpu_custom_call.1} parent=1 // pred_check_branch
      %26 = sbr.rel (0) target = $region9
    $region8: #{tpu_custom_call.1} parent=1 // pred_region
      %s28 = ssub.s32 256, 256
      %29 = vsyncadd [#allocation6], %s28
      %s30 = sshll.u32 [#allocation5], 4
      %s31 = int_to_ptr.vmem [resolvable:$true] %s30
      %36 = dma.hbm_to_vmem [thread:$0]  %s1, 256, %s31, [#allocation6], 128, 128, 8
    $region9: #{tpu_custom_call.1} parent=1 // pred_fallthru
      _
    // Predicated region
    $region10: #{tpu_custom_call.1} parent=1 // pred_check
      _
    $region11: #{tpu_custom_call.1} parent=1 // pred_check_branch
      %38 = sbr.rel (0) target = $region13
    $region12: #{tpu_custom_call.1} parent=1 // pred_region
      %s40 = ssub.s32 2048, 2048
      %41 = vsyncadd [#allocation6], %s40
      %s42 = sshll.u32 [#allocation7], 4
      %s43 = int_to_ptr.vmem [resolvable:$true] %s42
      %48 = dma.hbm_to_vmem [thread:$0]  %s2, 2048, %s43, [#allocation6], 128, 128, 8
    $region13: #{tpu_custom_call.1} parent=1 // pred_fallthru
      _
    // Predicated region
    $region14: #{tpu_custom_call.1} parent=1 // pred_check
      _
    $region15: #{tpu_custom_call.1} parent=1 // pred_check_branch
      %50 = sbr.rel (0) target = $region17
    $region16: #{tpu_custom_call.1} parent=1 // pred_region
      %s52 = ssub.s32 2048, 2048
      %53 = vsyncadd [#allocation9], %s52
      %s54 = sshll.u32 [#allocation8], 4
      %s55 = int_to_ptr.vmem [resolvable:$true] %s54
      %60 = dma.hbm_to_vmem [thread:$0]  %s3, 2048, %s55, [#allocation9], 128, 128, 8
    $region17: #{tpu_custom_call.1} parent=1 // pred_fallthru
      _
    // Predicated region
    $region18: #{tpu_custom_call.1} parent=1 // pred_check
      _
    $region19: #{tpu_custom_call.1} parent=1 // pred_check_branch
      %62 = sbr.rel (0) target = $region21
    $region20: #{tpu_custom_call.1} parent=1 // pred_region
      %63 = dma.done [#allocation3], 256
    $region21: #{tpu_custom_call.1} parent=1 // pred_fallthru
      _
    // Predicated region
    $region22: #{tpu_custom_call.1} parent=1 // pred_check
      _
    $region23: #{tpu_custom_call.1} parent=1 // pred_check_branch
      %65 = sbr.rel (0) target = $region25
    $region24: #{tpu_custom_call.1} parent=1 // pred_region
      %66 = dma.done [#allocation6], 256
    $region25: #{tpu_custom_call.1} parent=1 // pred_fallthru
      _
    // Predicated region
    $region26: #{tpu_custom_call.1} parent=1 // pred_check
      _
    $region27: #{tpu_custom_call.1} parent=1 // pred_check_branch
      %68 = sbr.rel (0) target = $region29
    $region28: #{tpu_custom_call.1} parent=1 // pred_region
      %69 = dma.done [#allocation6], 2048
    $region29: #{tpu_custom_call.1} parent=1 // pred_fallthru
      _
    // Predicated region
    $region30: #{tpu_custom_call.1} parent=1 // pred_check
      _
    $region31: #{tpu_custom_call.1} parent=1 // pred_check_branch
      %71 = sbr.rel (0) target = $region33
    $region32: #{tpu_custom_call.1} parent=1 // pred_region
      %72 = dma.done [#allocation9], 2048
    $region33: #{tpu_custom_call.1} parent=1 // pred_fallthru
      _
    %v73 = vld [vmem:[#allocation2] sm:$0xff]
    %v74 = vld [vmem:[#allocation2 + $0x8] sm:$0xff]
    %v75 = vld [vmem:[#allocation5] sm:$0xff]
    %v76 = vld [vmem:[#allocation5 + $0x8] sm:$0xff]
    %v77 = vadd.f32 %v73, %v75
    %v78 = vadd.f32 %v74, %v76
    %v79 = vld [vmem:[#allocation7] sm:$0xff]
    %v80 = vld [vmem:[#allocation7 + $0x8] sm:$0xff]
    %v81 = vld [vmem:[#allocation7 + $0x10] sm:$0xff]
    %v82 = vld [vmem:[#allocation7 + $0x18] sm:$0xff]
    %v83 = vld [vmem:[#allocation7 + $0x20] sm:$0xff]
    %v84 = vld [vmem:[#allocation7 + $0x28] sm:$0xff]
    %v85 = vld [vmem:[#allocation7 + $0x30] sm:$0xff]
    %v86 = vld [vmem:[#allocation7 + $0x38] sm:$0xff]
    %v87 = vld [vmem:[#allocation7 + $0x40] sm:$0xff]
    %v88 = vld [vmem:[#allocation7 + $0x48] sm:$0xff]
    %v89 = vld [vmem:[#allocation7 + $0x50] sm:$0xff]
    %v90 = vld [vmem:[#allocation7 + $0x58] sm:$0xff]
    %v91 = vld [vmem:[#allocation7 + $0x60] sm:$0xff]
    %v92 = vld [vmem:[#allocation7 + $0x68] sm:$0xff]
    %v93 = vld [vmem:[#allocation7 + $0x70] sm:$0xff]
    %v94 = vld [vmem:[#allocation7 + $0x78] sm:$0xff]
    %vm95 = vcmask 130048
    %v97 = vsel %vm95, %v79, 0
    %v100 = vsel %vm95, %v80, 0
    %v103 = vsel %vm95, %v81, 0
    %v106 = vsel %vm95, %v82, 0
    %v109 = vsel %vm95, %v83, 0
    %v112 = vsel %vm95, %v84, 0
    %v115 = vsel %vm95, %v85, 0
    %v118 = vsel %vm95, %v86, 0
    %v121 = vsel %vm95, %v87, 0
    %v124 = vsel %vm95, %v88, 0
    %v127 = vsel %vm95, %v89, 0
    %v130 = vsel %vm95, %v90, 0
    %v133 = vsel %vm95, %v91, 0
    %v136 = vsel %vm95, %v92, 0
    %v139 = vsel %vm95, %v93, 0
    %v142 = vsel %vm95, %v94, 0
    %144 = vmatprep.subr.mxu0 0.0
    %145 = vmatpush1.msra.mxu0 %v73
    %146 = vmatprep.subr.mxu0 0.0
    %147 = vmatpush1.msra.mxu0 %v74
    %148 = vmatprep.subr.mxu0 0.0
    %149 = vmatpush1.msra.mxu0 0.0
    %150 = vmatprep.subr.mxu0 0.0
    %151 = vmatpush1.msra.mxu0 0.0
    %152 = vmatprep.subr.mxu0 0.0
    %153 = vmatpush1.msra.mxu0 0.0
    %154 = vmatprep.subr.mxu0 0.0
    %155 = vmatpush1.msra.mxu0 0.0
    %156 = vmatprep.subr.mxu0 0.0
    %157 = vmatpush1.msra.mxu0 0.0
    %158 = vmatprep.subr.mxu0 0.0
    %159 = vmatpush1.msra.mxu0 0.0
    %160 = vmatprep.subr.mxu0 0.0
    %161 = vmatpush1.msra.mxu0 0.0
    %162 = vmatprep.subr.mxu0 0.0
    %163 = vmatpush1.msra.mxu0 0.0
    %164 = vmatprep.subr.mxu0 0.0
    %165 = vmatpush1.msra.mxu0 0.0
    %166 = vmatprep.subr.mxu0 0.0
    %167 = vmatpush1.msra.mxu0 0.0
    %168 = vmatprep.subr.mxu0 0.0
    %169 = vmatpush1.msra.mxu0 0.0
    %170 = vmatprep.subr.mxu0 0.0
    %171 = vmatpush1.msra.mxu0 0.0
    %172 = vmatprep.subr.mxu0 0.0
    %173 = vmatpush1.msra.mxu0 0.0
    %174 = vmatprep.subr.mxu0 0.0
    %175 = vmatpush1.msra.mxu0 0.0
    %176 = vmatprep.subr.mxu0 0.0
    %177 = vmatpush1.msra.mxu0 0.0
    %178 = vmatprep.subr.mxu0 0.0
    %179 = vmatpush1.msra.mxu0 0.0
    %180 = vmatprep.subr.mxu0 0.0
    %181 = vmatpush1.msra.mxu0 0.0
    %182 = vmatprep.subr.mxu0 0.0
    %183 = vmatpush1.msra.mxu0 0.0
    %184 = vmatprep.subr.mxu0 0.0
    %185 = vmatpush1.msra.mxu0 0.0
    %186 = vmatprep.subr.mxu0 0.0
    %187 = vmatpush1.msra.mxu0 0.0
    %188 = vmatprep.subr.mxu0 0.0
    %189 = vmatpush1.msra.mxu0 0.0
    %190 = vmatprep.subr.mxu0 0.0
    %191 = vmatpush1.msra.mxu0 0.0
    %192 = vmatprep.subr.mxu0 0.0
    %193 = vmatpush1.msra.mxu0 0.0
    %194 = vmatprep.subr.mxu0 0.0
    %195 = vmatpush1.msra.mxu0 0.0
    %196 = vmatprep.subr.mxu0 0.0
    %197 = vmatpush1.msra.mxu0 0.0
    %198 = vmatprep.subr.mxu0 0.0
    %199 = vmatpush1.msra.mxu0 0.0
    %200 = vmatprep.subr.mxu0 0.0
    %201 = vmatpush1.msra.mxu0 0.0
    %202 = vmatprep.subr.mxu0 0.0
    %203 = vmatpush1.msra.mxu0 0.0
    %204 = vmatprep.subr.mxu0 0.0
    %205 = vmatpush1.msra.mxu0 0.0
    %206 = vmatprep.subr.mxu0 0.0
    %207 = vmatpush1.msra.mxu0 0.0
    %208 = vmatprep.mubr.f32.mxu0 0.0
    %209 = vmatmul.mubr.f32.gmra.mrb[0].mxu0 %v97
    %v210 = vpop.f32.mrb[0].mxu0
    %v211 = vadd.f32 0.0, %v210
    %v212 = vpop.f32.mrb[0].mxu0
    %213 = vmatprep.mubr.f32.mxu0 0.0
    %214 = vmatmul.mubr.f32.gmra.mrb[0].mxu0 %v100
    %v215 = vpop.f32.mrb[0].mxu0
    %v216 = vadd.f32 0.0, %v215
    %v217 = vpop.f32.mrb[0].mxu0
    %218 = vmatprep.mubr.f32.mxu0 0.0
    %219 = vmatmul.mubr.f32.gmra.mrb[0].mxu0 %v103
    %v220 = vpop.f32.mrb[0].mxu0
    %v221 = vadd.f32 0.0, %v220
    %v222 = vpop.f32.mrb[0].mxu0
    %223 = vmatprep.mubr.f32.mxu0 0.0
    %224 = vmatmul.mubr.f32.gmra.mrb[0].mxu0 %v106
    %v225 = vpop.f32.mrb[0].mxu0
    %v226 = vadd.f32 0.0, %v225
    %v227 = vpop.f32.mrb[0].mxu0
    %228 = vmatprep.mubr.f32.mxu0 0.0
    %229 = vmatmul.mubr.f32.gmra.mrb[0].mxu0 %v109
    %v230 = vpop.f32.mrb[0].mxu0
    %v231 = vadd.f32 0.0, %v230
    %v232 = vpop.f32.mrb[0].mxu0
    %233 = vmatprep.mubr.f32.mxu0 0.0
    %234 = vmatmul.mubr.f32.gmra.mrb[0].mxu0 %v112
    %v235 = vpop.f32.mrb[0].mxu0
    %v236 = vadd.f32 0.0, %v235
    %v237 = vpop.f32.mrb[0].mxu0
    %238 = vmatprep.mubr.f32.mxu0 0.0
    %239 = vmatmul.mubr.f32.gmra.mrb[0].mxu0 %v115
    %v240 = vpop.f32.mrb[0].mxu0
    %v241 = vadd.f32 0.0, %v240
    %v242 = vpop.f32.mrb[0].mxu0
    %243 = vmatprep.mubr.f32.mxu0 0.0
    %244 = vmatmul.mubr.f32.gmra.mrb[0].mxu0 %v118
    %v245 = vpop.f32.mrb[0].mxu0
    %v246 = vadd.f32 0.0, %v245
    %v247 = vpop.f32.mrb[0].mxu0
    %248 = vmatprep.mubr.f32.mxu0 0.0
    %249 = vmatmul.mubr.f32.gmra.mrb[0].mxu0 %v121
    %v250 = vpop.f32.mrb[0].mxu0
    %v251 = vadd.f32 0.0, %v250
    %v252 = vpop.f32.mrb[0].mxu0
    %253 = vmatprep.mubr.f32.mxu0 0.0
    %254 = vmatmul.mubr.f32.gmra.mrb[0].mxu0 %v124
    %v255 = vpop.f32.mrb[0].mxu0
    %v256 = vadd.f32 0.0, %v255
    %v257 = vpop.f32.mrb[0].mxu0
    %258 = vmatprep.mubr.f32.mxu0 0.0
    %259 = vmatmul.mubr.f32.gmra.mrb[0].mxu0 %v127
    %v260 = vpop.f32.mrb[0].mxu0
    %v261 = vadd.f32 0.0, %v260
    %v262 = vpop.f32.mrb[0].mxu0
    %263 = vmatprep.mubr.f32.mxu0 0.0
    %264 = vmatmul.mubr.f32.gmra.mrb[0].mxu0 %v130
    %v265 = vpop.f32.mrb[0].mxu0
    %v266 = vadd.f32 0.0, %v265
    %v267 = vpop.f32.mrb[0].mxu0
    %268 = vmatprep.mubr.f32.mxu0 0.0
    %269 = vmatmul.mubr.f32.gmra.mrb[0].mxu0 %v133
    %v270 = vpop.f32.mrb[0].mxu0
    %v271 = vadd.f32 0.0, %v270
    %v272 = vpop.f32.mrb[0].mxu0
    %273 = vmatprep.mubr.f32.mxu0 0.0
    %274 = vmatmul.mubr.f32.gmra.mrb[0].mxu0 %v136
    %v275 = vpop.f32.mrb[0].mxu0
    %v276 = vadd.f32 0.0, %v275
    %v277 = vpop.f32.mrb[0].mxu0
    %278 = vmatprep.mubr.f32.mxu0 0.0
    %279 = vmatmul.mubr.f32.gmra.mrb[0].mxu0 %v139
    %v280 = vpop.f32.mrb[0].mxu0
    %v281 = vadd.f32 0.0, %v280
    %v282 = vpop.f32.mrb[0].mxu0
    %283 = vmatprep.mubr.f32.mxu0 0.0
    %284 = vmatmul.mubr.f32.gmra.mrb[0].mxu0 %v142
    %v285 = vpop.f32.mrb[0].mxu0
    %v286 = vadd.f32 0.0, %v285
    %v287 = vpop.f32.mrb[0].mxu0
    %288 = vdwg.mxu0
    %289 = vmatprep.subr.mxu0 0.0
    %290 = vmatpush1.msra.mxu0 %v75
    %291 = vmatprep.subr.mxu0 0.0
    %292 = vmatpush1.msra.mxu0 %v76
    %293 = vmatprep.subr.mxu0 0.0
    %294 = vmatpush1.msra.mxu0 0.0
    %295 = vmatprep.subr.mxu0 0.0
    %296 = vmatpush1.msra.mxu0 0.0
    %297 = vmatprep.subr.mxu0 0.0
    %298 = vmatpush1.msra.mxu0 0.0
    %299 = vmatprep.subr.mxu0 0.0
    %300 = vmatpush1.msra.mxu0 0.0
    %301 = vmatprep.subr.mxu0 0.0
    %302 = vmatpush1.msra.mxu0 0.0
    %303 = vmatprep.subr.mxu0 0.0
    %304 = vmatpush1.msra.mxu0 0.0
    %305 = vmatprep.subr.mxu0 0.0
    %306 = vmatpush1.msra.mxu0 0.0
    %307 = vmatprep.subr.mxu0 0.0
    %308 = vmatpush1.msra.mxu0 0.0
    %309 = vmatprep.subr.mxu0 0.0
    %310 = vmatpush1.msra.mxu0 0.0
    %311 = vmatprep.subr.mxu0 0.0
    %312 = vmatpush1.msra.mxu0 0.0
    %313 = vmatprep.subr.mxu0 0.0
    %314 = vmatpush1.msra.mxu0 0.0
    %315 = vmatprep.subr.mxu0 0.0
    %316 = vmatpush1.msra.mxu0 0.0
    %317 = vmatprep.subr.mxu0 0.0
    %318 = vmatpush1.msra.mxu0 0.0
    %319 = vmatprep.subr.mxu0 0.0
    %320 = vmatpush1.msra.mxu0 0.0
    %321 = vmatprep.subr.mxu0 0.0
    %322 = vmatpush1.msra.mxu0 0.0
    %323 = vmatprep.subr.mxu0 0.0
    %324 = vmatpush1.msra.mxu0 0.0
    %325 = vmatprep.subr.mxu0 0.0
    %326 = vmatpush1.msra.mxu0 0.0
    %327 = vmatprep.subr.mxu0 0.0
    %328 = vmatpush1.msra.mxu0 0.0
    %329 = vmatprep.subr.mxu0 0.0
    %330 = vmatpush1.msra.mxu0 0.0
    %331 = vmatprep.subr.mxu0 0.0
    %332 = vmatpush1.msra.mxu0 0.0
    %333 = vmatprep.subr.mxu0 0.0
    %334 = vmatpush1.msra.mxu0 0.0
    %335 = vmatprep.subr.mxu0 0.0
    %336 = vmatpush1.msra.mxu0 0.0
    %337 = vmatprep.subr.mxu0 0.0
    %338 = vmatpush1.msra.mxu0 0.0
    %339 = vmatprep.subr.mxu0 0.0
    %340 = vmatpush1.msra.mxu0 0.0
    %341 = vmatprep.subr.mxu0 0.0
    %342 = vmatpush1.msra.mxu0 0.0
    %343 = vmatprep.subr.mxu0 0.0
    %344 = vmatpush1.msra.mxu0 0.0
    %345 = vmatprep.subr.mxu0 0.0
    %346 = vmatpush1.msra.mxu0 0.0
    %347 = vmatprep.subr.mxu0 0.0
    %348 = vmatpush1.msra.mxu0 0.0
    %349 = vmatprep.subr.mxu0 0.0
    %350 = vmatpush1.msra.mxu0 0.0
    %351 = vmatprep.subr.mxu0 0.0
    %352 = vmatpush1.msra.mxu0 0.0
    %353 = vmatprep.mubr.f32.mxu0 0.0
    %354 = vmatmul.mubr.f32.gmra.mrb[0].mxu0 %v97
    %v355 = vpop.f32.mrb[0].mxu0
    %v356 = vadd.f32 0.0, %v355
    %v357 = vpop.f32.mrb[0].mxu0
    %358 = vmatprep.mubr.f32.mxu0 0.0
    %359 = vmatmul.mubr.f32.gmra.mrb[0].mxu0 %v100
    %v360 = vpop.f32.mrb[0].mxu0
    %v361 = vadd.f32 0.0, %v360
    %v362 = vpop.f32.mrb[0].mxu0
    %363 = vmatprep.mubr.f32.mxu0 0.0
    %364 = vmatmul.mubr.f32.gmra.mrb[0].mxu0 %v103
    %v365 = vpop.f32.mrb[0].mxu0
    %v366 = vadd.f32 0.0, %v365
    %v367 = vpop.f32.mrb[0].mxu0
    %368 = vmatprep.mubr.f32.mxu0 0.0
    %369 = vmatmul.mubr.f32.gmra.mrb[0].mxu0 %v106
    %v370 = vpop.f32.mrb[0].mxu0
    %v371 = vadd.f32 0.0, %v370
    %v372 = vpop.f32.mrb[0].mxu0
    %373 = vmatprep.mubr.f32.mxu0 0.0
    %374 = vmatmul.mubr.f32.gmra.mrb[0].mxu0 %v109
    %v375 = vpop.f32.mrb[0].mxu0
    %v376 = vadd.f32 0.0, %v375
    %v377 = vpop.f32.mrb[0].mxu0
    %378 = vmatprep.mubr.f32.mxu0 0.0
    %379 = vmatmul.mubr.f32.gmra.mrb[0].mxu0 %v112
    %v380 = vpop.f32.mrb[0].mxu0
    %v381 = vadd.f32 0.0, %v380
    %v382 = vpop.f32.mrb[0].mxu0
    %383 = vmatprep.mubr.f32.mxu0 0.0
    %384 = vmatmul.mubr.f32.gmra.mrb[0].mxu0 %v115
    %v385 = vpop.f32.mrb[0].mxu0
    %v386 = vadd.f32 0.0, %v385
    %v387 = vpop.f32.mrb[0].mxu0
    %388 = vmatprep.mubr.f32.mxu0 0.0
    %389 = vmatmul.mubr.f32.gmra.mrb[0].mxu0 %v118
    %v390 = vpop.f32.mrb[0].mxu0
    %v391 = vadd.f32 0.0, %v390
    %v392 = vpop.f32.mrb[0].mxu0
    %393 = vmatprep.mubr.f32.mxu0 0.0
    %394 = vmatmul.mubr.f32.gmra.mrb[0].mxu0 %v121
    %v395 = vpop.f32.mrb[0].mxu0
    %v396 = vadd.f32 0.0, %v395
    %v397 = vpop.f32.mrb[0].mxu0
    %398 = vmatprep.mubr.f32.mxu0 0.0
    %399 = vmatmul.mubr.f32.gmra.mrb[0].mxu0 %v124
    %v400 = vpop.f32.mrb[0].mxu0
    %v401 = vadd.f32 0.0, %v400
    %v402 = vpop.f32.mrb[0].mxu0
    %403 = vmatprep.mubr.f32.mxu0 0.0
    %404 = vmatmul.mubr.f32.gmra.mrb[0].mxu0 %v127
    %v405 = vpop.f32.mrb[0].mxu0
    %v406 = vadd.f32 0.0, %v405
    %v407 = vpop.f32.mrb[0].mxu0
    %408 = vmatprep.mubr.f32.mxu0 0.0
    %409 = vmatmul.mubr.f32.gmra.mrb[0].mxu0 %v130
    %v410 = vpop.f32.mrb[0].mxu0
    %v411 = vadd.f32 0.0, %v410
    %v412 = vpop.f32.mrb[0].mxu0
    %413 = vmatprep.mubr.f32.mxu0 0.0
    %414 = vmatmul.mubr.f32.gmra.mrb[0].mxu0 %v133
    %v415 = vpop.f32.mrb[0].mxu0
    %v416 = vadd.f32 0.0, %v415
    %v417 = vpop.f32.mrb[0].mxu0
    %418 = vmatprep.mubr.f32.mxu0 0.0
    %419 = vmatmul.mubr.f32.gmra.mrb[0].mxu0 %v136
    %v420 = vpop.f32.mrb[0].mxu0
    %v421 = vadd.f32 0.0, %v420
    %v422 = vpop.f32.mrb[0].mxu0
    %423 = vmatprep.mubr.f32.mxu0 0.0
    %424 = vmatmul.mubr.f32.gmra.mrb[0].mxu0 %v139
    %v425 = vpop.f32.mrb[0].mxu0
    %v426 = vadd.f32 0.0, %v425
    %v427 = vpop.f32.mrb[0].mxu0
    %428 = vmatprep.mubr.f32.mxu0 0.0
    %429 = vmatmul.mubr.f32.gmra.mrb[0].mxu0 %v142
    %v430 = vpop.f32.mrb[0].mxu0
    %v431 = vadd.f32 0.0, %v430
    %v432 = vpop.f32.mrb[0].mxu0
    %433 = vdwg.mxu0
    %434 = vxpose.xlu0.b32.start [1/16] %v211, 128
    %435 = vxpose.xlu0.b32.cont [2/16] %v216, 128
    %436 = vxpose.xlu0.b32.cont [3/16] 0.0, 128
    %437 = vxpose.xlu0.b32.cont [4/16] 0.0, 128
    %438 = vxpose.xlu0.b32.cont [5/16] 0.0, 128
    %439 = vxpose.xlu0.b32.cont [6/16] 0.0, 128
    %440 = vxpose.xlu0.b32.cont [7/16] 0.0, 128
    %441 = vxpose.xlu0.b32.cont [8/16] 0.0, 128
    %442 = vxpose.xlu0.b32.cont [9/16] 0.0, 128
    %443 = vxpose.xlu0.b32.cont [10/16] 0.0, 128
    %444 = vxpose.xlu0.b32.cont [11/16] 0.0, 128
    %445 = vxpose.xlu0.b32.cont [12/16] 0.0, 128
    %446 = vxpose.xlu0.b32.cont [13/16] 0.0, 128
    %447 = vxpose.xlu0.b32.cont [14/16] 0.0, 128
    %448 = vxpose.xlu0.b32.cont [15/16] 0.0, 128
    %449 = vxpose.xlu0.b32.end [16/16] 0.0, 128
    %v450 = vpop.trf.xlu0
    %v451 = vpop.trf.xlu0
    %v452 = vpop.trf.xlu0
    %v453 = vpop.trf.xlu0
    %v454 = vpop.trf.xlu0
    %v455 = vpop.trf.xlu0
    %v456 = vpop.trf.xlu0
    %v457 = vpop.trf.xlu0
    %v458 = vpop.trf.xlu0
    %v459 = vpop.trf.xlu0
    %v460 = vpop.trf.xlu0
    %v461 = vpop.trf.xlu0
    %v462 = vpop.trf.xlu0
    %v463 = vpop.trf.xlu0
    %v464 = vpop.trf.xlu0
    %v465 = vpop.trf.xlu0
    %466 = vxpose.xlu0.b32.start [1/16] %v221, 128
    %467 = vxpose.xlu0.b32.cont [2/16] %v226, 128
    %468 = vxpose.xlu0.b32.cont [3/16] 0.0, 128
    %469 = vxpose.xlu0.b32.cont [4/16] 0.0, 128
    %470 = vxpose.xlu0.b32.cont [5/16] 0.0, 128
    %471 = vxpose.xlu0.b32.cont [6/16] 0.0, 128
    %472 = vxpose.xlu0.b32.cont [7/16] 0.0, 128
    %473 = vxpose.xlu0.b32.cont [8/16] 0.0, 128
    %474 = vxpose.xlu0.b32.cont [9/16] 0.0, 128
    %475 = vxpose.xlu0.b32.cont [10/16] 0.0, 128
    %476 = vxpose.xlu0.b32.cont [11/16] 0.0, 128
    %477 = vxpose.xlu0.b32.cont [12/16] 0.0, 128
    %478 = vxpose.xlu0.b32.cont [13/16] 0.0, 128
    %479 = vxpose.xlu0.b32.cont [14/16] 0.0, 128
    %480 = vxpose.xlu0.b32.cont [15/16] 0.0, 128
    %481 = vxpose.xlu0.b32.end [16/16] 0.0, 128
    %v482 = vpop.trf.xlu0
    %v483 = vpop.trf.xlu0
    %v484 = vpop.trf.xlu0
    %v485 = vpop.trf.xlu0
    %v486 = vpop.trf.xlu0
    %v487 = vpop.trf.xlu0
    %v488 = vpop.trf.xlu0
    %v489 = vpop.trf.xlu0
    %v490 = vpop.trf.xlu0
    %v491 = vpop.trf.xlu0
    %v492 = vpop.trf.xlu0
    %v493 = vpop.trf.xlu0
    %v494 = vpop.trf.xlu0
    %v495 = vpop.trf.xlu0
    %v496 = vpop.trf.xlu0
    %v497 = vpop.trf.xlu0
    %498 = vxpose.xlu0.b32.start [1/16] %v231, 128
    %499 = vxpose.xlu0.b32.cont [2/16] %v236, 128
    %500 = vxpose.xlu0.b32.cont [3/16] 0.0, 128
    %501 = vxpose.xlu0.b32.cont [4/16] 0.0, 128
    %502 = vxpose.xlu0.b32.cont [5/16] 0.0, 128
    %503 = vxpose.xlu0.b32.cont [6/16] 0.0, 128
    %504 = vxpose.xlu0.b32.cont [7/16] 0.0, 128
    %505 = vxpose.xlu0.b32.cont [8/16] 0.0, 128
    %506 = vxpose.xlu0.b32.cont [9/16] 0.0, 128
    %507 = vxpose.xlu0.b32.cont [10/16] 0.0, 128
    %508 = vxpose.xlu0.b32.cont [11/16] 0.0, 128
    %509 = vxpose.xlu0.b32.cont [12/16] 0.0, 128
    %510 = vxpose.xlu0.b32.cont [13/16] 0.0, 128
    %511 = vxpose.xlu0.b32.cont [14/16] 0.0, 128
    %512 = vxpose.xlu0.b32.cont [15/16] 0.0, 128
    %513 = vxpose.xlu0.b32.end [16/16] 0.0, 128
    %v514 = vpop.trf.xlu0
    %v515 = vpop.trf.xlu0
    %v516 = vpop.trf.xlu0
    %v517 = vpop.trf.xlu0
    %v518 = vpop.trf.xlu0
    %v519 = vpop.trf.xlu0
    %v520 = vpop.trf.xlu0
    %v521 = vpop.trf.xlu0
    %v522 = vpop.trf.xlu0
    %v523 = vpop.trf.xlu0
    %v524 = vpop.trf.xlu0
    %v525 = vpop.trf.xlu0
    %v526 = vpop.trf.xlu0
    %v527 = vpop.trf.xlu0
    %v528 = vpop.trf.xlu0
    %v529 = vpop.trf.xlu0
    %530 = vxpose.xlu0.b32.start [1/16] %v241, 128
    %531 = vxpose.xlu0.b32.cont [2/16] %v246, 128
    %532 = vxpose.xlu0.b32.cont [3/16] 0.0, 128
    %533 = vxpose.xlu0.b32.cont [4/16] 0.0, 128
    %534 = vxpose.xlu0.b32.cont [5/16] 0.0, 128
    %535 = vxpose.xlu0.b32.cont [6/16] 0.0, 128
    %536 = vxpose.xlu0.b32.cont [7/16] 0.0, 128
    %537 = vxpose.xlu0.b32.cont [8/16] 0.0, 128
    %538 = vxpose.xlu0.b32.cont [9/16] 0.0, 128
    %539 = vxpose.xlu0.b32.cont [10/16] 0.0, 128
    %540 = vxpose.xlu0.b32.cont [11/16] 0.0, 128
    %541 = vxpose.xlu0.b32.cont [12/16] 0.0, 128
    %542 = vxpose.xlu0.b32.cont [13/16] 0.0, 128
    %543 = vxpose.xlu0.b32.cont [14/16] 0.0, 128
    %544 = vxpose.xlu0.b32.cont [15/16] 0.0, 128
    %545 = vxpose.xlu0.b32.end [16/16] 0.0, 128
    %v546 = vpop.trf.xlu0
    %v547 = vpop.trf.xlu0
    %v548 = vpop.trf.xlu0
    %v549 = vpop.trf.xlu0
    %v550 = vpop.trf.xlu0
    %v551 = vpop.trf.xlu0
    %v552 = vpop.trf.xlu0
    %v553 = vpop.trf.xlu0
    %v554 = vpop.trf.xlu0
    %v555 = vpop.trf.xlu0
    %v556 = vpop.trf.xlu0
    %v557 = vpop.trf.xlu0
    %v558 = vpop.trf.xlu0
    %v559 = vpop.trf.xlu0
    %v560 = vpop.trf.xlu0
    %v561 = vpop.trf.xlu0
    %562 = vxpose.xlu0.b32.start [1/16] %v251, 128
    %563 = vxpose.xlu0.b32.cont [2/16] %v256, 128
    %564 = vxpose.xlu0.b32.cont [3/16] 0.0, 128
    %565 = vxpose.xlu0.b32.cont [4/16] 0.0, 128
    %566 = vxpose.xlu0.b32.cont [5/16] 0.0, 128
    %567 = vxpose.xlu0.b32.cont [6/16] 0.0, 128
    %568 = vxpose.xlu0.b32.cont [7/16] 0.0, 128
    %569 = vxpose.xlu0.b32.cont [8/16] 0.0, 128
    %570 = vxpose.xlu0.b32.cont [9/16] 0.0, 128
    %571 = vxpose.xlu0.b32.cont [10/16] 0.0, 128
    %572 = vxpose.xlu0.b32.cont [11/16] 0.0, 128
    %573 = vxpose.xlu0.b32.cont [12/16] 0.0, 128
    %574 = vxpose.xlu0.b32.cont [13/16] 0.0, 128
    %575 = vxpose.xlu0.b32.cont [14/16] 0.0, 128
    %576 = vxpose.xlu0.b32.cont [15/16] 0.0, 128
    %577 = vxpose.xlu0.b32.end [16/16] 0.0, 128
    %v578 = vpop.trf.xlu0
    %v579 = vpop.trf.xlu0
    %v580 = vpop.trf.xlu0
    %v581 = vpop.trf.xlu0
    %v582 = vpop.trf.xlu0
    %v583 = vpop.trf.xlu0
    %v584 = vpop.trf.xlu0
    %v585 = vpop.trf.xlu0
    %v586 = vpop.trf.xlu0
    %v587 = vpop.trf.xlu0
    %v588 = vpop.trf.xlu0
    %v589 = vpop.trf.xlu0
    %v590 = vpop.trf.xlu0
    %v591 = vpop.trf.xlu0
    %v592 = vpop.trf.xlu0
    %v593 = vpop.trf.xlu0
    %594 = vxpose.xlu0.b32.start [1/16] %v261, 128
    %595 = vxpose.xlu0.b32.cont [2/16] %v266, 128
    %596 = vxpose.xlu0.b32.cont [3/16] 0.0, 128
    %597 = vxpose.xlu0.b32.cont [4/16] 0.0, 128
    %598 = vxpose.xlu0.b32.cont [5/16] 0.0, 128
    %599 = vxpose.xlu0.b32.cont [6/16] 0.0, 128
    %600 = vxpose.xlu0.b32.cont [7/16] 0.0, 128
    %601 = vxpose.xlu0.b32.cont [8/16] 0.0, 128
    %602 = vxpose.xlu0.b32.cont [9/16] 0.0, 128
    %603 = vxpose.xlu0.b32.cont [10/16] 0.0, 128
    %604 = vxpose.xlu0.b32.cont [11/16] 0.0, 128
    %605 = vxpose.xlu0.b32.cont [12/16] 0.0, 128
    %606 = vxpose.xlu0.b32.cont [13/16] 0.0, 128
    %607 = vxpose.xlu0.b32.cont [14/16] 0.0, 128
    %608 = vxpose.xlu0.b32.cont [15/16] 0.0, 128
    %609 = vxpose.xlu0.b32.end [16/16] 0.0, 128
    %v610 = vpop.trf.xlu0
    %v611 = vpop.trf.xlu0
    %v612 = vpop.trf.xlu0
    %v613 = vpop.trf.xlu0
    %v614 = vpop.trf.xlu0
    %v615 = vpop.trf.xlu0
    %v616 = vpop.trf.xlu0
    %v617 = vpop.trf.xlu0
    %v618 = vpop.trf.xlu0
    %v619 = vpop.trf.xlu0
    %v620 = vpop.trf.xlu0
    %v621 = vpop.trf.xlu0
    %v622 = vpop.trf.xlu0
    %v623 = vpop.trf.xlu0
    %v624 = vpop.trf.xlu0
    %v625 = vpop.trf.xlu0
    %626 = vxpose.xlu0.b32.start [1/16] %v271, 128
    %627 = vxpose.xlu0.b32.cont [2/16] %v276, 128
    %628 = vxpose.xlu0.b32.cont [3/16] 0.0, 128
    %629 = vxpose.xlu0.b32.cont [4/16] 0.0, 128
    %630 = vxpose.xlu0.b32.cont [5/16] 0.0, 128
    %631 = vxpose.xlu0.b32.cont [6/16] 0.0, 128
    %632 = vxpose.xlu0.b32.cont [7/16] 0.0, 128
    %633 = vxpose.xlu0.b32.cont [8/16] 0.0, 128
    %634 = vxpose.xlu0.b32.cont [9/16] 0.0, 128
    %635 = vxpose.xlu0.b32.cont [10/16] 0.0, 128
    %636 = vxpose.xlu0.b32.cont [11/16] 0.0, 128
    %637 = vxpose.xlu0.b32.cont [12/16] 0.0, 128
    %638 = vxpose.xlu0.b32.cont [13/16] 0.0, 128
    %639 = vxpose.xlu0.b32.cont [14/16] 0.0, 128
    %640 = vxpose.xlu0.b32.cont [15/16] 0.0, 128
    %641 = vxpose.xlu0.b32.end [16/16] 0.0, 128
    %v642 = vpop.trf.xlu0
    %v643 = vpop.trf.xlu0
    %v644 = vpop.trf.xlu0
    %v645 = vpop.trf.xlu0
    %v646 = vpop.trf.xlu0
    %v647 = vpop.trf.xlu0
    %v648 = vpop.trf.xlu0
    %v649 = vpop.trf.xlu0
    %v650 = vpop.trf.xlu0
    %v651 = vpop.trf.xlu0
    %v652 = vpop.trf.xlu0
    %v653 = vpop.trf.xlu0
    %v654 = vpop.trf.xlu0
    %v655 = vpop.trf.xlu0
    %v656 = vpop.trf.xlu0
    %v657 = vpop.trf.xlu0
    %658 = vxpose.xlu0.b32.start [1/16] %v281, 128
    %659 = vxpose.xlu0.b32.cont [2/16] %v286, 128
    %660 = vxpose.xlu0.b32.cont [3/16] 0.0, 128
    %661 = vxpose.xlu0.b32.cont [4/16] 0.0, 128
    %662 = vxpose.xlu0.b32.cont [5/16] 0.0, 128
    %663 = vxpose.xlu0.b32.cont [6/16] 0.0, 128
    %664 = vxpose.xlu0.b32.cont [7/16] 0.0, 128
    %665 = vxpose.xlu0.b32.cont [8/16] 0.0, 128
    %666 = vxpose.xlu0.b32.cont [9/16] 0.0, 128
    %667 = vxpose.xlu0.b32.cont [10/16] 0.0, 128
    %668 = vxpose.xlu0.b32.cont [11/16] 0.0, 128
    %669 = vxpose.xlu0.b32.cont [12/16] 0.0, 128
    %670 = vxpose.xlu0.b32.cont [13/16] 0.0, 128
    %671 = vxpose.xlu0.b32.cont [14/16] 0.0, 128
    %672 = vxpose.xlu0.b32.cont [15/16] 0.0, 128
    %673 = vxpose.xlu0.b32.end [16/16] 0.0, 128
    %v674 = vpop.trf.xlu0
    %v675 = vpop.trf.xlu0
    %v676 = vpop.trf.xlu0
    %v677 = vpop.trf.xlu0
    %v678 = vpop.trf.xlu0
    %v679 = vpop.trf.xlu0
    %v680 = vpop.trf.xlu0
    %v681 = vpop.trf.xlu0
    %v682 = vpop.trf.xlu0
    %v683 = vpop.trf.xlu0
    %v684 = vpop.trf.xlu0
    %v685 = vpop.trf.xlu0
    %v686 = vpop.trf.xlu0
    %v687 = vpop.trf.xlu0
    %v688 = vpop.trf.xlu0
    %v689 = vpop.trf.xlu0
    %690 = vxpose.xlu0.b32.start [1/16] %v356, 128
    %691 = vxpose.xlu0.b32.cont [2/16] %v361, 128
    %692 = vxpose.xlu0.b32.cont [3/16] 0.0, 128
    %693 = vxpose.xlu0.b32.cont [4/16] 0.0, 128
    %694 = vxpose.xlu0.b32.cont [5/16] 0.0, 128
    %695 = vxpose.xlu0.b32.cont [6/16] 0.0, 128
    %696 = vxpose.xlu0.b32.cont [7/16] 0.0, 128
    %697 = vxpose.xlu0.b32.cont [8/16] 0.0, 128
    %698 = vxpose.xlu0.b32.cont [9/16] 0.0, 128
    %699 = vxpose.xlu0.b32.cont [10/16] 0.0, 128
    %700 = vxpose.xlu0.b32.cont [11/16] 0.0, 128
    %701 = vxpose.xlu0.b32.cont [12/16] 0.0, 128
    %702 = vxpose.xlu0.b32.cont [13/16] 0.0, 128
    %703 = vxpose.xlu0.b32.cont [14/16] 0.0, 128
    %704 = vxpose.xlu0.b32.cont [15/16] 0.0, 128
    %705 = vxpose.xlu0.b32.end [16/16] 0.0, 128
    %v706 = vpop.trf.xlu0
    %v707 = vpop.trf.xlu0
    %v708 = vpop.trf.xlu0
    %v709 = vpop.trf.xlu0
    %v710 = vpop.trf.xlu0
    %v711 = vpop.trf.xlu0
    %v712 = vpop.trf.xlu0
    %v713 = vpop.trf.xlu0
    %v714 = vpop.trf.xlu0
    %v715 = vpop.trf.xlu0
    %v716 = vpop.trf.xlu0
    %v717 = vpop.trf.xlu0
    %v718 = vpop.trf.xlu0
    %v719 = vpop.trf.xlu0
    %v720 = vpop.trf.xlu0
    %v721 = vpop.trf.xlu0
    %722 = vxpose.xlu0.b32.start [1/16] %v366, 128
    %723 = vxpose.xlu0.b32.cont [2/16] %v371, 128
    %724 = vxpose.xlu0.b32.cont [3/16] 0.0, 128
    %725 = vxpose.xlu0.b32.cont [4/16] 0.0, 128
    %726 = vxpose.xlu0.b32.cont [5/16] 0.0, 128
    %727 = vxpose.xlu0.b32.cont [6/16] 0.0, 128
    %728 = vxpose.xlu0.b32.cont [7/16] 0.0, 128
    %729 = vxpose.xlu0.b32.cont [8/16] 0.0, 128
    %730 = vxpose.xlu0.b32.cont [9/16] 0.0, 128
    %731 = vxpose.xlu0.b32.cont [10/16] 0.0, 128
    %732 = vxpose.xlu0.b32.cont [11/16] 0.0, 128
    %733 = vxpose.xlu0.b32.cont [12/16] 0.0, 128
    %734 = vxpose.xlu0.b32.cont [13/16] 0.0, 128
    %735 = vxpose.xlu0.b32.cont [14/16] 0.0, 128
    %736 = vxpose.xlu0.b32.cont [15/16] 0.0, 128
    %737 = vxpose.xlu0.b32.end [16/16] 0.0, 128
    %v738 = vpop.trf.xlu0
    %v739 = vpop.trf.xlu0
    %v740 = vpop.trf.xlu0
    %v741 = vpop.trf.xlu0
    %v742 = vpop.trf.xlu0
    %v743 = vpop.trf.xlu0
    %v744 = vpop.trf.xlu0
    %v745 = vpop.trf.xlu0
    %v746 = vpop.trf.xlu0
    %v747 = vpop.trf.xlu0
    %v748 = vpop.trf.xlu0
    %v749 = vpop.trf.xlu0
    %v750 = vpop.trf.xlu0
    %v751 = vpop.trf.xlu0
    %v752 = vpop.trf.xlu0
    %v753 = vpop.trf.xlu0
    %754 = vxpose.xlu0.b32.start [1/16] %v376, 128
    %755 = vxpose.xlu0.b32.cont [2/16] %v381, 128
    %756 = vxpose.xlu0.b32.cont [3/16] 0.0, 128
    %757 = vxpose.xlu0.b32.cont [4/16] 0.0, 128
    %758 = vxpose.xlu0.b32.cont [5/16] 0.0, 128
    %759 = vxpose.xlu0.b32.cont [6/16] 0.0, 128
    %760 = vxpose.xlu0.b32.cont [7/16] 0.0, 128
    %761 = vxpose.xlu0.b32.cont [8/16] 0.0, 128
    %762 = vxpose.xlu0.b32.cont [9/16] 0.0, 128
    %763 = vxpose.xlu0.b32.cont [10/16] 0.0, 128
    %764 = vxpose.xlu0.b32.cont [11/16] 0.0, 128
    %765 = vxpose.xlu0.b32.cont [12/16] 0.0, 128
    %766 = vxpose.xlu0.b32.cont [13/16] 0.0, 128
    %767 = vxpose.xlu0.b32.cont [14/16] 0.0, 128
    %768 = vxpose.xlu0.b32.cont [15/16] 0.0, 128
    %769 = vxpose.xlu0.b32.end [16/16] 0.0, 128
    %v770 = vpop.trf.xlu0
    %v771 = vpop.trf.xlu0
    %v772 = vpop.trf.xlu0
    %v773 = vpop.trf.xlu0
    %v774 = vpop.trf.xlu0
    %v775 = vpop.trf.xlu0
    %v776 = vpop.trf.xlu0
    %v777 = vpop.trf.xlu0
    %v778 = vpop.trf.xlu0
    %v779 = vpop.trf.xlu0
    %v780 = vpop.trf.xlu0
    %v781 = vpop.trf.xlu0
    %v782 = vpop.trf.xlu0
    %v783 = vpop.trf.xlu0
    %v784 = vpop.trf.xlu0
    %v785 = vpop.trf.xlu0
    %786 = vxpose.xlu0.b32.start [1/16] %v386, 128
    %787 = vxpose.xlu0.b32.cont [2/16] %v391, 128
    %788 = vxpose.xlu0.b32.cont [3/16] 0.0, 128
    %789 = vxpose.xlu0.b32.cont [4/16] 0.0, 128
    %790 = vxpose.xlu0.b32.cont [5/16] 0.0, 128
    %791 = vxpose.xlu0.b32.cont [6/16] 0.0, 128
    %792 = vxpose.xlu0.b32.cont [7/16] 0.0, 128
    %793 = vxpose.xlu0.b32.cont [8/16] 0.0, 128
    %794 = vxpose.xlu0.b32.cont [9/16] 0.0, 128
    %795 = vxpose.xlu0.b32.cont [10/16] 0.0, 128
    %796 = vxpose.xlu0.b32.cont [11/16] 0.0, 128
    %797 = vxpose.xlu0.b32.cont [12/16] 0.0, 128
    %798 = vxpose.xlu0.b32.cont [13/16] 0.0, 128
    %799 = vxpose.xlu0.b32.cont [14/16] 0.0, 128
    %800 = vxpose.xlu0.b32.cont [15/16] 0.0, 128
    %801 = vxpose.xlu0.b32.end [16/16] 0.0, 128
    %v802 = vpop.trf.xlu0
    %v803 = vpop.trf.xlu0
    %v804 = vpop.trf.xlu0
    %v805 = vpop.trf.xlu0
    %v806 = vpop.trf.xlu0
    %v807 = vpop.trf.xlu0
    %v808 = vpop.trf.xlu0
    %v809 = vpop.trf.xlu0
    %v810 = vpop.trf.xlu0
    %v811 = vpop.trf.xlu0
    %v812 = vpop.trf.xlu0
    %v813 = vpop.trf.xlu0
    %v814 = vpop.trf.xlu0
    %v815 = vpop.trf.xlu0
    %v816 = vpop.trf.xlu0
    %v817 = vpop.trf.xlu0
    %818 = vxpose.xlu0.b32.start [1/16] %v396, 128
    %819 = vxpose.xlu0.b32.cont [2/16] %v401, 128
    %820 = vxpose.xlu0.b32.cont [3/16] 0.0, 128
    %821 = vxpose.xlu0.b32.cont [4/16] 0.0, 128
    %822 = vxpose.xlu0.b32.cont [5/16] 0.0, 128
    %823 = vxpose.xlu0.b32.cont [6/16] 0.0, 128
    %824 = vxpose.xlu0.b32.cont [7/16] 0.0, 128
    %825 = vxpose.xlu0.b32.cont [8/16] 0.0, 128
    %826 = vxpose.xlu0.b32.cont [9/16] 0.0, 128
    %827 = vxpose.xlu0.b32.cont [10/16] 0.0, 128
    %828 = vxpose.xlu0.b32.cont [11/16] 0.0, 128
    %829 = vxpose.xlu0.b32.cont [12/16] 0.0, 128
    %830 = vxpose.xlu0.b32.cont [13/16] 0.0, 128
    %831 = vxpose.xlu0.b32.cont [14/16] 0.0, 128
    %832 = vxpose.xlu0.b32.cont [15/16] 0.0, 128
    %833 = vxpose.xlu0.b32.end [16/16] 0.0, 128
    %v834 = vpop.trf.xlu0
    %v835 = vpop.trf.xlu0
    %v836 = vpop.trf.xlu0
    %v837 = vpop.trf.xlu0
    %v838 = vpop.trf.xlu0
    %v839 = vpop.trf.xlu0
    %v840 = vpop.trf.xlu0
    %v841 = vpop.trf.xlu0
    %v842 = vpop.trf.xlu0
    %v843 = vpop.trf.xlu0
    %v844 = vpop.trf.xlu0
    %v845 = vpop.trf.xlu0
    %v846 = vpop.trf.xlu0
    %v847 = vpop.trf.xlu0
    %v848 = vpop.trf.xlu0
    %v849 = vpop.trf.xlu0
    %850 = vxpose.xlu0.b32.start [1/16] %v406, 128
    %851 = vxpose.xlu0.b32.cont [2/16] %v411, 128
    %852 = vxpose.xlu0.b32.cont [3/16] 0.0, 128
    %853 = vxpose.xlu0.b32.cont [4/16] 0.0, 128
    %854 = vxpose.xlu0.b32.cont [5/16] 0.0, 128
    %855 = vxpose.xlu0.b32.cont [6/16] 0.0, 128
    %856 = vxpose.xlu0.b32.cont [7/16] 0.0, 128
    %857 = vxpose.xlu0.b32.cont [8/16] 0.0, 128
    %858 = vxpose.xlu0.b32.cont [9/16] 0.0, 128
    %859 = vxpose.xlu0.b32.cont [10/16] 0.0, 128
    %860 = vxpose.xlu0.b32.cont [11/16] 0.0, 128
    %861 = vxpose.xlu0.b32.cont [12/16] 0.0, 128
    %862 = vxpose.xlu0.b32.cont [13/16] 0.0, 128
    %863 = vxpose.xlu0.b32.cont [14/16] 0.0, 128
    %864 = vxpose.xlu0.b32.cont [15/16] 0.0, 128
    %865 = vxpose.xlu0.b32.end [16/16] 0.0, 128
    %v866 = vpop.trf.xlu0
    %v867 = vpop.trf.xlu0
    %v868 = vpop.trf.xlu0
    %v869 = vpop.trf.xlu0
    %v870 = vpop.trf.xlu0
    %v871 = vpop.trf.xlu0
    %v872 = vpop.trf.xlu0
    %v873 = vpop.trf.xlu0
    %v874 = vpop.trf.xlu0
    %v875 = vpop.trf.xlu0
    %v876 = vpop.trf.xlu0
    %v877 = vpop.trf.xlu0
    %v878 = vpop.trf.xlu0
    %v879 = vpop.trf.xlu0
    %v880 = vpop.trf.xlu0
    %v881 = vpop.trf.xlu0
    %882 = vxpose.xlu0.b32.start [1/16] %v416, 128
    %883 = vxpose.xlu0.b32.cont [2/16] %v421, 128
    %884 = vxpose.xlu0.b32.cont [3/16] 0.0, 128
    %885 = vxpose.xlu0.b32.cont [4/16] 0.0, 128
    %886 = vxpose.xlu0.b32.cont [5/16] 0.0, 128
    %887 = vxpose.xlu0.b32.cont [6/16] 0.0, 128
    %888 = vxpose.xlu0.b32.cont [7/16] 0.0, 128
    %889 = vxpose.xlu0.b32.cont [8/16] 0.0, 128
    %890 = vxpose.xlu0.b32.cont [9/16] 0.0, 128
    %891 = vxpose.xlu0.b32.cont [10/16] 0.0, 128
    %892 = vxpose.xlu0.b32.cont [11/16] 0.0, 128
    %893 = vxpose.xlu0.b32.cont [12/16] 0.0, 128
    %894 = vxpose.xlu0.b32.cont [13/16] 0.0, 128
    %895 = vxpose.xlu0.b32.cont [14/16] 0.0, 128
    %896 = vxpose.xlu0.b32.cont [15/16] 0.0, 128
    %897 = vxpose.xlu0.b32.end [16/16] 0.0, 128
    %v898 = vpop.trf.xlu0
    %v899 = vpop.trf.xlu0
    %v900 = vpop.trf.xlu0
    %v901 = vpop.trf.xlu0
    %v902 = vpop.trf.xlu0
    %v903 = vpop.trf.xlu0
    %v904 = vpop.trf.xlu0
    %v905 = vpop.trf.xlu0
    %v906 = vpop.trf.xlu0
    %v907 = vpop.trf.xlu0
    %v908 = vpop.trf.xlu0
    %v909 = vpop.trf.xlu0
    %v910 = vpop.trf.xlu0
    %v911 = vpop.trf.xlu0
    %v912 = vpop.trf.xlu0
    %v913 = vpop.trf.xlu0
    %914 = vxpose.xlu0.b32.start [1/16] %v426, 128
    %915 = vxpose.xlu0.b32.cont [2/16] %v431, 128
    %916 = vxpose.xlu0.b32.cont [3/16] 0.0, 128
    %917 = vxpose.xlu0.b32.cont [4/16] 0.0, 128
    %918 = vxpose.xlu0.b32.cont [5/16] 0.0, 128
    %919 = vxpose.xlu0.b32.cont [6/16] 0.0, 128
    %920 = vxpose.xlu0.b32.cont [7/16] 0.0, 128
    %921 = vxpose.xlu0.b32.cont [8/16] 0.0, 128
    %922 = vxpose.xlu0.b32.cont [9/16] 0.0, 128
    %923 = vxpose.xlu0.b32.cont [10/16] 0.0, 128
    %924 = vxpose.xlu0.b32.cont [11/16] 0.0, 128
    %925 = vxpose.xlu0.b32.cont [12/16] 0.0, 128
    %926 = vxpose.xlu0.b32.cont [13/16] 0.0, 128
    %927 = vxpose.xlu0.b32.cont [14/16] 0.0, 128
    %928 = vxpose.xlu0.b32.cont [15/16] 0.0, 128
    %929 = vxpose.xlu0.b32.end [16/16] 0.0, 128
    %v930 = vpop.trf.xlu0
    %v931 = vpop.trf.xlu0
    %v932 = vpop.trf.xlu0
    %v933 = vpop.trf.xlu0
    %v934 = vpop.trf.xlu0
    %v935 = vpop.trf.xlu0
    %v936 = vpop.trf.xlu0
    %v937 = vpop.trf.xlu0
    %v938 = vpop.trf.xlu0
    %v939 = vpop.trf.xlu0
    %v940 = vpop.trf.xlu0
    %v941 = vpop.trf.xlu0
    %v942 = vpop.trf.xlu0
    %v943 = vpop.trf.xlu0
    %v944 = vpop.trf.xlu0
    %v945 = vpop.trf.xlu0
    %v947 = vsel %vm95, %v450, 0
    %v950 = vsel %vm95, %v451, 0
    %v953 = vsel %vm95, %v482, 0
    %v956 = vsel %vm95, %v483, 0
    %v959 = vsel %vm95, %v514, 0
    %v962 = vsel %vm95, %v515, 0
    %v965 = vsel %vm95, %v546, 0
    %v968 = vsel %vm95, %v547, 0
    %v971 = vsel %vm95, %v578, 0
    %v974 = vsel %vm95, %v579, 0
    %v977 = vsel %vm95, %v610, 0
    %v980 = vsel %vm95, %v611, 0
    %v983 = vsel %vm95, %v642, 0
    %v986 = vsel %vm95, %v643, 0
    %v989 = vsel %vm95, %v674, 0
    %v992 = vsel %vm95, %v675, 0
    %994 = vmatprep.subr.mxu0 0.0
    %995 = vmatpush1.msra.mxu0 %v73
    %996 = vmatprep.subr.mxu0 0.0
    %997 = vmatpush1.msra.mxu0 %v74
    %998 = vmatprep.subr.mxu0 0.0
    %999 = vmatpush1.msra.mxu0 0.0
    %1000 = vmatprep.subr.mxu0 0.0
    %1001 = vmatpush1.msra.mxu0 0.0
    %1002 = vmatprep.subr.mxu0 0.0
    %1003 = vmatpush1.msra.mxu0 0.0
    %1004 = vmatprep.subr.mxu0 0.0
    %1005 = vmatpush1.msra.mxu0 0.0
    %1006 = vmatprep.subr.mxu0 0.0
    %1007 = vmatpush1.msra.mxu0 0.0
    %1008 = vmatprep.subr.mxu0 0.0
    %1009 = vmatpush1.msra.mxu0 0.0
    %1010 = vmatprep.subr.mxu0 0.0
    %1011 = vmatpush1.msra.mxu0 0.0
    %1012 = vmatprep.subr.mxu0 0.0
    %1013 = vmatpush1.msra.mxu0 0.0
    %1014 = vmatprep.subr.mxu0 0.0
    %1015 = vmatpush1.msra.mxu0 0.0
    %1016 = vmatprep.subr.mxu0 0.0
    %1017 = vmatpush1.msra.mxu0 0.0
    %1018 = vmatprep.subr.mxu0 0.0
    %1019 = vmatpush1.msra.mxu0 0.0
    %1020 = vmatprep.subr.mxu0 0.0
    %1021 = vmatpush1.msra.mxu0 0.0
    %1022 = vmatprep.subr.mxu0 0.0
    %1023 = vmatpush1.msra.mxu0 0.0
    %1024 = vmatprep.subr.mxu0 0.0
    %1025 = vmatpush1.msra.mxu0 0.0
    %1026 = vmatprep.subr.mxu0 0.0
    %1027 = vmatpush1.msra.mxu0 0.0
    %1028 = vmatprep.subr.mxu0 0.0
    %1029 = vmatpush1.msra.mxu0 0.0
    %1030 = vmatprep.subr.mxu0 0.0
    %1031 = vmatpush1.msra.mxu0 0.0
    %1032 = vmatprep.subr.mxu0 0.0
    %1033 = vmatpush1.msra.mxu0 0.0
    %1034 = vmatprep.subr.mxu0 0.0
    %1035 = vmatpush1.msra.mxu0 0.0
    %1036 = vmatprep.subr.mxu0 0.0
    %1037 = vmatpush1.msra.mxu0 0.0
    %1038 = vmatprep.subr.mxu0 0.0
    %1039 = vmatpush1.msra.mxu0 0.0
    %1040 = vmatprep.subr.mxu0 0.0
    %1041 = vmatpush1.msra.mxu0 0.0
    %1042 = vmatprep.subr.mxu0 0.0
    %1043 = vmatpush1.msra.mxu0 0.0
    %1044 = vmatprep.subr.mxu0 0.0
    %1045 = vmatpush1.msra.mxu0 0.0
    %1046 = vmatprep.subr.mxu0 0.0
    %1047 = vmatpush1.msra.mxu0 0.0
    %1048 = vmatprep.subr.mxu0 0.0
    %1049 = vmatpush1.msra.mxu0 0.0
    %1050 = vmatprep.subr.mxu0 0.0
    %1051 = vmatpush1.msra.mxu0 0.0
    %1052 = vmatprep.subr.mxu0 0.0
    %1053 = vmatpush1.msra.mxu0 0.0
    %1054 = vmatprep.subr.mxu0 0.0
    %1055 = vmatpush1.msra.mxu0 0.0
    %1056 = vmatprep.subr.mxu0 0.0
    %1057 = vmatpush1.msra.mxu0 0.0
    %1058 = vmatprep.mubr.f32.mxu0 0.0
    %1059 = vmatmul.mubr.f32.gmra.mrb[0].mxu0 %v947
    %v1060 = vpop.f32.mrb[0].mxu0
    %v1061 = vadd.f32 0.0, %v1060
    %v1062 = vpop.f32.mrb[0].mxu0
    %1063 = vmatprep.mubr.f32.mxu0 0.0
    %1064 = vmatmul.mubr.f32.gmra.mrb[0].mxu0 %v950
    %v1065 = vpop.f32.mrb[0].mxu0
    %v1066 = vadd.f32 0.0, %v1065
    %v1067 = vpop.f32.mrb[0].mxu0
    %1068 = vmatprep.mubr.f32.mxu0 0.0
    %1069 = vmatmul.mubr.f32.gmra.mrb[0].mxu0 %v953
    %v1070 = vpop.f32.mrb[0].mxu0
    %v1071 = vadd.f32 0.0, %v1070
    %v1072 = vpop.f32.mrb[0].mxu0
    %1073 = vmatprep.mubr.f32.mxu0 0.0
    %1074 = vmatmul.mubr.f32.gmra.mrb[0].mxu0 %v956
    %v1075 = vpop.f32.mrb[0].mxu0
    %v1076 = vadd.f32 0.0, %v1075
    %v1077 = vpop.f32.mrb[0].mxu0
    %1078 = vmatprep.mubr.f32.mxu0 0.0
    %1079 = vmatmul.mubr.f32.gmra.mrb[0].mxu0 %v959
    %v1080 = vpop.f32.mrb[0].mxu0
    %v1081 = vadd.f32 0.0, %v1080
    %v1082 = vpop.f32.mrb[0].mxu0
    %1083 = vmatprep.mubr.f32.mxu0 0.0
    %1084 = vmatmul.mubr.f32.gmra.mrb[0].mxu0 %v962
    %v1085 = vpop.f32.mrb[0].mxu0
    %v1086 = vadd.f32 0.0, %v1085
    %v1087 = vpop.f32.mrb[0].mxu0
    %1088 = vmatprep.mubr.f32.mxu0 0.0
    %1089 = vmatmul.mubr.f32.gmra.mrb[0].mxu0 %v965
    %v1090 = vpop.f32.mrb[0].mxu0
    %v1091 = vadd.f32 0.0, %v1090
    %v1092 = vpop.f32.mrb[0].mxu0
    %1093 = vmatprep.mubr.f32.mxu0 0.0
    %1094 = vmatmul.mubr.f32.gmra.mrb[0].mxu0 %v968
    %v1095 = vpop.f32.mrb[0].mxu0
    %v1096 = vadd.f32 0.0, %v1095
    %v1097 = vpop.f32.mrb[0].mxu0
    %1098 = vmatprep.mubr.f32.mxu0 0.0
    %1099 = vmatmul.mubr.f32.gmra.mrb[0].mxu0 %v971
    %v1100 = vpop.f32.mrb[0].mxu0
    %v1101 = vadd.f32 0.0, %v1100
    %v1102 = vpop.f32.mrb[0].mxu0
    %1103 = vmatprep.mubr.f32.mxu0 0.0
    %1104 = vmatmul.mubr.f32.gmra.mrb[0].mxu0 %v974
    %v1105 = vpop.f32.mrb[0].mxu0
    %v1106 = vadd.f32 0.0, %v1105
    %v1107 = vpop.f32.mrb[0].mxu0
    %1108 = vmatprep.mubr.f32.mxu0 0.0
    %1109 = vmatmul.mubr.f32.gmra.mrb[0].mxu0 %v977
    %v1110 = vpop.f32.mrb[0].mxu0
    %v1111 = vadd.f32 0.0, %v1110
    %v1112 = vpop.f32.mrb[0].mxu0
    %1113 = vmatprep.mubr.f32.mxu0 0.0
    %1114 = vmatmul.mubr.f32.gmra.mrb[0].mxu0 %v980
    %v1115 = vpop.f32.mrb[0].mxu0
    %v1116 = vadd.f32 0.0, %v1115
    %v1117 = vpop.f32.mrb[0].mxu0
    %1118 = vmatprep.mubr.f32.mxu0 0.0
    %1119 = vmatmul.mubr.f32.gmra.mrb[0].mxu0 %v983
    %v1120 = vpop.f32.mrb[0].mxu0
    %v1121 = vadd.f32 0.0, %v1120
    %v1122 = vpop.f32.mrb[0].mxu0
    %1123 = vmatprep.mubr.f32.mxu0 0.0
    %1124 = vmatmul.mubr.f32.gmra.mrb[0].mxu0 %v986
    %v1125 = vpop.f32.mrb[0].mxu0
    %v1126 = vadd.f32 0.0, %v1125
    %v1127 = vpop.f32.mrb[0].mxu0
    %1128 = vmatprep.mubr.f32.mxu0 0.0
    %1129 = vmatmul.mubr.f32.gmra.mrb[0].mxu0 %v989
    %v1130 = vpop.f32.mrb[0].mxu0
    %v1131 = vadd.f32 0.0, %v1130
    %v1132 = vpop.f32.mrb[0].mxu0
    %1133 = vmatprep.mubr.f32.mxu0 0.0
    %1134 = vmatmul.mubr.f32.gmra.mrb[0].mxu0 %v992
    %v1135 = vpop.f32.mrb[0].mxu0
    %v1136 = vadd.f32 0.0, %v1135
    %v1137 = vpop.f32.mrb[0].mxu0
    %1138 = vdwg.mxu0
    %v1140 = vsel %vm95, %v706, 0
    %v1143 = vsel %vm95, %v707, 0
    %v1146 = vsel %vm95, %v738, 0
    %v1149 = vsel %vm95, %v739, 0
    %v1152 = vsel %vm95, %v770, 0
    %v1155 = vsel %vm95, %v771, 0
    %v1158 = vsel %vm95, %v802, 0
    %v1161 = vsel %vm95, %v803, 0
    %v1164 = vsel %vm95, %v834, 0
    %v1167 = vsel %vm95, %v835, 0
    %v1170 = vsel %vm95, %v866, 0
    %v1173 = vsel %vm95, %v867, 0
    %v1176 = vsel %vm95, %v898, 0
    %v1179 = vsel %vm95, %v899, 0
    %v1182 = vsel %vm95, %v930, 0
    %v1185 = vsel %vm95, %v931, 0
    %1187 = vmatprep.subr.mxu0 0.0
    %1188 = vmatpush1.msra.mxu0 %v75
    %1189 = vmatprep.subr.mxu0 0.0
    %1190 = vmatpush1.msra.mxu0 %v76
    %1191 = vmatprep.subr.mxu0 0.0
    %1192 = vmatpush1.msra.mxu0 0.0
    %1193 = vmatprep.subr.mxu0 0.0
    %1194 = vmatpush1.msra.mxu0 0.0
    %1195 = vmatprep.subr.mxu0 0.0
    %1196 = vmatpush1.msra.mxu0 0.0
    %1197 = vmatprep.subr.mxu0 0.0
    %1198 = vmatpush1.msra.mxu0 0.0
    %1199 = vmatprep.subr.mxu0 0.0
    %1200 = vmatpush1.msra.mxu0 0.0
    %1201 = vmatprep.subr.mxu0 0.0
    %1202 = vmatpush1.msra.mxu0 0.0
    %1203 = vmatprep.subr.mxu0 0.0
    %1204 = vmatpush1.msra.mxu0 0.0
    %1205 = vmatprep.subr.mxu0 0.0
    %1206 = vmatpush1.msra.mxu0 0.0
    %1207 = vmatprep.subr.mxu0 0.0
    %1208 = vmatpush1.msra.mxu0 0.0
    %1209 = vmatprep.subr.mxu0 0.0
    %1210 = vmatpush1.msra.mxu0 0.0
    %1211 = vmatprep.subr.mxu0 0.0
    %1212 = vmatpush1.msra.mxu0 0.0
    %1213 = vmatprep.subr.mxu0 0.0
    %1214 = vmatpush1.msra.mxu0 0.0
    %1215 = vmatprep.subr.mxu0 0.0
    %1216 = vmatpush1.msra.mxu0 0.0
    %1217 = vmatprep.subr.mxu0 0.0
    %1218 = vmatpush1.msra.mxu0 0.0
    %1219 = vmatprep.subr.mxu0 0.0
    %1220 = vmatpush1.msra.mxu0 0.0
    %1221 = vmatprep.subr.mxu0 0.0
    %1222 = vmatpush1.msra.mxu0 0.0
    %1223 = vmatprep.subr.mxu0 0.0
    %1224 = vmatpush1.msra.mxu0 0.0
    %1225 = vmatprep.subr.mxu0 0.0
    %1226 = vmatpush1.msra.mxu0 0.0
    %1227 = vmatprep.subr.mxu0 0.0
    %1228 = vmatpush1.msra.mxu0 0.0
    %1229 = vmatprep.subr.mxu0 0.0
    %1230 = vmatpush1.msra.mxu0 0.0
    %1231 = vmatprep.subr.mxu0 0.0
    %1232 = vmatpush1.msra.mxu0 0.0
    %1233 = vmatprep.subr.mxu0 0.0
    %1234 = vmatpush1.msra.mxu0 0.0
    %1235 = vmatprep.subr.mxu0 0.0
    %1236 = vmatpush1.msra.mxu0 0.0
    %1237 = vmatprep.subr.mxu0 0.0
    %1238 = vmatpush1.msra.mxu0 0.0
    %1239 = vmatprep.subr.mxu0 0.0
    %1240 = vmatpush1.msra.mxu0 0.0
    %1241 = vmatprep.subr.mxu0 0.0
    %1242 = vmatpush1.msra.mxu0 0.0
    %1243 = vmatprep.subr.mxu0 0.0
    %1244 = vmatpush1.msra.mxu0 0.0
    %1245 = vmatprep.subr.mxu0 0.0
    %1246 = vmatpush1.msra.mxu0 0.0
    %1247 = vmatprep.subr.mxu0 0.0
    %1248 = vmatpush1.msra.mxu0 0.0
    %1249 = vmatprep.subr.mxu0 0.0
    %1250 = vmatpush1.msra.mxu0 0.0
    %1251 = vmatprep.mubr.f32.mxu0 0.0
    %1252 = vmatmul.mubr.f32.gmra.mrb[0].mxu0 %v1140
    %v1253 = vpop.f32.mrb[0].mxu0
    %v1254 = vadd.f32 0.0, %v1253
    %v1255 = vpop.f32.mrb[0].mxu0
    %1256 = vmatprep.mubr.f32.mxu0 0.0
    %1257 = vmatmul.mubr.f32.gmra.mrb[0].mxu0 %v1143
    %v1258 = vpop.f32.mrb[0].mxu0
    %v1259 = vadd.f32 0.0, %v1258
    %v1260 = vpop.f32.mrb[0].mxu0
    %1261 = vmatprep.mubr.f32.mxu0 0.0
    %1262 = vmatmul.mubr.f32.gmra.mrb[0].mxu0 %v1146
    %v1263 = vpop.f32.mrb[0].mxu0
    %v1264 = vadd.f32 0.0, %v1263
    %v1265 = vpop.f32.mrb[0].mxu0
    %1266 = vmatprep.mubr.f32.mxu0 0.0
    %1267 = vmatmul.mubr.f32.gmra.mrb[0].mxu0 %v1149
    %v1268 = vpop.f32.mrb[0].mxu0
    %v1269 = vadd.f32 0.0, %v1268
    %v1270 = vpop.f32.mrb[0].mxu0
    %1271 = vmatprep.mubr.f32.mxu0 0.0
    %1272 = vmatmul.mubr.f32.gmra.mrb[0].mxu0 %v1152
    %v1273 = vpop.f32.mrb[0].mxu0
    %v1274 = vadd.f32 0.0, %v1273
    %v1275 = vpop.f32.mrb[0].mxu0
    %1276 = vmatprep.mubr.f32.mxu0 0.0
    %1277 = vmatmul.mubr.f32.gmra.mrb[0].mxu0 %v1155
    %v1278 = vpop.f32.mrb[0].mxu0
    %v1279 = vadd.f32 0.0, %v1278
    %v1280 = vpop.f32.mrb[0].mxu0
    %1281 = vmatprep.mubr.f32.mxu0 0.0
    %1282 = vmatmul.mubr.f32.gmra.mrb[0].mxu0 %v1158
    %v1283 = vpop.f32.mrb[0].mxu0
    %v1284 = vadd.f32 0.0, %v1283
    %v1285 = vpop.f32.mrb[0].mxu0
    %1286 = vmatprep.mubr.f32.mxu0 0.0
    %1287 = vmatmul.mubr.f32.gmra.mrb[0].mxu0 %v1161
    %v1288 = vpop.f32.mrb[0].mxu0
    %v1289 = vadd.f32 0.0, %v1288
    %v1290 = vpop.f32.mrb[0].mxu0
    %1291 = vmatprep.mubr.f32.mxu0 0.0
    %1292 = vmatmul.mubr.f32.gmra.mrb[0].mxu0 %v1164
    %v1293 = vpop.f32.mrb[0].mxu0
    %v1294 = vadd.f32 0.0, %v1293
    %v1295 = vpop.f32.mrb[0].mxu0
    %1296 = vmatprep.mubr.f32.mxu0 0.0
    %1297 = vmatmul.mubr.f32.gmra.mrb[0].mxu0 %v1167
    %v1298 = vpop.f32.mrb[0].mxu0
    %v1299 = vadd.f32 0.0, %v1298
    %v1300 = vpop.f32.mrb[0].mxu0
    %1301 = vmatprep.mubr.f32.mxu0 0.0
    %1302 = vmatmul.mubr.f32.gmra.mrb[0].mxu0 %v1170
    %v1303 = vpop.f32.mrb[0].mxu0
    %v1304 = vadd.f32 0.0, %v1303
    %v1305 = vpop.f32.mrb[0].mxu0
    %1306 = vmatprep.mubr.f32.mxu0 0.0
    %1307 = vmatmul.mubr.f32.gmra.mrb[0].mxu0 %v1173
    %v1308 = vpop.f32.mrb[0].mxu0
    %v1309 = vadd.f32 0.0, %v1308
    %v1310 = vpop.f32.mrb[0].mxu0
    %1311 = vmatprep.mubr.f32.mxu0 0.0
    %1312 = vmatmul.mubr.f32.gmra.mrb[0].mxu0 %v1176
    %v1313 = vpop.f32.mrb[0].mxu0
    %v1314 = vadd.f32 0.0, %v1313
    %v1315 = vpop.f32.mrb[0].mxu0
    %1316 = vmatprep.mubr.f32.mxu0 0.0
    %1317 = vmatmul.mubr.f32.gmra.mrb[0].mxu0 %v1179
    %v1318 = vpop.f32.mrb[0].mxu0
    %v1319 = vadd.f32 0.0, %v1318
    %v1320 = vpop.f32.mrb[0].mxu0
    %1321 = vmatprep.mubr.f32.mxu0 0.0
    %1322 = vmatmul.mubr.f32.gmra.mrb[0].mxu0 %v1182
    %v1323 = vpop.f32.mrb[0].mxu0
    %v1324 = vadd.f32 0.0, %v1323
    %v1325 = vpop.f32.mrb[0].mxu0
    %1326 = vmatprep.mubr.f32.mxu0 0.0
    %1327 = vmatmul.mubr.f32.gmra.mrb[0].mxu0 %v1185
    %v1328 = vpop.f32.mrb[0].mxu0
    %v1329 = vadd.f32 0.0, %v1328
    %v1330 = vpop.f32.mrb[0].mxu0
    %1331 = vdwg.mxu0
    %v1332 = vadd.f32 %v450, %v706
    %v1333 = vadd.f32 %v451, %v707
    %v1334 = vadd.f32 %v482, %v738
    %v1335 = vadd.f32 %v483, %v739
    %v1336 = vadd.f32 %v514, %v770
    %v1337 = vadd.f32 %v515, %v771
    %v1338 = vadd.f32 %v546, %v802
    %v1339 = vadd.f32 %v547, %v803
    %v1340 = vadd.f32 %v578, %v834
    %v1341 = vadd.f32 %v579, %v835
    %v1342 = vadd.f32 %v610, %v866
    %v1343 = vadd.f32 %v611, %v867
    %v1344 = vadd.f32 %v642, %v898
    %v1345 = vadd.f32 %v643, %v899
    %v1346 = vadd.f32 %v674, %v930
    %v1347 = vadd.f32 %v675, %v931
    %v1349 = vsel %vm95, %v1332, 0
    %v1352 = vsel %vm95, %v1333, 0
    %v1355 = vsel %vm95, %v1334, 0
    %v1358 = vsel %vm95, %v1335, 0
    %v1361 = vsel %vm95, %v1336, 0
    %v1364 = vsel %vm95, %v1337, 0
    %v1367 = vsel %vm95, %v1338, 0
    %v1370 = vsel %vm95, %v1339, 0
    %v1373 = vsel %vm95, %v1340, 0
    %v1376 = vsel %vm95, %v1341, 0
    %v1379 = vsel %vm95, %v1342, 0
    %v1382 = vsel %vm95, %v1343, 0
    %v1385 = vsel %vm95, %v1344, 0
    %v1388 = vsel %vm95, %v1345, 0
    %v1391 = vsel %vm95, %v1346, 0
    %v1394 = vsel %vm95, %v1347, 0
    %1396 = vmatprep.subr.mxu0 0.0
    %1397 = vmatpush1.msra.mxu0 %v77
    %1398 = vmatprep.subr.mxu0 0.0
    %1399 = vmatpush1.msra.mxu0 %v78
    %1400 = vmatprep.subr.mxu0 0.0
    %1401 = vmatpush1.msra.mxu0 0.0
    %1402 = vmatprep.subr.mxu0 0.0
    %1403 = vmatpush1.msra.mxu0 0.0
    %1404 = vmatprep.subr.mxu0 0.0
    %1405 = vmatpush1.msra.mxu0 0.0
    %1406 = vmatprep.subr.mxu0 0.0
    %1407 = vmatpush1.msra.mxu0 0.0
    %1408 = vmatprep.subr.mxu0 0.0
    %1409 = vmatpush1.msra.mxu0 0.0
    %1410 = vmatprep.subr.mxu0 0.0
    %1411 = vmatpush1.msra.mxu0 0.0
    %1412 = vmatprep.subr.mxu0 0.0
    %1413 = vmatpush1.msra.mxu0 0.0
    %1414 = vmatprep.subr.mxu0 0.0
    %1415 = vmatpush1.msra.mxu0 0.0
    %1416 = vmatprep.subr.mxu0 0.0
    %1417 = vmatpush1.msra.mxu0 0.0
    %1418 = vmatprep.subr.mxu0 0.0
    %1419 = vmatpush1.msra.mxu0 0.0
    %1420 = vmatprep.subr.mxu0 0.0
    %1421 = vmatpush1.msra.mxu0 0.0
    %1422 = vmatprep.subr.mxu0 0.0
    %1423 = vmatpush1.msra.mxu0 0.0
    %1424 = vmatprep.subr.mxu0 0.0
    %1425 = vmatpush1.msra.mxu0 0.0
    %1426 = vmatprep.subr.mxu0 0.0
    %1427 = vmatpush1.msra.mxu0 0.0
    %1428 = vmatprep.subr.mxu0 0.0
    %1429 = vmatpush1.msra.mxu0 0.0
    %1430 = vmatprep.subr.mxu0 0.0
    %1431 = vmatpush1.msra.mxu0 0.0
    %1432 = vmatprep.subr.mxu0 0.0
    %1433 = vmatpush1.msra.mxu0 0.0
    %1434 = vmatprep.subr.mxu0 0.0
    %1435 = vmatpush1.msra.mxu0 0.0
    %1436 = vmatprep.subr.mxu0 0.0
    %1437 = vmatpush1.msra.mxu0 0.0
    %1438 = vmatprep.subr.mxu0 0.0
    %1439 = vmatpush1.msra.mxu0 0.0
    %1440 = vmatprep.subr.mxu0 0.0
    %1441 = vmatpush1.msra.mxu0 0.0
    %1442 = vmatprep.subr.mxu0 0.0
    %1443 = vmatpush1.msra.mxu0 0.0
    %1444 = vmatprep.subr.mxu0 0.0
    %1445 = vmatpush1.msra.mxu0 0.0
    %1446 = vmatprep.subr.mxu0 0.0
    %1447 = vmatpush1.msra.mxu0 0.0
    %1448 = vmatprep.subr.mxu0 0.0
    %1449 = vmatpush1.msra.mxu0 0.0
    %1450 = vmatprep.subr.mxu0 0.0
    %1451 = vmatpush1.msra.mxu0 0.0
    %1452 = vmatprep.subr.mxu0 0.0
    %1453 = vmatpush1.msra.mxu0 0.0
    %1454 = vmatprep.subr.mxu0 0.0
    %1455 = vmatpush1.msra.mxu0 0.0
    %1456 = vmatprep.subr.mxu0 0.0
    %1457 = vmatpush1.msra.mxu0 0.0
    %1458 = vmatprep.subr.mxu0 0.0
    %1459 = vmatpush1.msra.mxu0 0.0
    %1460 = vmatprep.mubr.f32.mxu0 0.0
    %1461 = vmatmul.mubr.f32.gmra.mrb[0].mxu0 %v1349
    %v1462 = vpop.f32.mrb[0].mxu0
    %v1463 = vadd.f32 0.0, %v1462
    %v1464 = vpop.f32.mrb[0].mxu0
    %1465 = vmatprep.mubr.f32.mxu0 0.0
    %1466 = vmatmul.mubr.f32.gmra.mrb[0].mxu0 %v1352
    %v1467 = vpop.f32.mrb[0].mxu0
    %v1468 = vadd.f32 0.0, %v1467
    %v1469 = vpop.f32.mrb[0].mxu0
    %1470 = vmatprep.mubr.f32.mxu0 0.0
    %1471 = vmatmul.mubr.f32.gmra.mrb[0].mxu0 %v1355
    %v1472 = vpop.f32.mrb[0].mxu0
    %v1473 = vadd.f32 0.0, %v1472
    %v1474 = vpop.f32.mrb[0].mxu0
    %1475 = vmatprep.mubr.f32.mxu0 0.0
    %1476 = vmatmul.mubr.f32.gmra.mrb[0].mxu0 %v1358
    %v1477 = vpop.f32.mrb[0].mxu0
    %v1478 = vadd.f32 0.0, %v1477
    %v1479 = vpop.f32.mrb[0].mxu0
    %1480 = vmatprep.mubr.f32.mxu0 0.0
    %1481 = vmatmul.mubr.f32.gmra.mrb[0].mxu0 %v1361
    %v1482 = vpop.f32.mrb[0].mxu0
    %v1483 = vadd.f32 0.0, %v1482
    %v1484 = vpop.f32.mrb[0].mxu0
    %1485 = vmatprep.mubr.f32.mxu0 0.0
    %1486 = vmatmul.mubr.f32.gmra.mrb[0].mxu0 %v1364
    %v1487 = vpop.f32.mrb[0].mxu0
    %v1488 = vadd.f32 0.0, %v1487
    %v1489 = vpop.f32.mrb[0].mxu0
    %1490 = vmatprep.mubr.f32.mxu0 0.0
    %1491 = vmatmul.mubr.f32.gmra.mrb[0].mxu0 %v1367
    %v1492 = vpop.f32.mrb[0].mxu0
    %v1493 = vadd.f32 0.0, %v1492
    %v1494 = vpop.f32.mrb[0].mxu0
    %1495 = vmatprep.mubr.f32.mxu0 0.0
    %1496 = vmatmul.mubr.f32.gmra.mrb[0].mxu0 %v1370
    %v1497 = vpop.f32.mrb[0].mxu0
    %v1498 = vadd.f32 0.0, %v1497
    %v1499 = vpop.f32.mrb[0].mxu0
    %1500 = vmatprep.mubr.f32.mxu0 0.0
    %1501 = vmatmul.mubr.f32.gmra.mrb[0].mxu0 %v1373
    %v1502 = vpop.f32.mrb[0].mxu0
    %v1503 = vadd.f32 0.0, %v1502
    %v1504 = vpop.f32.mrb[0].mxu0
    %1505 = vmatprep.mubr.f32.mxu0 0.0
    %1506 = vmatmul.mubr.f32.gmra.mrb[0].mxu0 %v1376
    %v1507 = vpop.f32.mrb[0].mxu0
    %v1508 = vadd.f32 0.0, %v1507
    %v1509 = vpop.f32.mrb[0].mxu0
    %1510 = vmatprep.mubr.f32.mxu0 0.0
    %1511 = vmatmul.mubr.f32.gmra.mrb[0].mxu0 %v1379
    %v1512 = vpop.f32.mrb[0].mxu0
    %v1513 = vadd.f32 0.0, %v1512
    %v1514 = vpop.f32.mrb[0].mxu0
    %1515 = vmatprep.mubr.f32.mxu0 0.0
    %1516 = vmatmul.mubr.f32.gmra.mrb[0].mxu0 %v1382
    %v1517 = vpop.f32.mrb[0].mxu0
    %v1518 = vadd.f32 0.0, %v1517
    %v1519 = vpop.f32.mrb[0].mxu0
    %1520 = vmatprep.mubr.f32.mxu0 0.0
    %1521 = vmatmul.mubr.f32.gmra.mrb[0].mxu0 %v1385
    %v1522 = vpop.f32.mrb[0].mxu0
    %v1523 = vadd.f32 0.0, %v1522
    %v1524 = vpop.f32.mrb[0].mxu0
    %1525 = vmatprep.mubr.f32.mxu0 0.0
    %1526 = vmatmul.mubr.f32.gmra.mrb[0].mxu0 %v1388
    %v1527 = vpop.f32.mrb[0].mxu0
    %v1528 = vadd.f32 0.0, %v1527
    %v1529 = vpop.f32.mrb[0].mxu0
    %1530 = vmatprep.mubr.f32.mxu0 0.0
    %1531 = vmatmul.mubr.f32.gmra.mrb[0].mxu0 %v1391
    %v1532 = vpop.f32.mrb[0].mxu0
    %v1533 = vadd.f32 0.0, %v1532
    %v1534 = vpop.f32.mrb[0].mxu0
    %1535 = vmatprep.mubr.f32.mxu0 0.0
    %1536 = vmatmul.mubr.f32.gmra.mrb[0].mxu0 %v1394
    %v1537 = vpop.f32.mrb[0].mxu0
    %v1538 = vadd.f32 0.0, %v1537
    %v1539 = vpop.f32.mrb[0].mxu0
    %1540 = vdwg.mxu0
    %v1541 = vsub.f32 %v1061, %v1254
    %v1542 = vsub.f32 %v1066, %v1259
    %v1543 = vsub.f32 %v1071, %v1264
    %v1544 = vsub.f32 %v1076, %v1269
    %v1545 = vsub.f32 %v1081, %v1274
    %v1546 = vsub.f32 %v1086, %v1279
    %v1547 = vsub.f32 %v1091, %v1284
    %v1548 = vsub.f32 %v1096, %v1289
    %v1549 = vsub.f32 %v1101, %v1294
    %v1550 = vsub.f32 %v1106, %v1299
    %v1551 = vsub.f32 %v1111, %v1304
    %v1552 = vsub.f32 %v1116, %v1309
    %v1553 = vsub.f32 %v1121, %v1314
    %v1554 = vsub.f32 %v1126, %v1319
    %v1555 = vsub.f32 %v1131, %v1324
    %v1556 = vsub.f32 %v1136, %v1329
    %v1557 = vsub.f32 %v1463, %v1061
    %v1558 = vsub.f32 %v1468, %v1066
    %v1559 = vsub.f32 %v1473, %v1071
    %v1560 = vsub.f32 %v1478, %v1076
    %v1561 = vsub.f32 %v1483, %v1081
    %v1562 = vsub.f32 %v1488, %v1086
    %v1563 = vsub.f32 %v1493, %v1091
    %v1564 = vsub.f32 %v1498, %v1096
    %v1565 = vsub.f32 %v1503, %v1101
    %v1566 = vsub.f32 %v1508, %v1106
    %v1567 = vsub.f32 %v1513, %v1111
    %v1568 = vsub.f32 %v1518, %v1116
    %v1569 = vsub.f32 %v1523, %v1121
    %v1570 = vsub.f32 %v1528, %v1126
    %v1571 = vsub.f32 %v1533, %v1131
    %v1572 = vsub.f32 %v1538, %v1136
    %v1573 = vsub.f32 %v1557, %v1254
    %v1574 = vsub.f32 %v1558, %v1259
    %v1575 = vsub.f32 %v1559, %v1264
    %v1576 = vsub.f32 %v1560, %v1269
    %v1577 = vsub.f32 %v1561, %v1274
    %v1578 = vsub.f32 %v1562, %v1279
    %v1579 = vsub.f32 %v1563, %v1284
    %v1580 = vsub.f32 %v1564, %v1289
    %v1581 = vsub.f32 %v1565, %v1294
    %v1582 = vsub.f32 %v1566, %v1299
    %v1583 = vsub.f32 %v1567, %v1304
    %v1584 = vsub.f32 %v1568, %v1309
    %v1585 = vsub.f32 %v1569, %v1314
    %v1586 = vsub.f32 %v1570, %v1319
    %v1587 = vsub.f32 %v1571, %v1324
    %v1588 = vsub.f32 %v1572, %v1329
    %v1589 = vmul.f32 %v1541, %v1541
    %v1590 = vmul.f32 %v1542, %v1542
    %v1591 = vmul.f32 %v1543, %v1543
    %v1592 = vmul.f32 %v1544, %v1544
    %v1593 = vmul.f32 %v1545, %v1545
    %v1594 = vmul.f32 %v1546, %v1546
    %v1595 = vmul.f32 %v1547, %v1547
    %v1596 = vmul.f32 %v1548, %v1548
    %v1597 = vmul.f32 %v1549, %v1549
    %v1598 = vmul.f32 %v1550, %v1550
    %v1599 = vmul.f32 %v1551, %v1551
    %v1600 = vmul.f32 %v1552, %v1552
    %v1601 = vmul.f32 %v1553, %v1553
    %v1602 = vmul.f32 %v1554, %v1554
    %v1603 = vmul.f32 %v1555, %v1555
    %v1604 = vmul.f32 %v1556, %v1556
    %v1605 = vmul.f32 %v1573, %v1573
    %v1606 = vmul.f32 %v1574, %v1574
    %v1607 = vmul.f32 %v1575, %v1575
    %v1608 = vmul.f32 %v1576, %v1576
    %v1609 = vmul.f32 %v1577, %v1577
    %v1610 = vmul.f32 %v1578, %v1578
    %v1611 = vmul.f32 %v1579, %v1579
    %v1612 = vmul.f32 %v1580, %v1580
    %v1613 = vmul.f32 %v1581, %v1581
    %v1614 = vmul.f32 %v1582, %v1582
    %v1615 = vmul.f32 %v1583, %v1583
    %v1616 = vmul.f32 %v1584, %v1584
    %v1617 = vmul.f32 %v1585, %v1585
    %v1618 = vmul.f32 %v1586, %v1586
    %v1619 = vmul.f32 %v1587, %v1587
    %v1620 = vmul.f32 %v1588, %v1588
    %v1621 = vadd.f32 %v1589, %v1605
    %v1622 = vadd.f32 %v1590, %v1606
    %v1623 = vadd.f32 %v1591, %v1607
    %v1624 = vadd.f32 %v1592, %v1608
    %v1625 = vadd.f32 %v1593, %v1609
    %v1626 = vadd.f32 %v1594, %v1610
    %v1627 = vadd.f32 %v1595, %v1611
    %v1628 = vadd.f32 %v1596, %v1612
    %v1629 = vadd.f32 %v1597, %v1613
    %v1630 = vadd.f32 %v1598, %v1614
    %v1631 = vadd.f32 %v1599, %v1615
    %v1632 = vadd.f32 %v1600, %v1616
    %v1633 = vadd.f32 %v1601, %v1617
    %v1634 = vadd.f32 %v1602, %v1618
    %v1635 = vadd.f32 %v1603, %v1619
    %v1636 = vadd.f32 %v1604, %v1620
    %v1637 = vld [vmem:[#allocation8] sm:$0xff]
    %v1638 = vld [vmem:[#allocation8 + $0x8] sm:$0xff]
    %v1639 = vld [vmem:[#allocation8 + $0x10] sm:$0xff]
    %v1640 = vld [vmem:[#allocation8 + $0x18] sm:$0xff]
    %v1641 = vld [vmem:[#allocation8 + $0x20] sm:$0xff]
    %v1642 = vld [vmem:[#allocation8 + $0x28] sm:$0xff]
    %v1643 = vld [vmem:[#allocation8 + $0x30] sm:$0xff]
    %v1644 = vld [vmem:[#allocation8 + $0x38] sm:$0xff]
    %v1645 = vld [vmem:[#allocation8 + $0x40] sm:$0xff]
    %v1646 = vld [vmem:[#allocation8 + $0x48] sm:$0xff]
    %v1647 = vld [vmem:[#allocation8 + $0x50] sm:$0xff]
    %v1648 = vld [vmem:[#allocation8 + $0x58] sm:$0xff]
    %v1649 = vld [vmem:[#allocation8 + $0x60] sm:$0xff]
    %v1650 = vld [vmem:[#allocation8 + $0x68] sm:$0xff]
    %v1651 = vld [vmem:[#allocation8 + $0x70] sm:$0xff]
    %v1652 = vld [vmem:[#allocation8 + $0x78] sm:$0xff]
    %v1654 = vsel %vm95, %v1637, 0
    %v1657 = vsel %vm95, %v1638, 0
    %v1660 = vsel %vm95, %v1639, 0
    %v1663 = vsel %vm95, %v1640, 0
    %v1666 = vsel %vm95, %v1641, 0
    %v1669 = vsel %vm95, %v1642, 0
    %v1672 = vsel %vm95, %v1643, 0
    %v1675 = vsel %vm95, %v1644, 0
    %v1678 = vsel %vm95, %v1645, 0
    %v1681 = vsel %vm95, %v1646, 0
    %v1684 = vsel %vm95, %v1647, 0
    %v1687 = vsel %vm95, %v1648, 0
    %v1690 = vsel %vm95, %v1649, 0
    %v1693 = vsel %vm95, %v1650, 0
    %v1696 = vsel %vm95, %v1651, 0
    %v1699 = vsel %vm95, %v1652, 0
    %1701 = vmatprep.subr.mxu0 0.0
    %1702 = vmatpush1.msra.mxu0 %v73
    %1703 = vmatprep.subr.mxu0 0.0
    %1704 = vmatpush1.msra.mxu0 %v74
    %1705 = vmatprep.subr.mxu0 0.0
    %1706 = vmatpush1.msra.mxu0 0.0
    %1707 = vmatprep.subr.mxu0 0.0
    %1708 = vmatpush1.msra.mxu0 0.0
    %1709 = vmatprep.subr.mxu0 0.0
    %1710 = vmatpush1.msra.mxu0 0.0
    %1711 = vmatprep.subr.mxu0 0.0
    %1712 = vmatpush1.msra.mxu0 0.0
    %1713 = vmatprep.subr.mxu0 0.0
    %1714 = vmatpush1.msra.mxu0 0.0
    %1715 = vmatprep.subr.mxu0 0.0
    %1716 = vmatpush1.msra.mxu0 0.0
    %1717 = vmatprep.subr.mxu0 0.0
    %1718 = vmatpush1.msra.mxu0 0.0
    %1719 = vmatprep.subr.mxu0 0.0
    %1720 = vmatpush1.msra.mxu0 0.0
    %1721 = vmatprep.subr.mxu0 0.0
    %1722 = vmatpush1.msra.mxu0 0.0
    %1723 = vmatprep.subr.mxu0 0.0
    %1724 = vmatpush1.msra.mxu0 0.0
    %1725 = vmatprep.subr.mxu0 0.0
    %1726 = vmatpush1.msra.mxu0 0.0
    %1727 = vmatprep.subr.mxu0 0.0
    %1728 = vmatpush1.msra.mxu0 0.0
    %1729 = vmatprep.subr.mxu0 0.0
    %1730 = vmatpush1.msra.mxu0 0.0
    %1731 = vmatprep.subr.mxu0 0.0
    %1732 = vmatpush1.msra.mxu0 0.0
    %1733 = vmatprep.subr.mxu0 0.0
    %1734 = vmatpush1.msra.mxu0 0.0
    %1735 = vmatprep.subr.mxu0 0.0
    %1736 = vmatpush1.msra.mxu0 0.0
    %1737 = vmatprep.subr.mxu0 0.0
    %1738 = vmatpush1.msra.mxu0 0.0
    %1739 = vmatprep.subr.mxu0 0.0
    %1740 = vmatpush1.msra.mxu0 0.0
    %1741 = vmatprep.subr.mxu0 0.0
    %1742 = vmatpush1.msra.mxu0 0.0
    %1743 = vmatprep.subr.mxu0 0.0
    %1744 = vmatpush1.msra.mxu0 0.0
    %1745 = vmatprep.subr.mxu0 0.0
    %1746 = vmatpush1.msra.mxu0 0.0
    %1747 = vmatprep.subr.mxu0 0.0
    %1748 = vmatpush1.msra.mxu0 0.0
    %1749 = vmatprep.subr.mxu0 0.0
    %1750 = vmatpush1.msra.mxu0 0.0
    %1751 = vmatprep.subr.mxu0 0.0
    %1752 = vmatpush1.msra.mxu0 0.0
    %1753 = vmatprep.subr.mxu0 0.0
    %1754 = vmatpush1.msra.mxu0 0.0
    %1755 = vmatprep.subr.mxu0 0.0
    %1756 = vmatpush1.msra.mxu0 0.0
    %1757 = vmatprep.subr.mxu0 0.0
    %1758 = vmatpush1.msra.mxu0 0.0
    %1759 = vmatprep.subr.mxu0 0.0
    %1760 = vmatpush1.msra.mxu0 0.0
    %1761 = vmatprep.subr.mxu0 0.0
    %1762 = vmatpush1.msra.mxu0 0.0
    %1763 = vmatprep.subr.mxu0 0.0
    %1764 = vmatpush1.msra.mxu0 0.0
    %1765 = vmatprep.mubr.f32.mxu0 0.0
    %1766 = vmatmul.mubr.f32.gmra.mrb[0].mxu0 %v1654
    %v1767 = vpop.f32.mrb[0].mxu0
    %v1768 = vadd.f32 0.0, %v1767
    %v1769 = vpop.f32.mrb[0].mxu0
    %1770 = vmatprep.mubr.f32.mxu0 0.0
    %1771 = vmatmul.mubr.f32.gmra.mrb[0].mxu0 %v1657
    %v1772 = vpop.f32.mrb[0].mxu0
    %v1773 = vadd.f32 0.0, %v1772
    %v1774 = vpop.f32.mrb[0].mxu0
    %1775 = vmatprep.mubr.f32.mxu0 0.0
    %1776 = vmatmul.mubr.f32.gmra.mrb[0].mxu0 %v1660
    %v1777 = vpop.f32.mrb[0].mxu0
    %v1778 = vadd.f32 0.0, %v1777
    %v1779 = vpop.f32.mrb[0].mxu0
    %1780 = vmatprep.mubr.f32.mxu0 0.0
    %1781 = vmatmul.mubr.f32.gmra.mrb[0].mxu0 %v1663
    %v1782 = vpop.f32.mrb[0].mxu0
    %v1783 = vadd.f32 0.0, %v1782
    %v1784 = vpop.f32.mrb[0].mxu0
    %1785 = vmatprep.mubr.f32.mxu0 0.0
    %1786 = vmatmul.mubr.f32.gmra.mrb[0].mxu0 %v1666
    %v1787 = vpop.f32.mrb[0].mxu0
    %v1788 = vadd.f32 0.0, %v1787
    %v1789 = vpop.f32.mrb[0].mxu0
    %1790 = vmatprep.mubr.f32.mxu0 0.0
    %1791 = vmatmul.mubr.f32.gmra.mrb[0].mxu0 %v1669
    %v1792 = vpop.f32.mrb[0].mxu0
    %v1793 = vadd.f32 0.0, %v1792
    %v1794 = vpop.f32.mrb[0].mxu0
    %1795 = vmatprep.mubr.f32.mxu0 0.0
    %1796 = vmatmul.mubr.f32.gmra.mrb[0].mxu0 %v1672
    %v1797 = vpop.f32.mrb[0].mxu0
    %v1798 = vadd.f32 0.0, %v1797
    %v1799 = vpop.f32.mrb[0].mxu0
    %1800 = vmatprep.mubr.f32.mxu0 0.0
    %1801 = vmatmul.mubr.f32.gmra.mrb[0].mxu0 %v1675
    %v1802 = vpop.f32.mrb[0].mxu0
    %v1803 = vadd.f32 0.0, %v1802
    %v1804 = vpop.f32.mrb[0].mxu0
    %1805 = vmatprep.mubr.f32.mxu0 0.0
    %1806 = vmatmul.mubr.f32.gmra.mrb[0].mxu0 %v1678
    %v1807 = vpop.f32.mrb[0].mxu0
    %v1808 = vadd.f32 0.0, %v1807
    %v1809 = vpop.f32.mrb[0].mxu0
    %1810 = vmatprep.mubr.f32.mxu0 0.0
    %1811 = vmatmul.mubr.f32.gmra.mrb[0].mxu0 %v1681
    %v1812 = vpop.f32.mrb[0].mxu0
    %v1813 = vadd.f32 0.0, %v1812
    %v1814 = vpop.f32.mrb[0].mxu0
    %1815 = vmatprep.mubr.f32.mxu0 0.0
    %1816 = vmatmul.mubr.f32.gmra.mrb[0].mxu0 %v1684
    %v1817 = vpop.f32.mrb[0].mxu0
    %v1818 = vadd.f32 0.0, %v1817
    %v1819 = vpop.f32.mrb[0].mxu0
    %1820 = vmatprep.mubr.f32.mxu0 0.0
    %1821 = vmatmul.mubr.f32.gmra.mrb[0].mxu0 %v1687
    %v1822 = vpop.f32.mrb[0].mxu0
    %v1823 = vadd.f32 0.0, %v1822
    %v1824 = vpop.f32.mrb[0].mxu0
    %1825 = vmatprep.mubr.f32.mxu0 0.0
    %1826 = vmatmul.mubr.f32.gmra.mrb[0].mxu0 %v1690
    %v1827 = vpop.f32.mrb[0].mxu0
    %v1828 = vadd.f32 0.0, %v1827
    %v1829 = vpop.f32.mrb[0].mxu0
    %1830 = vmatprep.mubr.f32.mxu0 0.0
    %1831 = vmatmul.mubr.f32.gmra.mrb[0].mxu0 %v1693
    %v1832 = vpop.f32.mrb[0].mxu0
    %v1833 = vadd.f32 0.0, %v1832
    %v1834 = vpop.f32.mrb[0].mxu0
    %1835 = vmatprep.mubr.f32.mxu0 0.0
    %1836 = vmatmul.mubr.f32.gmra.mrb[0].mxu0 %v1696
    %v1837 = vpop.f32.mrb[0].mxu0
    %v1838 = vadd.f32 0.0, %v1837
    %v1839 = vpop.f32.mrb[0].mxu0
    %1840 = vmatprep.mubr.f32.mxu0 0.0
    %1841 = vmatmul.mubr.f32.gmra.mrb[0].mxu0 %v1699
    %v1842 = vpop.f32.mrb[0].mxu0
    %v1843 = vadd.f32 0.0, %v1842
    %v1844 = vpop.f32.mrb[0].mxu0
    %1845 = vdwg.mxu0
    %1846 = vmatprep.subr.mxu0 0.0
    %1847 = vmatpush1.msra.mxu0 %v75
    %1848 = vmatprep.subr.mxu0 0.0
    %1849 = vmatpush1.msra.mxu0 %v76
    %1850 = vmatprep.subr.mxu0 0.0
    %1851 = vmatpush1.msra.mxu0 0.0
    %1852 = vmatprep.subr.mxu0 0.0
    %1853 = vmatpush1.msra.mxu0 0.0
    %1854 = vmatprep.subr.mxu0 0.0
    %1855 = vmatpush1.msra.mxu0 0.0
    %1856 = vmatprep.subr.mxu0 0.0
    %1857 = vmatpush1.msra.mxu0 0.0
    %1858 = vmatprep.subr.mxu0 0.0
    %1859 = vmatpush1.msra.mxu0 0.0
    %1860 = vmatprep.subr.mxu0 0.0
    %1861 = vmatpush1.msra.mxu0 0.0
    %1862 = vmatprep.subr.mxu0 0.0
    %1863 = vmatpush1.msra.mxu0 0.0
    %1864 = vmatprep.subr.mxu0 0.0
    %1865 = vmatpush1.msra.mxu0 0.0
    %1866 = vmatprep.subr.mxu0 0.0
    %1867 = vmatpush1.msra.mxu0 0.0
    %1868 = vmatprep.subr.mxu0 0.0
    %1869 = vmatpush1.msra.mxu0 0.0
    %1870 = vmatprep.subr.mxu0 0.0
    %1871 = vmatpush1.msra.mxu0 0.0
    %1872 = vmatprep.subr.mxu0 0.0
    %1873 = vmatpush1.msra.mxu0 0.0
    %1874 = vmatprep.subr.mxu0 0.0
    %1875 = vmatpush1.msra.mxu0 0.0
    %1876 = vmatprep.subr.mxu0 0.0
    %1877 = vmatpush1.msra.mxu0 0.0
    %1878 = vmatprep.subr.mxu0 0.0
    %1879 = vmatpush1.msra.mxu0 0.0
    %1880 = vmatprep.subr.mxu0 0.0
    %1881 = vmatpush1.msra.mxu0 0.0
    %1882 = vmatprep.subr.mxu0 0.0
    %1883 = vmatpush1.msra.mxu0 0.0
    %1884 = vmatprep.subr.mxu0 0.0
    %1885 = vmatpush1.msra.mxu0 0.0
    %1886 = vmatprep.subr.mxu0 0.0
    %1887 = vmatpush1.msra.mxu0 0.0
    %1888 = vmatprep.subr.mxu0 0.0
    %1889 = vmatpush1.msra.mxu0 0.0
    %1890 = vmatprep.subr.mxu0 0.0
    %1891 = vmatpush1.msra.mxu0 0.0
    %1892 = vmatprep.subr.mxu0 0.0
    %1893 = vmatpush1.msra.mxu0 0.0
    %1894 = vmatprep.subr.mxu0 0.0
    %1895 = vmatpush1.msra.mxu0 0.0
    %1896 = vmatprep.subr.mxu0 0.0
    %1897 = vmatpush1.msra.mxu0 0.0
    %1898 = vmatprep.subr.mxu0 0.0
    %1899 = vmatpush1.msra.mxu0 0.0
    %1900 = vmatprep.subr.mxu0 0.0
    %1901 = vmatpush1.msra.mxu0 0.0
    %1902 = vmatprep.subr.mxu0 0.0
    %1903 = vmatpush1.msra.mxu0 0.0
    %1904 = vmatprep.subr.mxu0 0.0
    %1905 = vmatpush1.msra.mxu0 0.0
    %1906 = vmatprep.subr.mxu0 0.0
    %1907 = vmatpush1.msra.mxu0 0.0
    %1908 = vmatprep.subr.mxu0 0.0
    %1909 = vmatpush1.msra.mxu0 0.0
    %1910 = vmatprep.mubr.f32.mxu0 0.0
    %1911 = vmatmul.mubr.f32.gmra.mrb[0].mxu0 %v1654
    %v1912 = vpop.f32.mrb[0].mxu0
    %v1913 = vadd.f32 0.0, %v1912
    %v1914 = vpop.f32.mrb[0].mxu0
    %1915 = vmatprep.mubr.f32.mxu0 0.0
    %1916 = vmatmul.mubr.f32.gmra.mrb[0].mxu0 %v1657
    %v1917 = vpop.f32.mrb[0].mxu0
    %v1918 = vadd.f32 0.0, %v1917
    %v1919 = vpop.f32.mrb[0].mxu0
    %1920 = vmatprep.mubr.f32.mxu0 0.0
    %1921 = vmatmul.mubr.f32.gmra.mrb[0].mxu0 %v1660
    %v1922 = vpop.f32.mrb[0].mxu0
    %v1923 = vadd.f32 0.0, %v1922
    %v1924 = vpop.f32.mrb[0].mxu0
    %1925 = vmatprep.mubr.f32.mxu0 0.0
    %1926 = vmatmul.mubr.f32.gmra.mrb[0].mxu0 %v1663
    %v1927 = vpop.f32.mrb[0].mxu0
    %v1928 = vadd.f32 0.0, %v1927
    %v1929 = vpop.f32.mrb[0].mxu0
    %1930 = vmatprep.mubr.f32.mxu0 0.0
    %1931 = vmatmul.mubr.f32.gmra.mrb[0].mxu0 %v1666
    %v1932 = vpop.f32.mrb[0].mxu0
    %v1933 = vadd.f32 0.0, %v1932
    %v1934 = vpop.f32.mrb[0].mxu0
    %1935 = vmatprep.mubr.f32.mxu0 0.0
    %1936 = vmatmul.mubr.f32.gmra.mrb[0].mxu0 %v1669
    %v1937 = vpop.f32.mrb[0].mxu0
    %v1938 = vadd.f32 0.0, %v1937
    %v1939 = vpop.f32.mrb[0].mxu0
    %1940 = vmatprep.mubr.f32.mxu0 0.0
    %1941 = vmatmul.mubr.f32.gmra.mrb[0].mxu0 %v1672
    %v1942 = vpop.f32.mrb[0].mxu0
    %v1943 = vadd.f32 0.0, %v1942
    %v1944 = vpop.f32.mrb[0].mxu0
    %1945 = vmatprep.mubr.f32.mxu0 0.0
    %1946 = vmatmul.mubr.f32.gmra.mrb[0].mxu0 %v1675
    %v1947 = vpop.f32.mrb[0].mxu0
    %v1948 = vadd.f32 0.0, %v1947
    %v1949 = vpop.f32.mrb[0].mxu0
    %1950 = vmatprep.mubr.f32.mxu0 0.0
    %1951 = vmatmul.mubr.f32.gmra.mrb[0].mxu0 %v1678
    %v1952 = vpop.f32.mrb[0].mxu0
    %v1953 = vadd.f32 0.0, %v1952
    %v1954 = vpop.f32.mrb[0].mxu0
    %1955 = vmatprep.mubr.f32.mxu0 0.0
    %1956 = vmatmul.mubr.f32.gmra.mrb[0].mxu0 %v1681
    %v1957 = vpop.f32.mrb[0].mxu0
    %v1958 = vadd.f32 0.0, %v1957
    %v1959 = vpop.f32.mrb[0].mxu0
    %1960 = vmatprep.mubr.f32.mxu0 0.0
    %1961 = vmatmul.mubr.f32.gmra.mrb[0].mxu0 %v1684
    %v1962 = vpop.f32.mrb[0].mxu0
    %v1963 = vadd.f32 0.0, %v1962
    %v1964 = vpop.f32.mrb[0].mxu0
    %1965 = vmatprep.mubr.f32.mxu0 0.0
    %1966 = vmatmul.mubr.f32.gmra.mrb[0].mxu0 %v1687
    %v1967 = vpop.f32.mrb[0].mxu0
    %v1968 = vadd.f32 0.0, %v1967
    %v1969 = vpop.f32.mrb[0].mxu0
    %1970 = vmatprep.mubr.f32.mxu0 0.0
    %1971 = vmatmul.mubr.f32.gmra.mrb[0].mxu0 %v1690
    %v1972 = vpop.f32.mrb[0].mxu0
    %v1973 = vadd.f32 0.0, %v1972
    %v1974 = vpop.f32.mrb[0].mxu0
    %1975 = vmatprep.mubr.f32.mxu0 0.0
    %1976 = vmatmul.mubr.f32.gmra.mrb[0].mxu0 %v1693
    %v1977 = vpop.f32.mrb[0].mxu0
    %v1978 = vadd.f32 0.0, %v1977
    %v1979 = vpop.f32.mrb[0].mxu0
    %1980 = vmatprep.mubr.f32.mxu0 0.0
    %1981 = vmatmul.mubr.f32.gmra.mrb[0].mxu0 %v1696
    %v1982 = vpop.f32.mrb[0].mxu0
    %v1983 = vadd.f32 0.0, %v1982
    %v1984 = vpop.f32.mrb[0].mxu0
    %1985 = vmatprep.mubr.f32.mxu0 0.0
    %1986 = vmatmul.mubr.f32.gmra.mrb[0].mxu0 %v1699
    %v1987 = vpop.f32.mrb[0].mxu0
    %v1988 = vadd.f32 0.0, %v1987
    %v1989 = vpop.f32.mrb[0].mxu0
    %1990 = vdwg.mxu0
    %1991 = vxpose.xlu0.b32.start [1/16] %v1768, 128
    %1992 = vxpose.xlu0.b32.cont [2/16] %v1773, 128
    %1993 = vxpose.xlu0.b32.cont [3/16] 0.0, 128
    %1994 = vxpose.xlu0.b32.cont [4/16] 0.0, 128
    %1995 = vxpose.xlu0.b32.cont [5/16] 0.0, 128
    %1996 = vxpose.xlu0.b32.cont [6/16] 0.0, 128
    %1997 = vxpose.xlu0.b32.cont [7/16] 0.0, 128
    %1998 = vxpose.xlu0.b32.cont [8/16] 0.0, 128
    %1999 = vxpose.xlu0.b32.cont [9/16] 0.0, 128
    %2000 = vxpose.xlu0.b32.cont [10/16] 0.0, 128
    %2001 = vxpose.xlu0.b32.cont [11/16] 0.0, 128
    %2002 = vxpose.xlu0.b32.cont [12/16] 0.0, 128
    %2003 = vxpose.xlu0.b32.cont [13/16] 0.0, 128
    %2004 = vxpose.xlu0.b32.cont [14/16] 0.0, 128
    %2005 = vxpose.xlu0.b32.cont [15/16] 0.0, 128
    %2006 = vxpose.xlu0.b32.end [16/16] 0.0, 128
    %v2007 = vpop.trf.xlu0
    %v2008 = vpop.trf.xlu0
    %v2009 = vpop.trf.xlu0
    %v2010 = vpop.trf.xlu0
    %v2011 = vpop.trf.xlu0
    %v2012 = vpop.trf.xlu0
    %v2013 = vpop.trf.xlu0
    %v2014 = vpop.trf.xlu0
    %v2015 = vpop.trf.xlu0
    %v2016 = vpop.trf.xlu0
    %v2017 = vpop.trf.xlu0
    %v2018 = vpop.trf.xlu0
    %v2019 = vpop.trf.xlu0
    %v2020 = vpop.trf.xlu0
    %v2021 = vpop.trf.xlu0
    %v2022 = vpop.trf.xlu0
    %2023 = vxpose.xlu0.b32.start [1/16] %v1778, 128
    %2024 = vxpose.xlu0.b32.cont [2/16] %v1783, 128
    %2025 = vxpose.xlu0.b32.cont [3/16] 0.0, 128
    %2026 = vxpose.xlu0.b32.cont [4/16] 0.0, 128
    %2027 = vxpose.xlu0.b32.cont [5/16] 0.0, 128
    %2028 = vxpose.xlu0.b32.cont [6/16] 0.0, 128
    %2029 = vxpose.xlu0.b32.cont [7/16] 0.0, 128
    %2030 = vxpose.xlu0.b32.cont [8/16] 0.0, 128
    %2031 = vxpose.xlu0.b32.cont [9/16] 0.0, 128
    %2032 = vxpose.xlu0.b32.cont [10/16] 0.0, 128
    %2033 = vxpose.xlu0.b32.cont [11/16] 0.0, 128
    %2034 = vxpose.xlu0.b32.cont [12/16] 0.0, 128
    %2035 = vxpose.xlu0.b32.cont [13/16] 0.0, 128
    %2036 = vxpose.xlu0.b32.cont [14/16] 0.0, 128
    %2037 = vxpose.xlu0.b32.cont [15/16] 0.0, 128
    %2038 = vxpose.xlu0.b32.end [16/16] 0.0, 128
    %v2039 = vpop.trf.xlu0
    %v2040 = vpop.trf.xlu0
    %v2041 = vpop.trf.xlu0
    %v2042 = vpop.trf.xlu0
    %v2043 = vpop.trf.xlu0
    %v2044 = vpop.trf.xlu0
    %v2045 = vpop.trf.xlu0
    %v2046 = vpop.trf.xlu0
    %v2047 = vpop.trf.xlu0
    %v2048 = vpop.trf.xlu0
    %v2049 = vpop.trf.xlu0
    %v2050 = vpop.trf.xlu0
    %v2051 = vpop.trf.xlu0
    %v2052 = vpop.trf.xlu0
    %v2053 = vpop.trf.xlu0
    %v2054 = vpop.trf.xlu0
    %2055 = vxpose.xlu0.b32.start [1/16] %v1788, 128
    %2056 = vxpose.xlu0.b32.cont [2/16] %v1793, 128
    %2057 = vxpose.xlu0.b32.cont [3/16] 0.0, 128
    %2058 = vxpose.xlu0.b32.cont [4/16] 0.0, 128
    %2059 = vxpose.xlu0.b32.cont [5/16] 0.0, 128
    %2060 = vxpose.xlu0.b32.cont [6/16] 0.0, 128
    %2061 = vxpose.xlu0.b32.cont [7/16] 0.0, 128
    %2062 = vxpose.xlu0.b32.cont [8/16] 0.0, 128
    %2063 = vxpose.xlu0.b32.cont [9/16] 0.0, 128
    %2064 = vxpose.xlu0.b32.cont [10/16] 0.0, 128
    %2065 = vxpose.xlu0.b32.cont [11/16] 0.0, 128
    %2066 = vxpose.xlu0.b32.cont [12/16] 0.0, 128
    %2067 = vxpose.xlu0.b32.cont [13/16] 0.0, 128
    %2068 = vxpose.xlu0.b32.cont [14/16] 0.0, 128
    %2069 = vxpose.xlu0.b32.cont [15/16] 0.0, 128
    %2070 = vxpose.xlu0.b32.end [16/16] 0.0, 128
    %v2071 = vpop.trf.xlu0
    %v2072 = vpop.trf.xlu0
    %v2073 = vpop.trf.xlu0
    %v2074 = vpop.trf.xlu0
    %v2075 = vpop.trf.xlu0
    %v2076 = vpop.trf.xlu0
    %v2077 = vpop.trf.xlu0
    %v2078 = vpop.trf.xlu0
    %v2079 = vpop.trf.xlu0
    %v2080 = vpop.trf.xlu0
    %v2081 = vpop.trf.xlu0
    %v2082 = vpop.trf.xlu0
    %v2083 = vpop.trf.xlu0
    %v2084 = vpop.trf.xlu0
    %v2085 = vpop.trf.xlu0
    %v2086 = vpop.trf.xlu0
    %2087 = vxpose.xlu0.b32.start [1/16] %v1798, 128
    %2088 = vxpose.xlu0.b32.cont [2/16] %v1803, 128
    %2089 = vxpose.xlu0.b32.cont [3/16] 0.0, 128
    %2090 = vxpose.xlu0.b32.cont [4/16] 0.0, 128
    %2091 = vxpose.xlu0.b32.cont [5/16] 0.0, 128
    %2092 = vxpose.xlu0.b32.cont [6/16] 0.0, 128
    %2093 = vxpose.xlu0.b32.cont [7/16] 0.0, 128
    %2094 = vxpose.xlu0.b32.cont [8/16] 0.0, 128
    %2095 = vxpose.xlu0.b32.cont [9/16] 0.0, 128
    %2096 = vxpose.xlu0.b32.cont [10/16] 0.0, 128
    %2097 = vxpose.xlu0.b32.cont [11/16] 0.0, 128
    %2098 = vxpose.xlu0.b32.cont [12/16] 0.0, 128
    %2099 = vxpose.xlu0.b32.cont [13/16] 0.0, 128
    %2100 = vxpose.xlu0.b32.cont [14/16] 0.0, 128
    %2101 = vxpose.xlu0.b32.cont [15/16] 0.0, 128
    %2102 = vxpose.xlu0.b32.end [16/16] 0.0, 128
    %v2103 = vpop.trf.xlu0
    %v2104 = vpop.trf.xlu0
    %v2105 = vpop.trf.xlu0
    %v2106 = vpop.trf.xlu0
    %v2107 = vpop.trf.xlu0
    %v2108 = vpop.trf.xlu0
    %v2109 = vpop.trf.xlu0
    %v2110 = vpop.trf.xlu0
    %v2111 = vpop.trf.xlu0
    %v2112 = vpop.trf.xlu0
    %v2113 = vpop.trf.xlu0
    %v2114 = vpop.trf.xlu0
    %v2115 = vpop.trf.xlu0
    %v2116 = vpop.trf.xlu0
    %v2117 = vpop.trf.xlu0
    %v2118 = vpop.trf.xlu0
    %2119 = vxpose.xlu0.b32.start [1/16] %v1808, 128
    %2120 = vxpose.xlu0.b32.cont [2/16] %v1813, 128
    %2121 = vxpose.xlu0.b32.cont [3/16] 0.0, 128
    %2122 = vxpose.xlu0.b32.cont [4/16] 0.0, 128
    %2123 = vxpose.xlu0.b32.cont [5/16] 0.0, 128
    %2124 = vxpose.xlu0.b32.cont [6/16] 0.0, 128
    %2125 = vxpose.xlu0.b32.cont [7/16] 0.0, 128
    %2126 = vxpose.xlu0.b32.cont [8/16] 0.0, 128
    %2127 = vxpose.xlu0.b32.cont [9/16] 0.0, 128
    %2128 = vxpose.xlu0.b32.cont [10/16] 0.0, 128
    %2129 = vxpose.xlu0.b32.cont [11/16] 0.0, 128
    %2130 = vxpose.xlu0.b32.cont [12/16] 0.0, 128
    %2131 = vxpose.xlu0.b32.cont [13/16] 0.0, 128
    %2132 = vxpose.xlu0.b32.cont [14/16] 0.0, 128
    %2133 = vxpose.xlu0.b32.cont [15/16] 0.0, 128
    %2134 = vxpose.xlu0.b32.end [16/16] 0.0, 128
    %v2135 = vpop.trf.xlu0
    %v2136 = vpop.trf.xlu0
    %v2137 = vpop.trf.xlu0
    %v2138 = vpop.trf.xlu0
    %v2139 = vpop.trf.xlu0
    %v2140 = vpop.trf.xlu0
    %v2141 = vpop.trf.xlu0
    %v2142 = vpop.trf.xlu0
    %v2143 = vpop.trf.xlu0
    %v2144 = vpop.trf.xlu0
    %v2145 = vpop.trf.xlu0
    %v2146 = vpop.trf.xlu0
    %v2147 = vpop.trf.xlu0
    %v2148 = vpop.trf.xlu0
    %v2149 = vpop.trf.xlu0
    %v2150 = vpop.trf.xlu0
    %2151 = vxpose.xlu0.b32.start [1/16] %v1818, 128
    %2152 = vxpose.xlu0.b32.cont [2/16] %v1823, 128
    %2153 = vxpose.xlu0.b32.cont [3/16] 0.0, 128
    %2154 = vxpose.xlu0.b32.cont [4/16] 0.0, 128
    %2155 = vxpose.xlu0.b32.cont [5/16] 0.0, 128
    %2156 = vxpose.xlu0.b32.cont [6/16] 0.0, 128
    %2157 = vxpose.xlu0.b32.cont [7/16] 0.0, 128
    %2158 = vxpose.xlu0.b32.cont [8/16] 0.0, 128
    %2159 = vxpose.xlu0.b32.cont [9/16] 0.0, 128
    %2160 = vxpose.xlu0.b32.cont [10/16] 0.0, 128
    %2161 = vxpose.xlu0.b32.cont [11/16] 0.0, 128
    %2162 = vxpose.xlu0.b32.cont [12/16] 0.0, 128
    %2163 = vxpose.xlu0.b32.cont [13/16] 0.0, 128
    %2164 = vxpose.xlu0.b32.cont [14/16] 0.0, 128
    %2165 = vxpose.xlu0.b32.cont [15/16] 0.0, 128
    %2166 = vxpose.xlu0.b32.end [16/16] 0.0, 128
    %v2167 = vpop.trf.xlu0
    %v2168 = vpop.trf.xlu0
    %v2169 = vpop.trf.xlu0
    %v2170 = vpop.trf.xlu0
    %v2171 = vpop.trf.xlu0
    %v2172 = vpop.trf.xlu0
    %v2173 = vpop.trf.xlu0
    %v2174 = vpop.trf.xlu0
    %v2175 = vpop.trf.xlu0
    %v2176 = vpop.trf.xlu0
    %v2177 = vpop.trf.xlu0
    %v2178 = vpop.trf.xlu0
    %v2179 = vpop.trf.xlu0
    %v2180 = vpop.trf.xlu0
    %v2181 = vpop.trf.xlu0
    %v2182 = vpop.trf.xlu0
    %2183 = vxpose.xlu0.b32.start [1/16] %v1828, 128
    %2184 = vxpose.xlu0.b32.cont [2/16] %v1833, 128
    %2185 = vxpose.xlu0.b32.cont [3/16] 0.0, 128
    %2186 = vxpose.xlu0.b32.cont [4/16] 0.0, 128
    %2187 = vxpose.xlu0.b32.cont [5/16] 0.0, 128
    %2188 = vxpose.xlu0.b32.cont [6/16] 0.0, 128
    %2189 = vxpose.xlu0.b32.cont [7/16] 0.0, 128
    %2190 = vxpose.xlu0.b32.cont [8/16] 0.0, 128
    %2191 = vxpose.xlu0.b32.cont [9/16] 0.0, 128
    %2192 = vxpose.xlu0.b32.cont [10/16] 0.0, 128
    %2193 = vxpose.xlu0.b32.cont [11/16] 0.0, 128
    %2194 = vxpose.xlu0.b32.cont [12/16] 0.0, 128
    %2195 = vxpose.xlu0.b32.cont [13/16] 0.0, 128
    %2196 = vxpose.xlu0.b32.cont [14/16] 0.0, 128
    %2197 = vxpose.xlu0.b32.cont [15/16] 0.0, 128
    %2198 = vxpose.xlu0.b32.end [16/16] 0.0, 128
    %v2199 = vpop.trf.xlu0
    %v2200 = vpop.trf.xlu0
    %v2201 = vpop.trf.xlu0
    %v2202 = vpop.trf.xlu0
    %v2203 = vpop.trf.xlu0
    %v2204 = vpop.trf.xlu0
    %v2205 = vpop.trf.xlu0
    %v2206 = vpop.trf.xlu0
    %v2207 = vpop.trf.xlu0
    %v2208 = vpop.trf.xlu0
    %v2209 = vpop.trf.xlu0
    %v2210 = vpop.trf.xlu0
    %v2211 = vpop.trf.xlu0
    %v2212 = vpop.trf.xlu0
    %v2213 = vpop.trf.xlu0
    %v2214 = vpop.trf.xlu0
    %2215 = vxpose.xlu0.b32.start [1/16] %v1838, 128
    %2216 = vxpose.xlu0.b32.cont [2/16] %v1843, 128
    %2217 = vxpose.xlu0.b32.cont [3/16] 0.0, 128
    %2218 = vxpose.xlu0.b32.cont [4/16] 0.0, 128
    %2219 = vxpose.xlu0.b32.cont [5/16] 0.0, 128
    %2220 = vxpose.xlu0.b32.cont [6/16] 0.0, 128
    %2221 = vxpose.xlu0.b32.cont [7/16] 0.0, 128
    %2222 = vxpose.xlu0.b32.cont [8/16] 0.0, 128
    %2223 = vxpose.xlu0.b32.cont [9/16] 0.0, 128
    %2224 = vxpose.xlu0.b32.cont [10/16] 0.0, 128
    %2225 = vxpose.xlu0.b32.cont [11/16] 0.0, 128
    %2226 = vxpose.xlu0.b32.cont [12/16] 0.0, 128
    %2227 = vxpose.xlu0.b32.cont [13/16] 0.0, 128
    %2228 = vxpose.xlu0.b32.cont [14/16] 0.0, 128
    %2229 = vxpose.xlu0.b32.cont [15/16] 0.0, 128
    %2230 = vxpose.xlu0.b32.end [16/16] 0.0, 128
    %v2231 = vpop.trf.xlu0
    %v2232 = vpop.trf.xlu0
    %v2233 = vpop.trf.xlu0
    %v2234 = vpop.trf.xlu0
    %v2235 = vpop.trf.xlu0
    %v2236 = vpop.trf.xlu0
    %v2237 = vpop.trf.xlu0
    %v2238 = vpop.trf.xlu0
    %v2239 = vpop.trf.xlu0
    %v2240 = vpop.trf.xlu0
    %v2241 = vpop.trf.xlu0
    %v2242 = vpop.trf.xlu0
    %v2243 = vpop.trf.xlu0
    %v2244 = vpop.trf.xlu0
    %v2245 = vpop.trf.xlu0
    %v2246 = vpop.trf.xlu0
    %2247 = vxpose.xlu0.b32.start [1/16] %v1913, 128
    %2248 = vxpose.xlu0.b32.cont [2/16] %v1918, 128
    %2249 = vxpose.xlu0.b32.cont [3/16] 0.0, 128
    %2250 = vxpose.xlu0.b32.cont [4/16] 0.0, 128
    %2251 = vxpose.xlu0.b32.cont [5/16] 0.0, 128
    %2252 = vxpose.xlu0.b32.cont [6/16] 0.0, 128
    %2253 = vxpose.xlu0.b32.cont [7/16] 0.0, 128
    %2254 = vxpose.xlu0.b32.cont [8/16] 0.0, 128
    %2255 = vxpose.xlu0.b32.cont [9/16] 0.0, 128
    %2256 = vxpose.xlu0.b32.cont [10/16] 0.0, 128
    %2257 = vxpose.xlu0.b32.cont [11/16] 0.0, 128
    %2258 = vxpose.xlu0.b32.cont [12/16] 0.0, 128
    %2259 = vxpose.xlu0.b32.cont [13/16] 0.0, 128
    %2260 = vxpose.xlu0.b32.cont [14/16] 0.0, 128
    %2261 = vxpose.xlu0.b32.cont [15/16] 0.0, 128
    %2262 = vxpose.xlu0.b32.end [16/16] 0.0, 128
    %v2263 = vpop.trf.xlu0
    %v2264 = vpop.trf.xlu0
    %v2265 = vpop.trf.xlu0
    %v2266 = vpop.trf.xlu0
    %v2267 = vpop.trf.xlu0
    %v2268 = vpop.trf.xlu0
    %v2269 = vpop.trf.xlu0
    %v2270 = vpop.trf.xlu0
    %v2271 = vpop.trf.xlu0
    %v2272 = vpop.trf.xlu0
    %v2273 = vpop.trf.xlu0
    %v2274 = vpop.trf.xlu0
    %v2275 = vpop.trf.xlu0
    %v2276 = vpop.trf.xlu0
    %v2277 = vpop.trf.xlu0
    %v2278 = vpop.trf.xlu0
    %2279 = vxpose.xlu0.b32.start [1/16] %v1923, 128
    %2280 = vxpose.xlu0.b32.cont [2/16] %v1928, 128
    %2281 = vxpose.xlu0.b32.cont [3/16] 0.0, 128
    %2282 = vxpose.xlu0.b32.cont [4/16] 0.0, 128
    %2283 = vxpose.xlu0.b32.cont [5/16] 0.0, 128
    %2284 = vxpose.xlu0.b32.cont [6/16] 0.0, 128
    %2285 = vxpose.xlu0.b32.cont [7/16] 0.0, 128
    %2286 = vxpose.xlu0.b32.cont [8/16] 0.0, 128
    %2287 = vxpose.xlu0.b32.cont [9/16] 0.0, 128
    %2288 = vxpose.xlu0.b32.cont [10/16] 0.0, 128
    %2289 = vxpose.xlu0.b32.cont [11/16] 0.0, 128
    %2290 = vxpose.xlu0.b32.cont [12/16] 0.0, 128
    %2291 = vxpose.xlu0.b32.cont [13/16] 0.0, 128
    %2292 = vxpose.xlu0.b32.cont [14/16] 0.0, 128
    %2293 = vxpose.xlu0.b32.cont [15/16] 0.0, 128
    %2294 = vxpose.xlu0.b32.end [16/16] 0.0, 128
    %v2295 = vpop.trf.xlu0
    %v2296 = vpop.trf.xlu0
    %v2297 = vpop.trf.xlu0
    %v2298 = vpop.trf.xlu0
    %v2299 = vpop.trf.xlu0
    %v2300 = vpop.trf.xlu0
    %v2301 = vpop.trf.xlu0
    %v2302 = vpop.trf.xlu0
    %v2303 = vpop.trf.xlu0
    %v2304 = vpop.trf.xlu0
    %v2305 = vpop.trf.xlu0
    %v2306 = vpop.trf.xlu0
    %v2307 = vpop.trf.xlu0
    %v2308 = vpop.trf.xlu0
    %v2309 = vpop.trf.xlu0
    %v2310 = vpop.trf.xlu0
    %2311 = vxpose.xlu0.b32.start [1/16] %v1933, 128
    %2312 = vxpose.xlu0.b32.cont [2/16] %v1938, 128
    %2313 = vxpose.xlu0.b32.cont [3/16] 0.0, 128
    %2314 = vxpose.xlu0.b32.cont [4/16] 0.0, 128
    %2315 = vxpose.xlu0.b32.cont [5/16] 0.0, 128
    %2316 = vxpose.xlu0.b32.cont [6/16] 0.0, 128
    %2317 = vxpose.xlu0.b32.cont [7/16] 0.0, 128
    %2318 = vxpose.xlu0.b32.cont [8/16] 0.0, 128
    %2319 = vxpose.xlu0.b32.cont [9/16] 0.0, 128
    %2320 = vxpose.xlu0.b32.cont [10/16] 0.0, 128
    %2321 = vxpose.xlu0.b32.cont [11/16] 0.0, 128
    %2322 = vxpose.xlu0.b32.cont [12/16] 0.0, 128
    %2323 = vxpose.xlu0.b32.cont [13/16] 0.0, 128
    %2324 = vxpose.xlu0.b32.cont [14/16] 0.0, 128
    %2325 = vxpose.xlu0.b32.cont [15/16] 0.0, 128
    %2326 = vxpose.xlu0.b32.end [16/16] 0.0, 128
    %v2327 = vpop.trf.xlu0
    %v2328 = vpop.trf.xlu0
    %v2329 = vpop.trf.xlu0
    %v2330 = vpop.trf.xlu0
    %v2331 = vpop.trf.xlu0
    %v2332 = vpop.trf.xlu0
    %v2333 = vpop.trf.xlu0
    %v2334 = vpop.trf.xlu0
    %v2335 = vpop.trf.xlu0
    %v2336 = vpop.trf.xlu0
    %v2337 = vpop.trf.xlu0
    %v2338 = vpop.trf.xlu0
    %v2339 = vpop.trf.xlu0
    %v2340 = vpop.trf.xlu0
    %v2341 = vpop.trf.xlu0
    %v2342 = vpop.trf.xlu0
    %2343 = vxpose.xlu0.b32.start [1/16] %v1943, 128
    %2344 = vxpose.xlu0.b32.cont [2/16] %v1948, 128
    %2345 = vxpose.xlu0.b32.cont [3/16] 0.0, 128
    %2346 = vxpose.xlu0.b32.cont [4/16] 0.0, 128
    %2347 = vxpose.xlu0.b32.cont [5/16] 0.0, 128
    %2348 = vxpose.xlu0.b32.cont [6/16] 0.0, 128
    %2349 = vxpose.xlu0.b32.cont [7/16] 0.0, 128
    %2350 = vxpose.xlu0.b32.cont [8/16] 0.0, 128
    %2351 = vxpose.xlu0.b32.cont [9/16] 0.0, 128
    %2352 = vxpose.xlu0.b32.cont [10/16] 0.0, 128
    %2353 = vxpose.xlu0.b32.cont [11/16] 0.0, 128
    %2354 = vxpose.xlu0.b32.cont [12/16] 0.0, 128
    %2355 = vxpose.xlu0.b32.cont [13/16] 0.0, 128
    %2356 = vxpose.xlu0.b32.cont [14/16] 0.0, 128
    %2357 = vxpose.xlu0.b32.cont [15/16] 0.0, 128
    %2358 = vxpose.xlu0.b32.end [16/16] 0.0, 128
    %v2359 = vpop.trf.xlu0
    %v2360 = vpop.trf.xlu0
    %v2361 = vpop.trf.xlu0
    %v2362 = vpop.trf.xlu0
    %v2363 = vpop.trf.xlu0
    %v2364 = vpop.trf.xlu0
    %v2365 = vpop.trf.xlu0
    %v2366 = vpop.trf.xlu0
    %v2367 = vpop.trf.xlu0
    %v2368 = vpop.trf.xlu0
    %v2369 = vpop.trf.xlu0
    %v2370 = vpop.trf.xlu0
    %v2371 = vpop.trf.xlu0
    %v2372 = vpop.trf.xlu0
    %v2373 = vpop.trf.xlu0
    %v2374 = vpop.trf.xlu0
    %2375 = vxpose.xlu0.b32.start [1/16] %v1953, 128
    %2376 = vxpose.xlu0.b32.cont [2/16] %v1958, 128
    %2377 = vxpose.xlu0.b32.cont [3/16] 0.0, 128
    %2378 = vxpose.xlu0.b32.cont [4/16] 0.0, 128
    %2379 = vxpose.xlu0.b32.cont [5/16] 0.0, 128
    %2380 = vxpose.xlu0.b32.cont [6/16] 0.0, 128
    %2381 = vxpose.xlu0.b32.cont [7/16] 0.0, 128
    %2382 = vxpose.xlu0.b32.cont [8/16] 0.0, 128
    %2383 = vxpose.xlu0.b32.cont [9/16] 0.0, 128
    %2384 = vxpose.xlu0.b32.cont [10/16] 0.0, 128
    %2385 = vxpose.xlu0.b32.cont [11/16] 0.0, 128
    %2386 = vxpose.xlu0.b32.cont [12/16] 0.0, 128
    %2387 = vxpose.xlu0.b32.cont [13/16] 0.0, 128
    %2388 = vxpose.xlu0.b32.cont [14/16] 0.0, 128
    %2389 = vxpose.xlu0.b32.cont [15/16] 0.0, 128
    %2390 = vxpose.xlu0.b32.end [16/16] 0.0, 128
    %v2391 = vpop.trf.xlu0
    %v2392 = vpop.trf.xlu0
    %v2393 = vpop.trf.xlu0
    %v2394 = vpop.trf.xlu0
    %v2395 = vpop.trf.xlu0
    %v2396 = vpop.trf.xlu0
    %v2397 = vpop.trf.xlu0
    %v2398 = vpop.trf.xlu0
    %v2399 = vpop.trf.xlu0
    %v2400 = vpop.trf.xlu0
    %v2401 = vpop.trf.xlu0
    %v2402 = vpop.trf.xlu0
    %v2403 = vpop.trf.xlu0
    %v2404 = vpop.trf.xlu0
    %v2405 = vpop.trf.xlu0
    %v2406 = vpop.trf.xlu0
    %2407 = vxpose.xlu0.b32.start [1/16] %v1963, 128
    %2408 = vxpose.xlu0.b32.cont [2/16] %v1968, 128
    %2409 = vxpose.xlu0.b32.cont [3/16] 0.0, 128
    %2410 = vxpose.xlu0.b32.cont [4/16] 0.0, 128
    %2411 = vxpose.xlu0.b32.cont [5/16] 0.0, 128
    %2412 = vxpose.xlu0.b32.cont [6/16] 0.0, 128
    %2413 = vxpose.xlu0.b32.cont [7/16] 0.0, 128
    %2414 = vxpose.xlu0.b32.cont [8/16] 0.0, 128
    %2415 = vxpose.xlu0.b32.cont [9/16] 0.0, 128
    %2416 = vxpose.xlu0.b32.cont [10/16] 0.0, 128
    %2417 = vxpose.xlu0.b32.cont [11/16] 0.0, 128
    %2418 = vxpose.xlu0.b32.cont [12/16] 0.0, 128
    %2419 = vxpose.xlu0.b32.cont [13/16] 0.0, 128
    %2420 = vxpose.xlu0.b32.cont [14/16] 0.0, 128
    %2421 = vxpose.xlu0.b32.cont [15/16] 0.0, 128
    %2422 = vxpose.xlu0.b32.end [16/16] 0.0, 128
    %v2423 = vpop.trf.xlu0
    %v2424 = vpop.trf.xlu0
    %v2425 = vpop.trf.xlu0
    %v2426 = vpop.trf.xlu0
    %v2427 = vpop.trf.xlu0
    %v2428 = vpop.trf.xlu0
    %v2429 = vpop.trf.xlu0
    %v2430 = vpop.trf.xlu0
    %v2431 = vpop.trf.xlu0
    %v2432 = vpop.trf.xlu0
    %v2433 = vpop.trf.xlu0
    %v2434 = vpop.trf.xlu0
    %v2435 = vpop.trf.xlu0
    %v2436 = vpop.trf.xlu0
    %v2437 = vpop.trf.xlu0
    %v2438 = vpop.trf.xlu0
    %2439 = vxpose.xlu0.b32.start [1/16] %v1973, 128
    %2440 = vxpose.xlu0.b32.cont [2/16] %v1978, 128
    %2441 = vxpose.xlu0.b32.cont [3/16] 0.0, 128
    %2442 = vxpose.xlu0.b32.cont [4/16] 0.0, 128
    %2443 = vxpose.xlu0.b32.cont [5/16] 0.0, 128
    %2444 = vxpose.xlu0.b32.cont [6/16] 0.0, 128
    %2445 = vxpose.xlu0.b32.cont [7/16] 0.0, 128
    %2446 = vxpose.xlu0.b32.cont [8/16] 0.0, 128
    %2447 = vxpose.xlu0.b32.cont [9/16] 0.0, 128
    %2448 = vxpose.xlu0.b32.cont [10/16] 0.0, 128
    %2449 = vxpose.xlu0.b32.cont [11/16] 0.0, 128
    %2450 = vxpose.xlu0.b32.cont [12/16] 0.0, 128
    %2451 = vxpose.xlu0.b32.cont [13/16] 0.0, 128
    %2452 = vxpose.xlu0.b32.cont [14/16] 0.0, 128
    %2453 = vxpose.xlu0.b32.cont [15/16] 0.0, 128
    %2454 = vxpose.xlu0.b32.end [16/16] 0.0, 128
    %v2455 = vpop.trf.xlu0
    %v2456 = vpop.trf.xlu0
    %v2457 = vpop.trf.xlu0
    %v2458 = vpop.trf.xlu0
    %v2459 = vpop.trf.xlu0
    %v2460 = vpop.trf.xlu0
    %v2461 = vpop.trf.xlu0
    %v2462 = vpop.trf.xlu0
    %v2463 = vpop.trf.xlu0
    %v2464 = vpop.trf.xlu0
    %v2465 = vpop.trf.xlu0
    %v2466 = vpop.trf.xlu0
    %v2467 = vpop.trf.xlu0
    %v2468 = vpop.trf.xlu0
    %v2469 = vpop.trf.xlu0
    %v2470 = vpop.trf.xlu0
    %2471 = vxpose.xlu0.b32.start [1/16] %v1983, 128
    %2472 = vxpose.xlu0.b32.cont [2/16] %v1988, 128
    %2473 = vxpose.xlu0.b32.cont [3/16] 0.0, 128
    %2474 = vxpose.xlu0.b32.cont [4/16] 0.0, 128
    %2475 = vxpose.xlu0.b32.cont [5/16] 0.0, 128
    %2476 = vxpose.xlu0.b32.cont [6/16] 0.0, 128
    %2477 = vxpose.xlu0.b32.cont [7/16] 0.0, 128
    %2478 = vxpose.xlu0.b32.cont [8/16] 0.0, 128
    %2479 = vxpose.xlu0.b32.cont [9/16] 0.0, 128
    %2480 = vxpose.xlu0.b32.cont [10/16] 0.0, 128
    %2481 = vxpose.xlu0.b32.cont [11/16] 0.0, 128
    %2482 = vxpose.xlu0.b32.cont [12/16] 0.0, 128
    %2483 = vxpose.xlu0.b32.cont [13/16] 0.0, 128
    %2484 = vxpose.xlu0.b32.cont [14/16] 0.0, 128
    %2485 = vxpose.xlu0.b32.cont [15/16] 0.0, 128
    %2486 = vxpose.xlu0.b32.end [16/16] 0.0, 128
    %v2487 = vpop.trf.xlu0
    %v2488 = vpop.trf.xlu0
    %v2489 = vpop.trf.xlu0
    %v2490 = vpop.trf.xlu0
    %v2491 = vpop.trf.xlu0
    %v2492 = vpop.trf.xlu0
    %v2493 = vpop.trf.xlu0
    %v2494 = vpop.trf.xlu0
    %v2495 = vpop.trf.xlu0
    %v2496 = vpop.trf.xlu0
    %v2497 = vpop.trf.xlu0
    %v2498 = vpop.trf.xlu0
    %v2499 = vpop.trf.xlu0
    %v2500 = vpop.trf.xlu0
    %v2501 = vpop.trf.xlu0
    %v2502 = vpop.trf.xlu0
    %v2504 = vsel %vm95, %v2007, 0
    %v2507 = vsel %vm95, %v2008, 0
    %v2510 = vsel %vm95, %v2039, 0
    %v2513 = vsel %vm95, %v2040, 0
    %v2516 = vsel %vm95, %v2071, 0
    %v2519 = vsel %vm95, %v2072, 0
    %v2522 = vsel %vm95, %v2103, 0
    %v2525 = vsel %vm95, %v2104, 0
    %v2528 = vsel %vm95, %v2135, 0
    %v2531 = vsel %vm95, %v2136, 0
    %v2534 = vsel %vm95, %v2167, 0
    %v2537 = vsel %vm95, %v2168, 0
    %v2540 = vsel %vm95, %v2199, 0
    %v2543 = vsel %vm95, %v2200, 0
    %v2546 = vsel %vm95, %v2231, 0
    %v2549 = vsel %vm95, %v2232, 0
    %2551 = vmatprep.subr.mxu0 0.0
    %2552 = vmatpush1.msra.mxu0 %v73
    %2553 = vmatprep.subr.mxu0 0.0
    %2554 = vmatpush1.msra.mxu0 %v74
    %2555 = vmatprep.subr.mxu0 0.0
    %2556 = vmatpush1.msra.mxu0 0.0
    %2557 = vmatprep.subr.mxu0 0.0
    %2558 = vmatpush1.msra.mxu0 0.0
    %2559 = vmatprep.subr.mxu0 0.0
    %2560 = vmatpush1.msra.mxu0 0.0
    %2561 = vmatprep.subr.mxu0 0.0
    %2562 = vmatpush1.msra.mxu0 0.0
    %2563 = vmatprep.subr.mxu0 0.0
    %2564 = vmatpush1.msra.mxu0 0.0
    %2565 = vmatprep.subr.mxu0 0.0
    %2566 = vmatpush1.msra.mxu0 0.0
    %2567 = vmatprep.subr.mxu0 0.0
    %2568 = vmatpush1.msra.mxu0 0.0
    %2569 = vmatprep.subr.mxu0 0.0
    %2570 = vmatpush1.msra.mxu0 0.0
    %2571 = vmatprep.subr.mxu0 0.0
    %2572 = vmatpush1.msra.mxu0 0.0
    %2573 = vmatprep.subr.mxu0 0.0
    %2574 = vmatpush1.msra.mxu0 0.0
    %2575 = vmatprep.subr.mxu0 0.0
    %2576 = vmatpush1.msra.mxu0 0.0
    %2577 = vmatprep.subr.mxu0 0.0
    %2578 = vmatpush1.msra.mxu0 0.0
    %2579 = vmatprep.subr.mxu0 0.0
    %2580 = vmatpush1.msra.mxu0 0.0
    %2581 = vmatprep.subr.mxu0 0.0
    %2582 = vmatpush1.msra.mxu0 0.0
    %2583 = vmatprep.subr.mxu0 0.0
    %2584 = vmatpush1.msra.mxu0 0.0
    %2585 = vmatprep.subr.mxu0 0.0
    %2586 = vmatpush1.msra.mxu0 0.0
    %2587 = vmatprep.subr.mxu0 0.0
    %2588 = vmatpush1.msra.mxu0 0.0
    %2589 = vmatprep.subr.mxu0 0.0
    %2590 = vmatpush1.msra.mxu0 0.0
    %2591 = vmatprep.subr.mxu0 0.0
    %2592 = vmatpush1.msra.mxu0 0.0
    %2593 = vmatprep.subr.mxu0 0.0
    %2594 = vmatpush1.msra.mxu0 0.0
    %2595 = vmatprep.subr.mxu0 0.0
    %2596 = vmatpush1.msra.mxu0 0.0
    %2597 = vmatprep.subr.mxu0 0.0
    %2598 = vmatpush1.msra.mxu0 0.0
    %2599 = vmatprep.subr.mxu0 0.0
    %2600 = vmatpush1.msra.mxu0 0.0
    %2601 = vmatprep.subr.mxu0 0.0
    %2602 = vmatpush1.msra.mxu0 0.0
    %2603 = vmatprep.subr.mxu0 0.0
    %2604 = vmatpush1.msra.mxu0 0.0
    %2605 = vmatprep.subr.mxu0 0.0
    %2606 = vmatpush1.msra.mxu0 0.0
    %2607 = vmatprep.subr.mxu0 0.0
    %2608 = vmatpush1.msra.mxu0 0.0
    %2609 = vmatprep.subr.mxu0 0.0
    %2610 = vmatpush1.msra.mxu0 0.0
    %2611 = vmatprep.subr.mxu0 0.0
    %2612 = vmatpush1.msra.mxu0 0.0
    %2613 = vmatprep.subr.mxu0 0.0
    %2614 = vmatpush1.msra.mxu0 0.0
    %2615 = vmatprep.mubr.f32.mxu0 0.0
    %2616 = vmatmul.mubr.f32.gmra.mrb[0].mxu0 %v2504
    %v2617 = vpop.f32.mrb[0].mxu0
    %v2618 = vadd.f32 0.0, %v2617
    %v2619 = vpop.f32.mrb[0].mxu0
    %2620 = vmatprep.mubr.f32.mxu0 0.0
    %2621 = vmatmul.mubr.f32.gmra.mrb[0].mxu0 %v2507
    %v2622 = vpop.f32.mrb[0].mxu0
    %v2623 = vadd.f32 0.0, %v2622
    %v2624 = vpop.f32.mrb[0].mxu0
    %2625 = vmatprep.mubr.f32.mxu0 0.0
    %2626 = vmatmul.mubr.f32.gmra.mrb[0].mxu0 %v2510
    %v2627 = vpop.f32.mrb[0].mxu0
    %v2628 = vadd.f32 0.0, %v2627
    %v2629 = vpop.f32.mrb[0].mxu0
    %2630 = vmatprep.mubr.f32.mxu0 0.0
    %2631 = vmatmul.mubr.f32.gmra.mrb[0].mxu0 %v2513
    %v2632 = vpop.f32.mrb[0].mxu0
    %v2633 = vadd.f32 0.0, %v2632
    %v2634 = vpop.f32.mrb[0].mxu0
    %2635 = vmatprep.mubr.f32.mxu0 0.0
    %2636 = vmatmul.mubr.f32.gmra.mrb[0].mxu0 %v2516
    %v2637 = vpop.f32.mrb[0].mxu0
    %v2638 = vadd.f32 0.0, %v2637
    %v2639 = vpop.f32.mrb[0].mxu0
    %2640 = vmatprep.mubr.f32.mxu0 0.0
    %2641 = vmatmul.mubr.f32.gmra.mrb[0].mxu0 %v2519
    %v2642 = vpop.f32.mrb[0].mxu0
    %v2643 = vadd.f32 0.0, %v2642
    %v2644 = vpop.f32.mrb[0].mxu0
    %2645 = vmatprep.mubr.f32.mxu0 0.0
    %2646 = vmatmul.mubr.f32.gmra.mrb[0].mxu0 %v2522
    %v2647 = vpop.f32.mrb[0].mxu0
    %v2648 = vadd.f32 0.0, %v2647
    %v2649 = vpop.f32.mrb[0].mxu0
    %2650 = vmatprep.mubr.f32.mxu0 0.0
    %2651 = vmatmul.mubr.f32.gmra.mrb[0].mxu0 %v2525
    %v2652 = vpop.f32.mrb[0].mxu0
    %v2653 = vadd.f32 0.0, %v2652
    %v2654 = vpop.f32.mrb[0].mxu0
    %2655 = vmatprep.mubr.f32.mxu0 0.0
    %2656 = vmatmul.mubr.f32.gmra.mrb[0].mxu0 %v2528
    %v2657 = vpop.f32.mrb[0].mxu0
    %v2658 = vadd.f32 0.0, %v2657
    %v2659 = vpop.f32.mrb[0].mxu0
    %2660 = vmatprep.mubr.f32.mxu0 0.0
    %2661 = vmatmul.mubr.f32.gmra.mrb[0].mxu0 %v2531
    %v2662 = vpop.f32.mrb[0].mxu0
    %v2663 = vadd.f32 0.0, %v2662
    %v2664 = vpop.f32.mrb[0].mxu0
    %2665 = vmatprep.mubr.f32.mxu0 0.0
    %2666 = vmatmul.mubr.f32.gmra.mrb[0].mxu0 %v2534
    %v2667 = vpop.f32.mrb[0].mxu0
    %v2668 = vadd.f32 0.0, %v2667
    %v2669 = vpop.f32.mrb[0].mxu0
    %2670 = vmatprep.mubr.f32.mxu0 0.0
    %2671 = vmatmul.mubr.f32.gmra.mrb[0].mxu0 %v2537
    %v2672 = vpop.f32.mrb[0].mxu0
    %v2673 = vadd.f32 0.0, %v2672
    %v2674 = vpop.f32.mrb[0].mxu0
    %2675 = vmatprep.mubr.f32.mxu0 0.0
    %2676 = vmatmul.mubr.f32.gmra.mrb[0].mxu0 %v2540
    %v2677 = vpop.f32.mrb[0].mxu0
    %v2678 = vadd.f32 0.0, %v2677
    %v2679 = vpop.f32.mrb[0].mxu0
    %2680 = vmatprep.mubr.f32.mxu0 0.0
    %2681 = vmatmul.mubr.f32.gmra.mrb[0].mxu0 %v2543
    %v2682 = vpop.f32.mrb[0].mxu0
    %v2683 = vadd.f32 0.0, %v2682
    %v2684 = vpop.f32.mrb[0].mxu0
    %2685 = vmatprep.mubr.f32.mxu0 0.0
    %2686 = vmatmul.mubr.f32.gmra.mrb[0].mxu0 %v2546
    %v2687 = vpop.f32.mrb[0].mxu0
    %v2688 = vadd.f32 0.0, %v2687
    %v2689 = vpop.f32.mrb[0].mxu0
    %2690 = vmatprep.mubr.f32.mxu0 0.0
    %2691 = vmatmul.mubr.f32.gmra.mrb[0].mxu0 %v2549
    %v2692 = vpop.f32.mrb[0].mxu0
    %v2693 = vadd.f32 0.0, %v2692
    %v2694 = vpop.f32.mrb[0].mxu0
    %2695 = vdwg.mxu0
    %v2697 = vsel %vm95, %v2263, 0
    %v2700 = vsel %vm95, %v2264, 0
    %v2703 = vsel %vm95, %v2295, 0
    %v2706 = vsel %vm95, %v2296, 0
    %v2709 = vsel %vm95, %v2327, 0
    %v2712 = vsel %vm95, %v2328, 0
    %v2715 = vsel %vm95, %v2359, 0
    %v2718 = vsel %vm95, %v2360, 0
    %v2721 = vsel %vm95, %v2391, 0
    %v2724 = vsel %vm95, %v2392, 0
    %v2727 = vsel %vm95, %v2423, 0
    %v2730 = vsel %vm95, %v2424, 0
    %v2733 = vsel %vm95, %v2455, 0
    %v2736 = vsel %vm95, %v2456, 0
    %v2739 = vsel %vm95, %v2487, 0
    %v2742 = vsel %vm95, %v2488, 0
    %2744 = vmatprep.subr.mxu0 0.0
    %2745 = vmatpush1.msra.mxu0 %v75
    %2746 = vmatprep.subr.mxu0 0.0
    %2747 = vmatpush1.msra.mxu0 %v76
    %2748 = vmatprep.subr.mxu0 0.0
    %2749 = vmatpush1.msra.mxu0 0.0
    %2750 = vmatprep.subr.mxu0 0.0
    %2751 = vmatpush1.msra.mxu0 0.0
    %2752 = vmatprep.subr.mxu0 0.0
    %2753 = vmatpush1.msra.mxu0 0.0
    %2754 = vmatprep.subr.mxu0 0.0
    %2755 = vmatpush1.msra.mxu0 0.0
    %2756 = vmatprep.subr.mxu0 0.0
    %2757 = vmatpush1.msra.mxu0 0.0
    %2758 = vmatprep.subr.mxu0 0.0
    %2759 = vmatpush1.msra.mxu0 0.0
    %2760 = vmatprep.subr.mxu0 0.0
    %2761 = vmatpush1.msra.mxu0 0.0
    %2762 = vmatprep.subr.mxu0 0.0
    %2763 = vmatpush1.msra.mxu0 0.0
    %2764 = vmatprep.subr.mxu0 0.0
    %2765 = vmatpush1.msra.mxu0 0.0
    %2766 = vmatprep.subr.mxu0 0.0
    %2767 = vmatpush1.msra.mxu0 0.0
    %2768 = vmatprep.subr.mxu0 0.0
    %2769 = vmatpush1.msra.mxu0 0.0
    %2770 = vmatprep.subr.mxu0 0.0
    %2771 = vmatpush1.msra.mxu0 0.0
    %2772 = vmatprep.subr.mxu0 0.0
    %2773 = vmatpush1.msra.mxu0 0.0
    %2774 = vmatprep.subr.mxu0 0.0
    %2775 = vmatpush1.msra.mxu0 0.0
    %2776 = vmatprep.subr.mxu0 0.0
    %2777 = vmatpush1.msra.mxu0 0.0
    %2778 = vmatprep.subr.mxu0 0.0
    %2779 = vmatpush1.msra.mxu0 0.0
    %2780 = vmatprep.subr.mxu0 0.0
    %2781 = vmatpush1.msra.mxu0 0.0
    %2782 = vmatprep.subr.mxu0 0.0
    %2783 = vmatpush1.msra.mxu0 0.0
    %2784 = vmatprep.subr.mxu0 0.0
    %2785 = vmatpush1.msra.mxu0 0.0
    %2786 = vmatprep.subr.mxu0 0.0
    %2787 = vmatpush1.msra.mxu0 0.0
    %2788 = vmatprep.subr.mxu0 0.0
    %2789 = vmatpush1.msra.mxu0 0.0
    %2790 = vmatprep.subr.mxu0 0.0
    %2791 = vmatpush1.msra.mxu0 0.0
    %2792 = vmatprep.subr.mxu0 0.0
    %2793 = vmatpush1.msra.mxu0 0.0
    %2794 = vmatprep.subr.mxu0 0.0
    %2795 = vmatpush1.msra.mxu0 0.0
    %2796 = vmatprep.subr.mxu0 0.0
    %2797 = vmatpush1.msra.mxu0 0.0
    %2798 = vmatprep.subr.mxu0 0.0
    %2799 = vmatpush1.msra.mxu0 0.0
    %2800 = vmatprep.subr.mxu0 0.0
    %2801 = vmatpush1.msra.mxu0 0.0
    %2802 = vmatprep.subr.mxu0 0.0
    %2803 = vmatpush1.msra.mxu0 0.0
    %2804 = vmatprep.subr.mxu0 0.0
    %2805 = vmatpush1.msra.mxu0 0.0
    %2806 = vmatprep.subr.mxu0 0.0
    %2807 = vmatpush1.msra.mxu0 0.0
    %2808 = vmatprep.mubr.f32.mxu0 0.0
    %2809 = vmatmul.mubr.f32.gmra.mrb[0].mxu0 %v2697
    %v2810 = vpop.f32.mrb[0].mxu0
    %v2811 = vadd.f32 0.0, %v2810
    %v2812 = vpop.f32.mrb[0].mxu0
    %2813 = vmatprep.mubr.f32.mxu0 0.0
    %2814 = vmatmul.mubr.f32.gmra.mrb[0].mxu0 %v2700
    %v2815 = vpop.f32.mrb[0].mxu0
    %v2816 = vadd.f32 0.0, %v2815
    %v2817 = vpop.f32.mrb[0].mxu0
    %2818 = vmatprep.mubr.f32.mxu0 0.0
    %2819 = vmatmul.mubr.f32.gmra.mrb[0].mxu0 %v2703
    %v2820 = vpop.f32.mrb[0].mxu0
    %v2821 = vadd.f32 0.0, %v2820
    %v2822 = vpop.f32.mrb[0].mxu0
    %2823 = vmatprep.mubr.f32.mxu0 0.0
    %2824 = vmatmul.mubr.f32.gmra.mrb[0].mxu0 %v2706
    %v2825 = vpop.f32.mrb[0].mxu0
    %v2826 = vadd.f32 0.0, %v2825
    %v2827 = vpop.f32.mrb[0].mxu0
    %2828 = vmatprep.mubr.f32.mxu0 0.0
    %2829 = vmatmul.mubr.f32.gmra.mrb[0].mxu0 %v2709
    %v2830 = vpop.f32.mrb[0].mxu0
    %v2831 = vadd.f32 0.0, %v2830
    %v2832 = vpop.f32.mrb[0].mxu0
    %2833 = vmatprep.mubr.f32.mxu0 0.0
    %2834 = vmatmul.mubr.f32.gmra.mrb[0].mxu0 %v2712
    %v2835 = vpop.f32.mrb[0].mxu0
    %v2836 = vadd.f32 0.0, %v2835
    %v2837 = vpop.f32.mrb[0].mxu0
    %2838 = vmatprep.mubr.f32.mxu0 0.0
    %2839 = vmatmul.mubr.f32.gmra.mrb[0].mxu0 %v2715
    %v2840 = vpop.f32.mrb[0].mxu0
    %v2841 = vadd.f32 0.0, %v2840
    %v2842 = vpop.f32.mrb[0].mxu0
    %2843 = vmatprep.mubr.f32.mxu0 0.0
    %2844 = vmatmul.mubr.f32.gmra.mrb[0].mxu0 %v2718
    %v2845 = vpop.f32.mrb[0].mxu0
    %v2846 = vadd.f32 0.0, %v2845
    %v2847 = vpop.f32.mrb[0].mxu0
    %2848 = vmatprep.mubr.f32.mxu0 0.0
    %2849 = vmatmul.mubr.f32.gmra.mrb[0].mxu0 %v2721
    %v2850 = vpop.f32.mrb[0].mxu0
    %v2851 = vadd.f32 0.0, %v2850
    %v2852 = vpop.f32.mrb[0].mxu0
    %2853 = vmatprep.mubr.f32.mxu0 0.0
    %2854 = vmatmul.mubr.f32.gmra.mrb[0].mxu0 %v2724
    %v2855 = vpop.f32.mrb[0].mxu0
    %v2856 = vadd.f32 0.0, %v2855
    %v2857 = vpop.f32.mrb[0].mxu0
    %2858 = vmatprep.mubr.f32.mxu0 0.0
    %2859 = vmatmul.mubr.f32.gmra.mrb[0].mxu0 %v2727
    %v2860 = vpop.f32.mrb[0].mxu0
    %v2861 = vadd.f32 0.0, %v2860
    %v2862 = vpop.f32.mrb[0].mxu0
    %2863 = vmatprep.mubr.f32.mxu0 0.0
    %2864 = vmatmul.mubr.f32.gmra.mrb[0].mxu0 %v2730
    %v2865 = vpop.f32.mrb[0].mxu0
    %v2866 = vadd.f32 0.0, %v2865
    %v2867 = vpop.f32.mrb[0].mxu0
    %2868 = vmatprep.mubr.f32.mxu0 0.0
    %2869 = vmatmul.mubr.f32.gmra.mrb[0].mxu0 %v2733
    %v2870 = vpop.f32.mrb[0].mxu0
    %v2871 = vadd.f32 0.0, %v2870
    %v2872 = vpop.f32.mrb[0].mxu0
    %2873 = vmatprep.mubr.f32.mxu0 0.0
    %2874 = vmatmul.mubr.f32.gmra.mrb[0].mxu0 %v2736
    %v2875 = vpop.f32.mrb[0].mxu0
    %v2876 = vadd.f32 0.0, %v2875
    %v2877 = vpop.f32.mrb[0].mxu0
    %2878 = vmatprep.mubr.f32.mxu0 0.0
    %2879 = vmatmul.mubr.f32.gmra.mrb[0].mxu0 %v2739
    %v2880 = vpop.f32.mrb[0].mxu0
    %v2881 = vadd.f32 0.0, %v2880
    %v2882 = vpop.f32.mrb[0].mxu0
    %2883 = vmatprep.mubr.f32.mxu0 0.0
    %2884 = vmatmul.mubr.f32.gmra.mrb[0].mxu0 %v2742
    %v2885 = vpop.f32.mrb[0].mxu0
    %v2886 = vadd.f32 0.0, %v2885
    %v2887 = vpop.f32.mrb[0].mxu0
    %2888 = vdwg.mxu0
    %v2889 = vadd.f32 %v2007, %v2263
    %v2890 = vadd.f32 %v2008, %v2264
    %v2891 = vadd.f32 %v2039, %v2295
    %v2892 = vadd.f32 %v2040, %v2296
    %v2893 = vadd.f32 %v2071, %v2327
    %v2894 = vadd.f32 %v2072, %v2328
    %v2895 = vadd.f32 %v2103, %v2359
    %v2896 = vadd.f32 %v2104, %v2360
    %v2897 = vadd.f32 %v2135, %v2391
    %v2898 = vadd.f32 %v2136, %v2392
    %v2899 = vadd.f32 %v2167, %v2423
    %v2900 = vadd.f32 %v2168, %v2424
    %v2901 = vadd.f32 %v2199, %v2455
    %v2902 = vadd.f32 %v2200, %v2456
    %v2903 = vadd.f32 %v2231, %v2487
    %v2904 = vadd.f32 %v2232, %v2488
    %v2906 = vsel %vm95, %v2889, 0
    %v2909 = vsel %vm95, %v2890, 0
    %v2912 = vsel %vm95, %v2891, 0
    %v2915 = vsel %vm95, %v2892, 0
    %v2918 = vsel %vm95, %v2893, 0
    %v2921 = vsel %vm95, %v2894, 0
    %v2924 = vsel %vm95, %v2895, 0
    %v2927 = vsel %vm95, %v2896, 0
    %v2930 = vsel %vm95, %v2897, 0
    %v2933 = vsel %vm95, %v2898, 0
    %v2936 = vsel %vm95, %v2899, 0
    %v2939 = vsel %vm95, %v2900, 0
    %v2942 = vsel %vm95, %v2901, 0
    %v2945 = vsel %vm95, %v2902, 0
    %v2948 = vsel %vm95, %v2903, 0
    %v2951 = vsel %vm95, %v2904, 0
    %2953 = vmatprep.subr.mxu0 0.0
    %2954 = vmatpush1.msra.mxu0 %v77
    %2955 = vmatprep.subr.mxu0 0.0
    %2956 = vmatpush1.msra.mxu0 %v78
    %2957 = vmatprep.subr.mxu0 0.0
    %2958 = vmatpush1.msra.mxu0 0.0
    %2959 = vmatprep.subr.mxu0 0.0
    %2960 = vmatpush1.msra.mxu0 0.0
    %2961 = vmatprep.subr.mxu0 0.0
    %2962 = vmatpush1.msra.mxu0 0.0
    %2963 = vmatprep.subr.mxu0 0.0
    %2964 = vmatpush1.msra.mxu0 0.0
    %2965 = vmatprep.subr.mxu0 0.0
    %2966 = vmatpush1.msra.mxu0 0.0
    %2967 = vmatprep.subr.mxu0 0.0
    %2968 = vmatpush1.msra.mxu0 0.0
    %2969 = vmatprep.subr.mxu0 0.0
    %2970 = vmatpush1.msra.mxu0 0.0
    %2971 = vmatprep.subr.mxu0 0.0
    %2972 = vmatpush1.msra.mxu0 0.0
    %2973 = vmatprep.subr.mxu0 0.0
    %2974 = vmatpush1.msra.mxu0 0.0
    %2975 = vmatprep.subr.mxu0 0.0
    %2976 = vmatpush1.msra.mxu0 0.0
    %2977 = vmatprep.subr.mxu0 0.0
    %2978 = vmatpush1.msra.mxu0 0.0
    %2979 = vmatprep.subr.mxu0 0.0
    %2980 = vmatpush1.msra.mxu0 0.0
    %2981 = vmatprep.subr.mxu0 0.0
    %2982 = vmatpush1.msra.mxu0 0.0
    %2983 = vmatprep.subr.mxu0 0.0
    %2984 = vmatpush1.msra.mxu0 0.0
    %2985 = vmatprep.subr.mxu0 0.0
    %2986 = vmatpush1.msra.mxu0 0.0
    %2987 = vmatprep.subr.mxu0 0.0
    %2988 = vmatpush1.msra.mxu0 0.0
    %2989 = vmatprep.subr.mxu0 0.0
    %2990 = vmatpush1.msra.mxu0 0.0
    %2991 = vmatprep.subr.mxu0 0.0
    %2992 = vmatpush1.msra.mxu0 0.0
    %2993 = vmatprep.subr.mxu0 0.0
    %2994 = vmatpush1.msra.mxu0 0.0
    %2995 = vmatprep.subr.mxu0 0.0
    %2996 = vmatpush1.msra.mxu0 0.0
    %2997 = vmatprep.subr.mxu0 0.0
    %2998 = vmatpush1.msra.mxu0 0.0
    %2999 = vmatprep.subr.mxu0 0.0
    %3000 = vmatpush1.msra.mxu0 0.0
    %3001 = vmatprep.subr.mxu0 0.0
    %3002 = vmatpush1.msra.mxu0 0.0
    %3003 = vmatprep.subr.mxu0 0.0
    %3004 = vmatpush1.msra.mxu0 0.0
    %3005 = vmatprep.subr.mxu0 0.0
    %3006 = vmatpush1.msra.mxu0 0.0
    %3007 = vmatprep.subr.mxu0 0.0
    %3008 = vmatpush1.msra.mxu0 0.0
    %3009 = vmatprep.subr.mxu0 0.0
    %3010 = vmatpush1.msra.mxu0 0.0
    %3011 = vmatprep.subr.mxu0 0.0
    %3012 = vmatpush1.msra.mxu0 0.0
    %3013 = vmatprep.subr.mxu0 0.0
    %3014 = vmatpush1.msra.mxu0 0.0
    %3015 = vmatprep.subr.mxu0 0.0
    %3016 = vmatpush1.msra.mxu0 0.0
    %3017 = vmatprep.mubr.f32.mxu0 0.0
    %3018 = vmatmul.mubr.f32.gmra.mrb[0].mxu0 %v2906
    %v3019 = vpop.f32.mrb[0].mxu0
    %v3020 = vadd.f32 0.0, %v3019
    %v3021 = vpop.f32.mrb[0].mxu0
    %3022 = vmatprep.mubr.f32.mxu0 0.0
    %3023 = vmatmul.mubr.f32.gmra.mrb[0].mxu0 %v2909
    %v3024 = vpop.f32.mrb[0].mxu0
    %v3025 = vadd.f32 0.0, %v3024
    %v3026 = vpop.f32.mrb[0].mxu0
    %3027 = vmatprep.mubr.f32.mxu0 0.0
    %3028 = vmatmul.mubr.f32.gmra.mrb[0].mxu0 %v2912
    %v3029 = vpop.f32.mrb[0].mxu0
    %v3030 = vadd.f32 0.0, %v3029
    %v3031 = vpop.f32.mrb[0].mxu0
    %3032 = vmatprep.mubr.f32.mxu0 0.0
    %3033 = vmatmul.mubr.f32.gmra.mrb[0].mxu0 %v2915
    %v3034 = vpop.f32.mrb[0].mxu0
    %v3035 = vadd.f32 0.0, %v3034
    %v3036 = vpop.f32.mrb[0].mxu0
    %3037 = vmatprep.mubr.f32.mxu0 0.0
    %3038 = vmatmul.mubr.f32.gmra.mrb[0].mxu0 %v2918
    %v3039 = vpop.f32.mrb[0].mxu0
    %v3040 = vadd.f32 0.0, %v3039
    %v3041 = vpop.f32.mrb[0].mxu0
    %3042 = vmatprep.mubr.f32.mxu0 0.0
    %3043 = vmatmul.mubr.f32.gmra.mrb[0].mxu0 %v2921
    %v3044 = vpop.f32.mrb[0].mxu0
    %v3045 = vadd.f32 0.0, %v3044
    %v3046 = vpop.f32.mrb[0].mxu0
    %3047 = vmatprep.mubr.f32.mxu0 0.0
    %3048 = vmatmul.mubr.f32.gmra.mrb[0].mxu0 %v2924
    %v3049 = vpop.f32.mrb[0].mxu0
    %v3050 = vadd.f32 0.0, %v3049
    %v3051 = vpop.f32.mrb[0].mxu0
    %3052 = vmatprep.mubr.f32.mxu0 0.0
    %3053 = vmatmul.mubr.f32.gmra.mrb[0].mxu0 %v2927
    %v3054 = vpop.f32.mrb[0].mxu0
    %v3055 = vadd.f32 0.0, %v3054
    %v3056 = vpop.f32.mrb[0].mxu0
    %3057 = vmatprep.mubr.f32.mxu0 0.0
    %3058 = vmatmul.mubr.f32.gmra.mrb[0].mxu0 %v2930
    %v3059 = vpop.f32.mrb[0].mxu0
    %v3060 = vadd.f32 0.0, %v3059
    %v3061 = vpop.f32.mrb[0].mxu0
    %3062 = vmatprep.mubr.f32.mxu0 0.0
    %3063 = vmatmul.mubr.f32.gmra.mrb[0].mxu0 %v2933
    %v3064 = vpop.f32.mrb[0].mxu0
    %v3065 = vadd.f32 0.0, %v3064
    %v3066 = vpop.f32.mrb[0].mxu0
    %3067 = vmatprep.mubr.f32.mxu0 0.0
    %3068 = vmatmul.mubr.f32.gmra.mrb[0].mxu0 %v2936
    %v3069 = vpop.f32.mrb[0].mxu0
    %v3070 = vadd.f32 0.0, %v3069
    %v3071 = vpop.f32.mrb[0].mxu0
    %3072 = vmatprep.mubr.f32.mxu0 0.0
    %3073 = vmatmul.mubr.f32.gmra.mrb[0].mxu0 %v2939
    %v3074 = vpop.f32.mrb[0].mxu0
    %v3075 = vadd.f32 0.0, %v3074
    %v3076 = vpop.f32.mrb[0].mxu0
    %3077 = vmatprep.mubr.f32.mxu0 0.0
    %3078 = vmatmul.mubr.f32.gmra.mrb[0].mxu0 %v2942
    %v3079 = vpop.f32.mrb[0].mxu0
    %v3080 = vadd.f32 0.0, %v3079
    %v3081 = vpop.f32.mrb[0].mxu0
    %3082 = vmatprep.mubr.f32.mxu0 0.0
    %3083 = vmatmul.mubr.f32.gmra.mrb[0].mxu0 %v2945
    %v3084 = vpop.f32.mrb[0].mxu0
    %v3085 = vadd.f32 0.0, %v3084
    %v3086 = vpop.f32.mrb[0].mxu0
    %3087 = vmatprep.mubr.f32.mxu0 0.0
    %3088 = vmatmul.mubr.f32.gmra.mrb[0].mxu0 %v2948
    %v3089 = vpop.f32.mrb[0].mxu0
    %v3090 = vadd.f32 0.0, %v3089
    %v3091 = vpop.f32.mrb[0].mxu0
    %3092 = vmatprep.mubr.f32.mxu0 0.0
    %3093 = vmatmul.mubr.f32.gmra.mrb[0].mxu0 %v2951
    %v3094 = vpop.f32.mrb[0].mxu0
    %v3095 = vadd.f32 0.0, %v3094
    %v3096 = vpop.f32.mrb[0].mxu0
    %3097 = vdwg.mxu0
    %v3098 = vsub.f32 %v2618, %v2811
    %v3099 = vsub.f32 %v2623, %v2816
    %v3100 = vsub.f32 %v2628, %v2821
    %v3101 = vsub.f32 %v2633, %v2826
    %v3102 = vsub.f32 %v2638, %v2831
    %v3103 = vsub.f32 %v2643, %v2836
    %v3104 = vsub.f32 %v2648, %v2841
    %v3105 = vsub.f32 %v2653, %v2846
    %v3106 = vsub.f32 %v2658, %v2851
    %v3107 = vsub.f32 %v2663, %v2856
    %v3108 = vsub.f32 %v2668, %v2861
    %v3109 = vsub.f32 %v2673, %v2866
    %v3110 = vsub.f32 %v2678, %v2871
    %v3111 = vsub.f32 %v2683, %v2876
    %v3112 = vsub.f32 %v2688, %v2881
    %v3113 = vsub.f32 %v2693, %v2886
    %v3114 = vsub.f32 %v3020, %v2618
    %v3115 = vsub.f32 %v3025, %v2623
    %v3116 = vsub.f32 %v3030, %v2628
    %v3117 = vsub.f32 %v3035, %v2633
    %v3118 = vsub.f32 %v3040, %v2638
    %v3119 = vsub.f32 %v3045, %v2643
    %v3120 = vsub.f32 %v3050, %v2648
    %v3121 = vsub.f32 %v3055, %v2653
    %v3122 = vsub.f32 %v3060, %v2658
    %v3123 = vsub.f32 %v3065, %v2663
    %v3124 = vsub.f32 %v3070, %v2668
    %v3125 = vsub.f32 %v3075, %v2673
    %v3126 = vsub.f32 %v3080, %v2678
    %v3127 = vsub.f32 %v3085, %v2683
    %v3128 = vsub.f32 %v3090, %v2688
    %v3129 = vsub.f32 %v3095, %v2693
    %v3130 = vsub.f32 %v3114, %v2811
    %v3131 = vsub.f32 %v3115, %v2816
    %v3132 = vsub.f32 %v3116, %v2821
    %v3133 = vsub.f32 %v3117, %v2826
    %v3134 = vsub.f32 %v3118, %v2831
    %v3135 = vsub.f32 %v3119, %v2836
    %v3136 = vsub.f32 %v3120, %v2841
    %v3137 = vsub.f32 %v3121, %v2846
    %v3138 = vsub.f32 %v3122, %v2851
    %v3139 = vsub.f32 %v3123, %v2856
    %v3140 = vsub.f32 %v3124, %v2861
    %v3141 = vsub.f32 %v3125, %v2866
    %v3142 = vsub.f32 %v3126, %v2871
    %v3143 = vsub.f32 %v3127, %v2876
    %v3144 = vsub.f32 %v3128, %v2881
    %v3145 = vsub.f32 %v3129, %v2886
    %v3146 = vmul.f32 %v3098, %v3098
    %v3147 = vmul.f32 %v3099, %v3099
    %v3148 = vmul.f32 %v3100, %v3100
    %v3149 = vmul.f32 %v3101, %v3101
    %v3150 = vmul.f32 %v3102, %v3102
    %v3151 = vmul.f32 %v3103, %v3103
    %v3152 = vmul.f32 %v3104, %v3104
    %v3153 = vmul.f32 %v3105, %v3105
    %v3154 = vmul.f32 %v3106, %v3106
    %v3155 = vmul.f32 %v3107, %v3107
    %v3156 = vmul.f32 %v3108, %v3108
    %v3157 = vmul.f32 %v3109, %v3109
    %v3158 = vmul.f32 %v3110, %v3110
    %v3159 = vmul.f32 %v3111, %v3111
    %v3160 = vmul.f32 %v3112, %v3112
    %v3161 = vmul.f32 %v3113, %v3113
    %v3162 = vmul.f32 %v3130, %v3130
    %v3163 = vmul.f32 %v3131, %v3131
    %v3164 = vmul.f32 %v3132, %v3132
    %v3165 = vmul.f32 %v3133, %v3133
    %v3166 = vmul.f32 %v3134, %v3134
    %v3167 = vmul.f32 %v3135, %v3135
    %v3168 = vmul.f32 %v3136, %v3136
    %v3169 = vmul.f32 %v3137, %v3137
    %v3170 = vmul.f32 %v3138, %v3138
    %v3171 = vmul.f32 %v3139, %v3139
    %v3172 = vmul.f32 %v3140, %v3140
    %v3173 = vmul.f32 %v3141, %v3141
    %v3174 = vmul.f32 %v3142, %v3142
    %v3175 = vmul.f32 %v3143, %v3143
    %v3176 = vmul.f32 %v3144, %v3144
    %v3177 = vmul.f32 %v3145, %v3145
    %v3178 = vadd.f32 %v3146, %v3162
    %v3179 = vadd.f32 %v3147, %v3163
    %v3180 = vadd.f32 %v3148, %v3164
    %v3181 = vadd.f32 %v3149, %v3165
    %v3182 = vadd.f32 %v3150, %v3166
    %v3183 = vadd.f32 %v3151, %v3167
    %v3184 = vadd.f32 %v3152, %v3168
    %v3185 = vadd.f32 %v3153, %v3169
    %v3186 = vadd.f32 %v3154, %v3170
    %v3187 = vadd.f32 %v3155, %v3171
    %v3188 = vadd.f32 %v3156, %v3172
    %v3189 = vadd.f32 %v3157, %v3173
    %v3190 = vadd.f32 %v3158, %v3174
    %v3191 = vadd.f32 %v3159, %v3175
    %v3192 = vadd.f32 %v3160, %v3176
    %v3193 = vadd.f32 %v3161, %v3177
    %v3194 = vrcp.pop %v3178
    %v3195 = vmul.f32 %v1621, %v3194
    %v3196 = vrcp.pop %v3179
    %v3197 = vmul.f32 %v1622, %v3196
    %v3198 = vrcp.pop %v3180
    %v3199 = vmul.f32 %v1623, %v3198
    %v3200 = vrcp.pop %v3181
    %v3201 = vmul.f32 %v1624, %v3200
    %v3202 = vrcp.pop %v3182
    %v3203 = vmul.f32 %v1625, %v3202
    %v3204 = vrcp.pop %v3183
    %v3205 = vmul.f32 %v1626, %v3204
    %v3206 = vrcp.pop %v3184
    %v3207 = vmul.f32 %v1627, %v3206
    %v3208 = vrcp.pop %v3185
    %v3209 = vmul.f32 %v1628, %v3208
    %v3210 = vrcp.pop %v3186
    %v3211 = vmul.f32 %v1629, %v3210
    %v3212 = vrcp.pop %v3187
    %v3213 = vmul.f32 %v1630, %v3212
    %v3214 = vrcp.pop %v3188
    %v3215 = vmul.f32 %v1631, %v3214
    %v3216 = vrcp.pop %v3189
    %v3217 = vmul.f32 %v1632, %v3216
    %v3218 = vrcp.pop %v3190
    %v3219 = vmul.f32 %v1633, %v3218
    %v3220 = vrcp.pop %v3191
    %v3221 = vmul.f32 %v1634, %v3220
    %v3222 = vrcp.pop %v3192
    %v3223 = vmul.f32 %v1635, %v3222
    %v3224 = vrcp.pop %v3193
    %v3225 = vmul.f32 %v1636, %v3224
    %v3226 = vlog2.pop %v3195
    %v3227 = vmul.f32 %v3226, 0.6931472
    %v3228 = vlog2.pop %v3197
    %v3229 = vmul.f32 %v3228, 0.6931472
    %v3230 = vlog2.pop %v3199
    %v3231 = vmul.f32 %v3230, 0.6931472
    %v3232 = vlog2.pop %v3201
    %v3233 = vmul.f32 %v3232, 0.6931472
    %v3234 = vlog2.pop %v3203
    %v3235 = vmul.f32 %v3234, 0.6931472
    %v3236 = vlog2.pop %v3205
    %v3237 = vmul.f32 %v3236, 0.6931472
    %v3238 = vlog2.pop %v3207
    %v3239 = vmul.f32 %v3238, 0.6931472
    %v3240 = vlog2.pop %v3209
    %v3241 = vmul.f32 %v3240, 0.6931472
    %v3242 = vlog2.pop %v3211
    %v3243 = vmul.f32 %v3242, 0.6931472
    %v3244 = vlog2.pop %v3213
    %v3245 = vmul.f32 %v3244, 0.6931472
    %v3246 = vlog2.pop %v3215
    %v3247 = vmul.f32 %v3246, 0.6931472
    %v3248 = vlog2.pop %v3217
    %v3249 = vmul.f32 %v3248, 0.6931472
    %v3250 = vlog2.pop %v3219
    %v3251 = vmul.f32 %v3250, 0.6931472
    %v3252 = vlog2.pop %v3221
    %v3253 = vmul.f32 %v3252, 0.6931472
    %v3254 = vlog2.pop %v3223
    %v3255 = vmul.f32 %v3254, 0.6931472
    %v3256 = vlog2.pop %v3225
    %v3257 = vmul.f32 %v3256, 0.6931472
    %v3258 = vand.u32 2147483647, %v3227
    %v3259 = vand.u32 2147483647, %v3229
    %v3260 = vand.u32 2147483647, %v3231
    %v3261 = vand.u32 2147483647, %v3233
    %v3262 = vand.u32 2147483647, %v3235
    %v3263 = vand.u32 2147483647, %v3237
    %v3264 = vand.u32 2147483647, %v3239
    %v3265 = vand.u32 2147483647, %v3241
    %v3266 = vand.u32 2147483647, %v3243
    %v3267 = vand.u32 2147483647, %v3245
    %v3268 = vand.u32 2147483647, %v3247
    %v3269 = vand.u32 2147483647, %v3249
    %v3270 = vand.u32 2147483647, %v3251
    %v3271 = vand.u32 2147483647, %v3253
    %v3272 = vand.u32 2147483647, %v3255
    %v3273 = vand.u32 2147483647, %v3257
    %vm3274 = vcmask 72704
    %v3275 = vsel %vm3274, %v3258, 0.0
    %v3276 = vsel %vm3274, %v3259, 0.0
    %v3277 = vadd.f32 %v3275, %v3276
    %v3278 = vsel %vm3274, %v3260, 0.0
    %v3279 = vadd.f32 %v3277, %v3278
    %v3280 = vsel %vm3274, %v3261, 0.0
    %v3281 = vadd.f32 %v3279, %v3280
    %v3282 = vsel %vm3274, %v3262, 0.0
    %v3283 = vadd.f32 %v3281, %v3282
    %v3284 = vsel %vm3274, %v3263, 0.0
    %v3285 = vadd.f32 %v3283, %v3284
    %v3286 = vsel %vm3274, %v3264, 0.0
    %v3287 = vadd.f32 %v3285, %v3286
    %v3288 = vsel %vm3274, %v3265, 0.0
    %v3289 = vadd.f32 %v3287, %v3288
    %v3290 = vsel %vm3274, %v3266, 0.0
    %v3291 = vadd.f32 %v3289, %v3290
    %v3292 = vsel %vm3274, %v3267, 0.0
    %v3293 = vadd.f32 %v3291, %v3292
    %v3294 = vsel %vm3274, %v3268, 0.0
    %v3295 = vadd.f32 %v3293, %v3294
    %v3296 = vsel %vm3274, %v3269, 0.0
    %v3297 = vadd.f32 %v3295, %v3296
    %v3298 = vsel %vm3274, %v3270, 0.0
    %v3299 = vadd.f32 %v3297, %v3298
    %v3300 = vsel %vm3274, %v3271, 0.0
    %v3301 = vadd.f32 %v3299, %v3300
    %v3302 = vsel %vm3274, %v3272, 0.0
    %v3303 = vadd.f32 %v3301, %v3302
    %v3304 = vsel %vm3274, %v3273, 0.0
    %v3305 = vadd.f32 %v3303, %v3304
    %v3306 = vrot.slane %v3305, 4
    %v3307 = vadd.f32 %v3305, %v3306
    %v3308 = vrot.slane %v3307, 2
    %v3309 = vadd.f32 %v3307, %v3308
    %v3310 = vrot.slane %v3309, 1
    %v3311 = vadd.f32 %v3309, %v3310
    %vm3312 = vcmask 65536
    %3313 = vst.msk [vmem:[#allocation10] sm:$0x1] %vm3312, %v3311
    // Predicated region
    $region34: #{tpu_custom_call.1} parent=1 // pred_check
      _
    $region35: #{tpu_custom_call.1} parent=1 // pred_check_branch
      %3315 = sbr.rel (0) target = $region37
    $region36: #{tpu_custom_call.1} parent=1 // pred_region
      %s3317 = ssub.s32 16, 16
      %3318 = vsyncadd [#allocation4], %s3317
      %s3320 = sshll.u32 [#allocation10], 4
      %s3321 = int_to_ptr.vmem [resolvable:$true] %s3320
      %3323 = dma.vmem_to_hbm [thread:$0]  %s3321, 16, %s4, [#allocation4]
    $region37: #{tpu_custom_call.1} parent=1 // pred_fallthru
      _
    // Predicated region
    $region38: #{tpu_custom_call.1} parent=1 // pred_check
      _
    $region39: #{tpu_custom_call.1} parent=1 // pred_check_branch
      %3325 = sbr.rel (0) target = $region41
    $region40: #{tpu_custom_call.1} parent=1 // pred_region
      %3326 = dma.done [#allocation4], 16
    $region41: #{tpu_custom_call.1} parent=1 // pred_fallthru
      _
    %3327 = vsyncpa [#allocation3], 1
    %3328 = vsyncpa [#allocation6], 1
    %3329 = vsyncpa [#allocation9], 1
    %3330 = vsyncpa [#allocation4], 1

</llo_original>
